<compile_context>
chip_gen: v5e
topology: v5e:2x2
jax: 0.10.0
libtpu: 0.0.40
codegen_flags: <defaults>
</compile_context>

<pallas_src>
import functools
import numpy as np
import jax
import jax.numpy as jnp
from jax.experimental import pallas as pl
from jax.experimental.pallas import tpu as pltpu

BN_EPS = 1e-5
# bf16 MXU operands on real TPUs; f32 elsewhere (CPU/interpret dot thunk has no bf16xbf16=f32).
MXU_DTYPE = jnp.bfloat16 if jax.default_backend() == "tpu" else jnp.float32
STRIDES = (1, 2, 2, 2)            # layer1..layer4 strides (one BasicBlock per layer)
PLANES = (8, 16, 32, 64)          # small widths; same structure as resnet layer1..4


def _round_up(n, m):
    return ((n + m - 1) // m) * m


def _lay(r):
    """Padded-flat layout at resolution r: (r+2)x(r+2) row-major, lane-padded to 128."""
    wp = r + 2
    n = wp * wp
    return wp, n, _round_up(n, 128)


# ------------------------- host-side constant builders -------------------------

def _interior_mask_np(r):
    wp, n, npad = _lay(r)
    m = np.zeros((wp, wp), np.float32)
    m[1:1 + r, 1:1 + r] = 1.0
    out = np.zeros((1, npad), np.float32)
    out[0, :n] = m.reshape(-1)
    return out


def _subsample_np(r):
    """0/1 matrix: padded-flat @r -> padded-flat @(r//2); selects input (1+2oy, 1+2ox)."""
    r2 = r // 2
    wp, _, npad_in = _lay(r)
    wp2, _, npad_out = _lay(r2)
    s = np.zeros((npad_in, npad_out), np.float32)
    for oy in range(r2):
        for ox in range(r2):
            s[(1 + 2 * oy) * wp + (1 + 2 * ox), (1 + oy) * wp2 + (1 + ox)] = 1.0
    return s


def _adaptive_rows_np(n_in, n_out):
    # exact PyTorch adaptive_avg_pool bin edges: [floor(i*in/out), ceil((i+1)*in/out))
    m = np.zeros((n_out, n_in), np.float32)
    for i in range(n_out):
        lo = (i * n_in) // n_out
        hi = -((-(i + 1) * n_in) // n_out)
        m[i, lo:hi] = 1.0 / (hi - lo)
    return m


def _head_matrix_np(r, att, n_cols):
    """[npad(r), n_cols]: col 0 = spatial mean, cols 1..att*att = adaptive_avg_pool2d bins,
    remaining cols zero (lane padding so the kernel output store is lane-dense)."""
    wp, _, npad = _lay(r)
    m = np.zeros((npad, n_cols), np.float32)
    a = np.kron(_adaptive_rows_np(r, att), _adaptive_rows_np(r, att))   # [att*att, r*r]
    for iy in range(r):
        for ix in range(r):
            p = (1 + iy) * wp + (1 + ix)
            m[p, 0] = 1.0 / (r * r)
            m[p, 1:1 + att * att] = a[:, iy * r + ix]
    return m


# ------------------------- parameter / input preparation -------------------------

def _conv1_patches(img, r_out, k_pad):
    """im2col of the 7x7 / stride-2 / pad-3 conv evaluated at every position of the
    padded-flat output layout (pad/lane-pad columns hold junk the kernel masks away)."""
    cin = img.shape[0]
    wp, n, npad = _lay(r_out)
    xp = jnp.pad(img.astype(jnp.float32), ((0, 0), (5, 5), (5, 5)))
    cols = []
    for ky in range(7):
        for kx in range(7):
            sl = xp[:, ky:ky + 2 * wp:2, kx:kx + 2 * wp:2]          # [cin, wp, wp]
            cols.append(sl.reshape(cin, n))
    p = jnp.concatenate(cols, axis=0)                               # [49*cin, n]
    p = jnp.pad(p, ((0, k_pad - p.shape[0]), (0, npad - n)))
    return p.astype(MXU_DTYPE)


def _fold_bn(bn):
    gamma, beta, mean, var = bn
    scale = gamma / jnp.sqrt(var + BN_EPS)
    shift = beta - mean * scale
    return scale, shift


def _conv1_weight(w, scale, k_pad):
    cout, cin, kh, kw = w.shape
    m = jnp.transpose(w, (2, 3, 1, 0)).reshape(kh * kw * cin, cout).T    # [cout, K]
    m = m * scale[:, None]
    m = jnp.pad(m, ((0, 0), (0, k_pad - m.shape[1])))
    return m.astype(MXU_DTYPE)


def _tap_weights(w, scale):
    """BN-folded 3x3 weights stacked tap-major along the contraction: [cout, 9*cin]."""
    cout, cin = w.shape[0], w.shape[1]
    taps = jnp.transpose(w, (2, 3, 0, 1)).reshape(9, cout, cin)          # tap = ky*3+kx
    taps = taps * scale[None, :, None]
    return jnp.transpose(taps, (1, 0, 2)).reshape(cout, 9 * cin).astype(MXU_DTYPE)


def _down_weight(w, scale):
    return (w[:, :, 0, 0] * scale[:, None]).astype(MXU_DTYPE)           # [cout, cin]


# ------------------------- fused forward (myResnet.forward) -------------------------

@functools.partial(jax.jit, static_argnames=("strides", "att_size"))
def my_resnet_forward(img_chw, params, strides=STRIDES, att_size=14):
    _, H, W = img_chw.shape
    assert H == W and H % 4 == 0

    # ----- static structure ------------------------------------------------------
    c1_out = params["conv1_w"].shape[0]
    c1_in = params["conv1_w"].shape[1]
    r0 = H // 2                       # conv1 output resolution (7x7 / s2 / p3)
    r1 = r0 // 2                      # after 3x3 / s2 / p1 maxpool
    block_meta, r = [], r1
    for blk, stride in zip(params["layers"], strides):
        block_meta.append(dict(cin=blk["conv1_w"].shape[1],
                               cout=blk["conv1_w"].shape[0],
                               stride=stride, has_down="down_w" in blk,
                               r_in=r, r_out=r // stride))
        r //= stride
    r_final, c_final = r, block_meta[-1]["cout"]

    mask_res = sorted({r0}
                      | {m["r_in"] for m in block_meta if m["stride"] == 1}
                      | {m["r_out"] for m in block_meta}, reverse=True)
    sub_res = sorted({r0} | {m["r_in"] for m in block_meta if m["stride"] != 1},
                     reverse=True)

    n_head = 1 + att_size * att_size
    n_head_pad = _round_up(n_head, 128)       # lane-dense output stores
    k1_pad = _round_up(49 * c1_in, 16)        # aligned conv1 contraction

    # ----- constants & BN-folded weights -----------------------------------------
    s1, sh1 = _fold_bn(params["bn1"])
    w1 = _conv1_weight(params["conv1_w"], s1, k1_pad)
    b1 = sh1.reshape(c1_out, 1).astype(jnp.float32)
    p1 = _conv1_patches(img_chw, r0, k1_pad)

    masks = {rr: jnp.asarray(_interior_mask_np(rr)) for rr in mask_res}          # f32
    subs = {rr: jnp.asarray(_subsample_np(rr), dtype=MXU_DTYPE) for rr in sub_res}
    m_head = jnp.asarray(_head_matrix_np(r_final, att_size, n_head_pad), dtype=MXU_DTYPE)

    blk_arrays = []
    for blk in params["layers"]:
        sa, ba = _fold_bn(blk["bn1"])
        sb, bb = _fold_bn(blk["bn2"])
        cout = blk["conv1_w"].shape[0]
        arrs = [_tap_weights(blk["conv1_w"], sa),
                ba.reshape(cout, 1).astype(jnp.float32),
                _tap_weights(blk["conv2_w"], sb),
                bb.reshape(cout, 1).astype(jnp.float32)]
        if "down_w" in blk:
            sd, bd = _fold_bn(blk["down_bn"])
            arrs += [_down_weight(blk["down_w"], sd),
                     bd.reshape(cout, 1).astype(jnp.float32)]
        blk_arrays.append(arrs)

    inputs = ([p1, w1, b1]
              + [masks[rr] for rr in mask_res]
              + [subs[rr] for rr in sub_res]
              + [m_head]
              + [a for arrs in blk_arrays for a in arrs])

    sub_align = 16 if MXU_DTYPE == jnp.bfloat16 else 8

    # ----- the single fused kernel ------------------------------------------------
    def kernel(*refs):
        it = iter(refs)
        p1_ref, w1_ref, b1_ref = next(it), next(it), next(it)
        mask = {rr: next(it) for rr in mask_res}
        sub = {rr: next(it) for rr in sub_res}
        mh_ref = next(it)
        blocks = []
        for meta in block_meta:
            bp = dict(wc1=next(it), bc1=next(it), wc2=next(it), bc2=next(it))
            if meta["has_down"]:
                bp["wd"], bp["bd"] = next(it), next(it)
            blocks.append(bp)
        out_ref = next(it)

        def shifted(x, off):
            # result[:, p] = x[:, p + off]  (circular; wrapped columns only land on
            # positions that the masks / subsample matrices discard)
            if off == 0:
                return x
            return pltpu.roll(x, shift=(-off) % x.shape[1], axis=1)

        def conv3x3(x, rr, w_ref):
            # ONE MXU matmul per conv: taps stacked along the contraction (K = 9*cin).
            wp = rr + 2
            offs = [(ky - 1) * wp + (kx - 1) for ky in range(3) for kx in range(3)]
            if x.shape[0] % sub_align == 0:
                xb = x.astype(MXU_DTYPE)                 # cast hoisted out of tap loop
                xs = jnp.concatenate([shifted(xb, o) for o in offs], axis=0)
            else:
                # keep sublane concat tile-aligned (f32 pieces); single cast afterwards
                xs = jnp.concatenate([shifted(x, o) for o in offs], axis=0)
                xs = xs.astype(MXU_DTYPE)
            return jnp.dot(w_ref[...], xs, preferred_element_type=jnp.float32)

        # conv1 + bn1 + relu (stride 2 folded into the precomputed patch matrix)
        x = jnp.dot(w1_ref[...], p1_ref[...], preferred_element_type=jnp.float32)
        x = jnp.maximum(x + b1_ref[...], 0.0) * mask[r0][...]

        # maxpool 3x3 / s2 / p1: separable stride-1 window max, then subsample + re-pad.
        # (zero padding == PyTorch's -inf padding here because x is post-ReLU, >= 0)
        wp0 = r0 + 2
        m = jnp.maximum(jnp.maximum(x, shifted(x, wp0)), shifted(x, -wp0))
        m = jnp.maximum(jnp.maximum(m, shifted(m, 1)), shifted(m, -1))
        x = jnp.dot(m.astype(MXU_DTYPE), sub[r0][...], preferred_element_type=jnp.float32)

        # layer1..layer4 (BasicBlocks, BN folded into weights/bias)
        for meta, bp in zip(block_meta, blocks):
            r_in, r_out, stride = meta["r_in"], meta["r_out"], meta["stride"]

            if meta["has_down"]:
                # 1x1(/s2) conv + bn downsample: subsample FIRST (exact for a 1x1 conv),
                # so the matmul runs on the small output layout.
                xs = x
                if stride != 1:
                    xs = jnp.dot(x.astype(MXU_DTYPE), sub[r_in][...],
                                 preferred_element_type=jnp.float32)
                idn = jnp.dot(bp["wd"][...], xs.astype(MXU_DTYPE),
                              preferred_element_type=jnp.float32) + bp["bd"][...]
            else:
                idn = x

            h = conv3x3(x, r_in, bp["wc1"]) + bp["bc1"][...]
            h = jnp.maximum(h, 0.0)
            if stride != 1:                            # stride-2: subsample + re-pad
                h = jnp.dot(h.astype(MXU_DTYPE), sub[r_in][...],
                            preferred_element_type=jnp.float32)
            else:                                      # stride-1: re-zero the padding
                h = h * mask[r_in][...]

            h = conv3x3(h, r_out, bp["wc2"]) + bp["bc2"][...] + idn
            x = jnp.maximum(h, 0.0) * mask[r_out][...]

        # head: col 0 = spatial mean (fc), cols 1..att*att = adaptive_avg_pool2d bins,
        # remaining cols are zero padding so the output store is lane-dense.
        out_ref[...] = jnp.dot(x.astype(MXU_DTYPE), mh_ref[...],
                               preferred_element_type=jnp.float32)

    def _full_spec(a):
        return pl.BlockSpec(a.shape, lambda i, _nd=a.ndim: (0,) * _nd)

    out = pl.pallas_call(
        kernel,
        grid=(1,),
        in_specs=[_full_spec(a) for a in inputs],
        out_specs=pl.BlockSpec((c_final, n_head_pad), lambda i: (0, 0)),
        out_shape=jax.ShapeDtypeStruct((c_final, n_head_pad), jnp.float32),
        compiler_params=pltpu.CompilerParams(
            dimension_semantics=("arbitrary",),
            vmem_limit_bytes=32 * 1024 * 1024),
    )(*inputs)

    fc = out[:, 0]                                            # (C,)   == x.mean(3).mean(2).squeeze()
    att = out[:, 1:n_head].T.reshape(att_size, att_size, c_final)  # (a,a,C) == permute(1,2,0)
    return fc, att


# ------------------------- synthetic mini-ResNet params -------------------------

def _init_conv(key, cout, cin, kh, kw):
    fan_in = cin * kh * kw
    return jax.random.normal(key, (cout, cin, kh, kw), jnp.float32) / np.sqrt(fan_in)


def _init_bn(key, c):
    k1, k2, k3, k4 = jax.random.split(key, 4)
    gamma = 1.0 + 0.1 * jax.random.normal(k1, (c,), jnp.float32)
    beta = 0.1 * jax.random.normal(k2, (c,), jnp.float32)
    mean = 0.1 * jax.random.normal(k3, (c,), jnp.float32)
    var = 0.5 + jax.random.uniform(k4, (c,), jnp.float32)
    return gamma, beta, mean, var


def make_mini_resnet_params(key):
    keys = iter(jax.random.split(key, 64))
    params = {"conv1_w": _init_conv(next(keys), PLANES[0], 3, 7, 7),
              "bn1": _init_bn(next(keys), PLANES[0]),
              "layers": []}
    inplanes = PLANES[0]
    for width, stride in zip(PLANES, STRIDES):
        blk = {"conv1_w": _init_conv(next(keys), width, inplanes, 3, 3),
               "bn1": _init_bn(next(keys), width),
               "conv2_w": _init_conv(next(keys), width, width, 3, 3),
               "bn2": _init_bn(next(keys), width)}
        if stride != 1 or inplanes != width:
            blk["down_w"] = _init_conv(next(keys), width, inplanes, 1, 1)
            blk["down_bn"] = _init_bn(next(keys), width)
        params["layers"].append(blk)
        inplanes = width
    return params


if __name__ == "__main__":
    key = jax.random.PRNGKey(0)
    kp, kx = jax.random.split(key)
    params = make_mini_resnet_params(kp)
    img = jax.random.normal(kx, (3, 64, 64), jnp.float32)   # CHW, like the PyTorch input

    fc, att = my_resnet_forward(img, params, att_size=14)
    jax.block_until_ready((fc, att))

    assert fc.shape == (64,), fc.shape
    assert att.shape == (14, 14, 64), att.shape
    assert bool(jnp.isfinite(fc).all()) and bool(jnp.isfinite(att).all())
    print("KERNEL_OK")
</pallas_src>

<mosaic_0001>
module attributes {stable_mosaic.version = 11 : i64} {
  func.func @kernel(%arg0: i32, %arg1: memref<160x1280xf32, #tpu.memory_space<vmem>>, %arg2: memref<8x160xf32, #tpu.memory_space<vmem>>, %arg3: memref<8x1xf32, #tpu.memory_space<vmem>>, %arg4: memref<1x1280xf32, #tpu.memory_space<vmem>>, %arg5: memref<1x384xf32, #tpu.memory_space<vmem>>, %arg6: memref<1x128xf32, #tpu.memory_space<vmem>>, %arg7: memref<1x128xf32, #tpu.memory_space<vmem>>, %arg8: memref<1x128xf32, #tpu.memory_space<vmem>>, %arg9: memref<1280x384xf32, #tpu.memory_space<vmem>>, %arg10: memref<384x128xf32, #tpu.memory_space<vmem>>, %arg11: memref<128x128xf32, #tpu.memory_space<vmem>>, %arg12: memref<128x128xf32, #tpu.memory_space<vmem>>, %arg13: memref<128x256xf32, #tpu.memory_space<vmem>>, %arg14: memref<8x72xf32, #tpu.memory_space<vmem>>, %arg15: memref<8x1xf32, #tpu.memory_space<vmem>>, %arg16: memref<8x72xf32, #tpu.memory_space<vmem>>, %arg17: memref<8x1xf32, #tpu.memory_space<vmem>>, %arg18: memref<16x72xf32, #tpu.memory_space<vmem>>, %arg19: memref<16x1xf32, #tpu.memory_space<vmem>>, %arg20: memref<16x144xf32, #tpu.memory_space<vmem>>, %arg21: memref<16x1xf32, #tpu.memory_space<vmem>>, %arg22: memref<16x8xf32, #tpu.memory_space<vmem>>, %arg23: memref<16x1xf32, #tpu.memory_space<vmem>>, %arg24: memref<32x144xf32, #tpu.memory_space<vmem>>, %arg25: memref<32x1xf32, #tpu.memory_space<vmem>>, %arg26: memref<32x288xf32, #tpu.memory_space<vmem>>, %arg27: memref<32x1xf32, #tpu.memory_space<vmem>>, %arg28: memref<32x16xf32, #tpu.memory_space<vmem>>, %arg29: memref<32x1xf32, #tpu.memory_space<vmem>>, %arg30: memref<64x288xf32, #tpu.memory_space<vmem>>, %arg31: memref<64x1xf32, #tpu.memory_space<vmem>>, %arg32: memref<64x576xf32, #tpu.memory_space<vmem>>, %arg33: memref<64x1xf32, #tpu.memory_space<vmem>>, %arg34: memref<64x32xf32, #tpu.memory_space<vmem>>, %arg35: memref<64x1xf32, #tpu.memory_space<vmem>>, %arg36: memref<64x256xf32, #tpu.memory_space<vmem>>) attributes {dimension_semantics = [#tpu.dimension_semantics<arbitrary>], iteration_bounds = array<i64: 1>, scalar_prefetch = 0 : i64, scratch_operands = 0 : i64, tpu.core_type = #tpu.core_type<tc>, window_params = [{pipeline_mode = #tpu.pipeline_mode<synchronous>, transform_indices = @transform_0, window_bounds = array<i64: 160, 1280>}, {pipeline_mode = #tpu.pipeline_mode<synchronous>, transform_indices = @transform_1, window_bounds = array<i64: 8, 160>}, {pipeline_mode = #tpu.pipeline_mode<synchronous>, transform_indices = @transform_2, window_bounds = array<i64: 8, 1>}, {pipeline_mode = #tpu.pipeline_mode<synchronous>, transform_indices = @transform_3, window_bounds = array<i64: 1, 1280>}, {pipeline_mode = #tpu.pipeline_mode<synchronous>, transform_indices = @transform_4, window_bounds = array<i64: 1, 384>}, {pipeline_mode = #tpu.pipeline_mode<synchronous>, transform_indices = @transform_5, window_bounds = array<i64: 1, 128>}, {pipeline_mode = #tpu.pipeline_mode<synchronous>, transform_indices = @transform_6, window_bounds = array<i64: 1, 128>}, {pipeline_mode = #tpu.pipeline_mode<synchronous>, transform_indices = @transform_7, window_bounds = array<i64: 1, 128>}, {pipeline_mode = #tpu.pipeline_mode<synchronous>, transform_indices = @transform_8, window_bounds = array<i64: 1280, 384>}, {pipeline_mode = #tpu.pipeline_mode<synchronous>, transform_indices = @transform_9, window_bounds = array<i64: 384, 128>}, {pipeline_mode = #tpu.pipeline_mode<synchronous>, transform_indices = @transform_10, window_bounds = array<i64: 128, 128>}, {pipeline_mode = #tpu.pipeline_mode<synchronous>, transform_indices = @transform_11, window_bounds = array<i64: 128, 128>}, {pipeline_mode = #tpu.pipeline_mode<synchronous>, transform_indices = @transform_12, window_bounds = array<i64: 128, 256>}, {pipeline_mode = #tpu.pipeline_mode<synchronous>, transform_indices = @transform_13, window_bounds = array<i64: 8, 72>}, {pipeline_mode = #tpu.pipeline_mode<synchronous>, transform_indices = @transform_14, window_bounds = array<i64: 8, 1>}, {pipeline_mode = #tpu.pipeline_mode<synchronous>, transform_indices = @transform_15, window_bounds = array<i64: 8, 72>}, {pipeline_mode = #tpu.pipeline_mode<synchronous>, transform_indices = @transform_16, window_bounds = array<i64: 8, 1>}, {pipeline_mode = #tpu.pipeline_mode<synchronous>, transform_indices = @transform_17, window_bounds = array<i64: 16, 72>}, {pipeline_mode = #tpu.pipeline_mode<synchronous>, transform_indices = @transform_18, window_bounds = array<i64: 16, 1>}, {pipeline_mode = #tpu.pipeline_mode<synchronous>, transform_indices = @transform_19, window_bounds = array<i64: 16, 144>}, {pipeline_mode = #tpu.pipeline_mode<synchronous>, transform_indices = @transform_20, window_bounds = array<i64: 16, 1>}, {pipeline_mode = #tpu.pipeline_mode<synchronous>, transform_indices = @transform_21, window_bounds = array<i64: 16, 8>}, {pipeline_mode = #tpu.pipeline_mode<synchronous>, transform_indices = @transform_22, window_bounds = array<i64: 16, 1>}, {pipeline_mode = #tpu.pipeline_mode<synchronous>, transform_indices = @transform_23, window_bounds = array<i64: 32, 144>}, {pipeline_mode = #tpu.pipeline_mode<synchronous>, transform_indices = @transform_24, window_bounds = array<i64: 32, 1>}, {pipeline_mode = #tpu.pipeline_mode<synchronous>, transform_indices = @transform_25, window_bounds = array<i64: 32, 288>}, {pipeline_mode = #tpu.pipeline_mode<synchronous>, transform_indices = @transform_26, window_bounds = array<i64: 32, 1>}, {pipeline_mode = #tpu.pipeline_mode<synchronous>, transform_indices = @transform_27, window_bounds = array<i64: 32, 16>}, {pipeline_mode = #tpu.pipeline_mode<synchronous>, transform_indices = @transform_28, window_bounds = array<i64: 32, 1>}, {pipeline_mode = #tpu.pipeline_mode<synchronous>, transform_indices = @transform_29, window_bounds = array<i64: 64, 288>}, {pipeline_mode = #tpu.pipeline_mode<synchronous>, transform_indices = @transform_30, window_bounds = array<i64: 64, 1>}, {pipeline_mode = #tpu.pipeline_mode<synchronous>, transform_indices = @transform_31, window_bounds = array<i64: 64, 576>}, {pipeline_mode = #tpu.pipeline_mode<synchronous>, transform_indices = @transform_32, window_bounds = array<i64: 64, 1>}, {pipeline_mode = #tpu.pipeline_mode<synchronous>, transform_indices = @transform_33, window_bounds = array<i64: 64, 32>}, {pipeline_mode = #tpu.pipeline_mode<synchronous>, transform_indices = @transform_34, window_bounds = array<i64: 64, 1>}, {pipeline_mode = #tpu.pipeline_mode<synchronous>, transform_indices = @transform_35, window_bounds = array<i64: 64, 256>}]} {
    %c0 = arith.constant 0 : index
    %c0_0 = arith.constant 0 : index
    %0 = vector.load %arg2[%c0, %c0_0] : memref<8x160xf32, #tpu.memory_space<vmem>>, vector<8x160xf32>
    %c0_1 = arith.constant 0 : index
    %c0_2 = arith.constant 0 : index
    %1 = vector.load %arg1[%c0_1, %c0_2] : memref<160x1280xf32, #tpu.memory_space<vmem>>, vector<160x1280xf32>
    %cst = arith.constant dense<0.000000e+00> : vector<8x1280xf32>
    %2 = tpu.matmul %0, %1, %cst {dimension_numbers = #tpu.dot_dimension_numbers<[1], [0], [0], [1], [0, 0, 1, 1], [], []>} : vector<8x160xf32>, vector<160x1280xf32>, vector<8x1280xf32> -> vector<8x1280xf32>
    %c0_3 = arith.constant 0 : index
    %c0_4 = arith.constant 0 : index
    %3 = vector.load %arg3[%c0_3, %c0_4] : memref<8x1xf32, #tpu.memory_space<vmem>>, vector<8x1xf32>
    %4 = vector.broadcast %3 : vector<8x1xf32> to vector<8x1280xf32>
    %5 = arith.addf %2, %4 : vector<8x1280xf32>
    %cst_5 = arith.constant 0.000000e+00 : f32
    %6 = vector.broadcast %cst_5 : f32 to vector<8x1280xf32>
    %7 = arith.maximumf %5, %6 : vector<8x1280xf32>
    %c0_6 = arith.constant 0 : index
    %c0_7 = arith.constant 0 : index
    %8 = vector.load %arg4[%c0_6, %c0_7] : memref<1x1280xf32, #tpu.memory_space<vmem>>, vector<1x1280xf32>
    %9 = vector.broadcast %8 : vector<1x1280xf32> to vector<8x1280xf32>
    %10 = arith.mulf %7, %9 : vector<8x1280xf32>
    %c1246_i32 = arith.constant 1246 : i32
    %11 = tpu.dynamic_rotate %10 by %c1246_i32 dim 1 : vector<8x1280xf32>, i32 -> vector<8x1280xf32>
    %12 = arith.maximumf %10, %11 : vector<8x1280xf32>
    %c34_i32 = arith.constant 34 : i32
    %13 = tpu.dynamic_rotate %10 by %c34_i32 dim 1 : vector<8x1280xf32>, i32 -> vector<8x1280xf32>
    %14 = arith.maximumf %12, %13 : vector<8x1280xf32>
    %c1279_i32 = arith.constant 1279 : i32
    %15 = tpu.dynamic_rotate %14 by %c1279_i32 dim 1 : vector<8x1280xf32>, i32 -> vector<8x1280xf32>
    %16 = arith.maximumf %14, %15 : vector<8x1280xf32>
    %c1_i32 = arith.constant 1 : i32
    %17 = tpu.dynamic_rotate %14 by %c1_i32 dim 1 : vector<8x1280xf32>, i32 -> vector<8x1280xf32>
    %18 = arith.maximumf %16, %17 : vector<8x1280xf32>
    %c0_8 = arith.constant 0 : index
    %c0_9 = arith.constant 0 : index
    %19 = vector.load %arg9[%c0_8, %c0_9] : memref<1280x384xf32, #tpu.memory_space<vmem>>, vector<1280x384xf32>
    %cst_10 = arith.constant dense<0.000000e+00> : vector<8x384xf32>
    %20 = tpu.matmul %18, %19, %cst_10 {dimension_numbers = #tpu.dot_dimension_numbers<[1], [0], [0], [1], [0, 0, 1, 1], [], []>} : vector<8x1280xf32>, vector<1280x384xf32>, vector<8x384xf32> -> vector<8x384xf32>
    %c19_i32 = arith.constant 19 : i32
    %21 = tpu.dynamic_rotate %20 by %c19_i32 dim 1 : vector<8x384xf32>, i32 -> vector<8x384xf32>
    %c18_i32 = arith.constant 18 : i32
    %22 = tpu.dynamic_rotate %20 by %c18_i32 dim 1 : vector<8x384xf32>, i32 -> vector<8x384xf32>
    %c17_i32 = arith.constant 17 : i32
    %23 = tpu.dynamic_rotate %20 by %c17_i32 dim 1 : vector<8x384xf32>, i32 -> vector<8x384xf32>
    %c1_i32_11 = arith.constant 1 : i32
    %24 = tpu.dynamic_rotate %20 by %c1_i32_11 dim 1 : vector<8x384xf32>, i32 -> vector<8x384xf32>
    %c383_i32 = arith.constant 383 : i32
    %25 = tpu.dynamic_rotate %20 by %c383_i32 dim 1 : vector<8x384xf32>, i32 -> vector<8x384xf32>
    %c367_i32 = arith.constant 367 : i32
    %26 = tpu.dynamic_rotate %20 by %c367_i32 dim 1 : vector<8x384xf32>, i32 -> vector<8x384xf32>
    %c366_i32 = arith.constant 366 : i32
    %27 = tpu.dynamic_rotate %20 by %c366_i32 dim 1 : vector<8x384xf32>, i32 -> vector<8x384xf32>
    %c365_i32 = arith.constant 365 : i32
    %28 = tpu.dynamic_rotate %20 by %c365_i32 dim 1 : vector<8x384xf32>, i32 -> vector<8x384xf32>
    %29 = tpu.concatenate %21, %22, %23, %24, %20, %25, %26, %27, %28 in 0 : vector<8x384xf32>, vector<8x384xf32>, vector<8x384xf32>, vector<8x384xf32>, vector<8x384xf32>, vector<8x384xf32>, vector<8x384xf32>, vector<8x384xf32>, vector<8x384xf32> -> vector<72x384xf32>
    %c0_12 = arith.constant 0 : index
    %c0_13 = arith.constant 0 : index
    %30 = vector.load %arg14[%c0_12, %c0_13] : memref<8x72xf32, #tpu.memory_space<vmem>>, vector<8x72xf32>
    %cst_14 = arith.constant dense<0.000000e+00> : vector<8x384xf32>
    %31 = tpu.matmul %30, %29, %cst_14 {dimension_numbers = #tpu.dot_dimension_numbers<[1], [0], [0], [1], [0, 0, 1, 1], [], []>} : vector<8x72xf32>, vector<72x384xf32>, vector<8x384xf32> -> vector<8x384xf32>
    %c0_15 = arith.constant 0 : index
    %c0_16 = arith.constant 0 : index
    %32 = vector.load %arg15[%c0_15, %c0_16] : memref<8x1xf32, #tpu.memory_space<vmem>>, vector<8x1xf32>
    %33 = vector.broadcast %32 : vector<8x1xf32> to vector<8x384xf32>
    %34 = arith.addf %31, %33 : vector<8x384xf32>
    %cst_17 = arith.constant 0.000000e+00 : f32
    %35 = vector.broadcast %cst_17 : f32 to vector<8x384xf32>
    %36 = arith.maximumf %34, %35 : vector<8x384xf32>
    %c0_18 = arith.constant 0 : index
    %c0_19 = arith.constant 0 : index
    %37 = vector.load %arg5[%c0_18, %c0_19] : memref<1x384xf32, #tpu.memory_space<vmem>>, vector<1x384xf32>
    %38 = vector.broadcast %37 : vector<1x384xf32> to vector<8x384xf32>
    %39 = arith.mulf %36, %38 : vector<8x384xf32>
    %c19_i32_20 = arith.constant 19 : i32
    %40 = tpu.dynamic_rotate %39 by %c19_i32_20 dim 1 : vector<8x384xf32>, i32 -> vector<8x384xf32>
    %c18_i32_21 = arith.constant 18 : i32
    %41 = tpu.dynamic_rotate %39 by %c18_i32_21 dim 1 : vector<8x384xf32>, i32 -> vector<8x384xf32>
    %c17_i32_22 = arith.constant 17 : i32
    %42 = tpu.dynamic_rotate %39 by %c17_i32_22 dim 1 : vector<8x384xf32>, i32 -> vector<8x384xf32>
    %c1_i32_23 = arith.constant 1 : i32
    %43 = tpu.dynamic_rotate %39 by %c1_i32_23 dim 1 : vector<8x384xf32>, i32 -> vector<8x384xf32>
    %c383_i32_24 = arith.constant 383 : i32
    %44 = tpu.dynamic_rotate %39 by %c383_i32_24 dim 1 : vector<8x384xf32>, i32 -> vector<8x384xf32>
    %c367_i32_25 = arith.constant 367 : i32
    %45 = tpu.dynamic_rotate %39 by %c367_i32_25 dim 1 : vector<8x384xf32>, i32 -> vector<8x384xf32>
    %c366_i32_26 = arith.constant 366 : i32
    %46 = tpu.dynamic_rotate %39 by %c366_i32_26 dim 1 : vector<8x384xf32>, i32 -> vector<8x384xf32>
    %c365_i32_27 = arith.constant 365 : i32
    %47 = tpu.dynamic_rotate %39 by %c365_i32_27 dim 1 : vector<8x384xf32>, i32 -> vector<8x384xf32>
    %48 = tpu.concatenate %40, %41, %42, %43, %39, %44, %45, %46, %47 in 0 : vector<8x384xf32>, vector<8x384xf32>, vector<8x384xf32>, vector<8x384xf32>, vector<8x384xf32>, vector<8x384xf32>, vector<8x384xf32>, vector<8x384xf32>, vector<8x384xf32> -> vector<72x384xf32>
    %c0_28 = arith.constant 0 : index
    %c0_29 = arith.constant 0 : index
    %49 = vector.load %arg16[%c0_28, %c0_29] : memref<8x72xf32, #tpu.memory_space<vmem>>, vector<8x72xf32>
    %cst_30 = arith.constant dense<0.000000e+00> : vector<8x384xf32>
    %50 = tpu.matmul %49, %48, %cst_30 {dimension_numbers = #tpu.dot_dimension_numbers<[1], [0], [0], [1], [0, 0, 1, 1], [], []>} : vector<8x72xf32>, vector<72x384xf32>, vector<8x384xf32> -> vector<8x384xf32>
    %c0_31 = arith.constant 0 : index
    %c0_32 = arith.constant 0 : index
    %51 = vector.load %arg17[%c0_31, %c0_32] : memref<8x1xf32, #tpu.memory_space<vmem>>, vector<8x1xf32>
    %52 = vector.broadcast %51 : vector<8x1xf32> to vector<8x384xf32>
    %53 = arith.addf %50, %52 : vector<8x384xf32>
    %54 = arith.addf %53, %20 : vector<8x384xf32>
    %cst_33 = arith.constant 0.000000e+00 : f32
    %55 = vector.broadcast %cst_33 : f32 to vector<8x384xf32>
    %56 = arith.maximumf %54, %55 : vector<8x384xf32>
    %c0_34 = arith.constant 0 : index
    %c0_35 = arith.constant 0 : index
    %57 = vector.load %arg5[%c0_34, %c0_35] : memref<1x384xf32, #tpu.memory_space<vmem>>, vector<1x384xf32>
    %58 = vector.broadcast %57 : vector<1x384xf32> to vector<8x384xf32>
    %59 = arith.mulf %56, %58 : vector<8x384xf32>
    %c0_36 = arith.constant 0 : index
    %c0_37 = arith.constant 0 : index
    %60 = vector.load %arg10[%c0_36, %c0_37] : memref<384x128xf32, #tpu.memory_space<vmem>>, vector<384x128xf32>
    %cst_38 = arith.constant dense<0.000000e+00> : vector<8x128xf32>
    %61 = tpu.matmul %59, %60, %cst_38 {dimension_numbers = #tpu.dot_dimension_numbers<[1], [0], [0], [1], [0, 0, 1, 1], [], []>} : vector<8x384xf32>, vector<384x128xf32>, vector<8x128xf32> -> vector<8x128xf32>
    %c0_39 = arith.constant 0 : index
    %c0_40 = arith.constant 0 : index
    %62 = vector.load %arg22[%c0_39, %c0_40] : memref<16x8xf32, #tpu.memory_space<vmem>>, vector<16x8xf32>
    %cst_41 = arith.constant dense<0.000000e+00> : vector<16x128xf32>
    %63 = tpu.matmul %62, %61, %cst_41 {dimension_numbers = #tpu.dot_dimension_numbers<[1], [0], [0], [1], [0, 0, 1, 1], [], []>} : vector<16x8xf32>, vector<8x128xf32>, vector<16x128xf32> -> vector<16x128xf32>
    %c0_42 = arith.constant 0 : index
    %c0_43 = arith.constant 0 : index
    %64 = vector.load %arg23[%c0_42, %c0_43] : memref<16x1xf32, #tpu.memory_space<vmem>>, vector<16x1xf32>
    %65 = vector.broadcast %64 : vector<16x1xf32> to vector<16x128xf32>
    %66 = arith.addf %63, %65 : vector<16x128xf32>
    %c19_i32_44 = arith.constant 19 : i32
    %67 = tpu.dynamic_rotate %59 by %c19_i32_44 dim 1 : vector<8x384xf32>, i32 -> vector<8x384xf32>
    %c18_i32_45 = arith.constant 18 : i32
    %68 = tpu.dynamic_rotate %59 by %c18_i32_45 dim 1 : vector<8x384xf32>, i32 -> vector<8x384xf32>
    %c17_i32_46 = arith.constant 17 : i32
    %69 = tpu.dynamic_rotate %59 by %c17_i32_46 dim 1 : vector<8x384xf32>, i32 -> vector<8x384xf32>
    %c1_i32_47 = arith.constant 1 : i32
    %70 = tpu.dynamic_rotate %59 by %c1_i32_47 dim 1 : vector<8x384xf32>, i32 -> vector<8x384xf32>
    %c383_i32_48 = arith.constant 383 : i32
    %71 = tpu.dynamic_rotate %59 by %c383_i32_48 dim 1 : vector<8x384xf32>, i32 -> vector<8x384xf32>
    %c367_i32_49 = arith.constant 367 : i32
    %72 = tpu.dynamic_rotate %59 by %c367_i32_49 dim 1 : vector<8x384xf32>, i32 -> vector<8x384xf32>
    %c366_i32_50 = arith.constant 366 : i32
    %73 = tpu.dynamic_rotate %59 by %c366_i32_50 dim 1 : vector<8x384xf32>, i32 -> vector<8x384xf32>
    %c365_i32_51 = arith.constant 365 : i32
    %74 = tpu.dynamic_rotate %59 by %c365_i32_51 dim 1 : vector<8x384xf32>, i32 -> vector<8x384xf32>
    %75 = tpu.concatenate %67, %68, %69, %70, %59, %71, %72, %73, %74 in 0 : vector<8x384xf32>, vector<8x384xf32>, vector<8x384xf32>, vector<8x384xf32>, vector<8x384xf32>, vector<8x384xf32>, vector<8x384xf32>, vector<8x384xf32>, vector<8x384xf32> -> vector<72x384xf32>
    %c0_52 = arith.constant 0 : index
    %c0_53 = arith.constant 0 : index
    %76 = vector.load %arg18[%c0_52, %c0_53] : memref<16x72xf32, #tpu.memory_space<vmem>>, vector<16x72xf32>
    %cst_54 = arith.constant dense<0.000000e+00> : vector<16x384xf32>
    %77 = tpu.matmul %76, %75, %cst_54 {dimension_numbers = #tpu.dot_dimension_numbers<[1], [0], [0], [1], [0, 0, 1, 1], [], []>} : vector<16x72xf32>, vector<72x384xf32>, vector<16x384xf32> -> vector<16x384xf32>
    %c0_55 = arith.constant 0 : index
    %c0_56 = arith.constant 0 : index
    %78 = vector.load %arg19[%c0_55, %c0_56] : memref<16x1xf32, #tpu.memory_space<vmem>>, vector<16x1xf32>
    %79 = vector.broadcast %78 : vector<16x1xf32> to vector<16x384xf32>
    %80 = arith.addf %77, %79 : vector<16x384xf32>
    %cst_57 = arith.constant 0.000000e+00 : f32
    %81 = vector.broadcast %cst_57 : f32 to vector<16x384xf32>
    %82 = arith.maximumf %80, %81 : vector<16x384xf32>
    %c0_58 = arith.constant 0 : index
    %c0_59 = arith.constant 0 : index
    %83 = vector.load %arg10[%c0_58, %c0_59] : memref<384x128xf32, #tpu.memory_space<vmem>>, vector<384x128xf32>
    %cst_60 = arith.constant dense<0.000000e+00> : vector<16x128xf32>
    %84 = tpu.matmul %82, %83, %cst_60 {dimension_numbers = #tpu.dot_dimension_numbers<[1], [0], [0], [1], [0, 0, 1, 1], [], []>} : vector<16x384xf32>, vector<384x128xf32>, vector<16x128xf32> -> vector<16x128xf32>
    %c11_i32 = arith.constant 11 : i32
    %85 = tpu.dynamic_rotate %84 by %c11_i32 dim 1 : vector<16x128xf32>, i32 -> vector<16x128xf32>
    %c10_i32 = arith.constant 10 : i32
    %86 = tpu.dynamic_rotate %84 by %c10_i32 dim 1 : vector<16x128xf32>, i32 -> vector<16x128xf32>
    %c9_i32 = arith.constant 9 : i32
    %87 = tpu.dynamic_rotate %84 by %c9_i32 dim 1 : vector<16x128xf32>, i32 -> vector<16x128xf32>
    %c1_i32_61 = arith.constant 1 : i32
    %88 = tpu.dynamic_rotate %84 by %c1_i32_61 dim 1 : vector<16x128xf32>, i32 -> vector<16x128xf32>
    %c127_i32 = arith.constant 127 : i32
    %89 = tpu.dynamic_rotate %84 by %c127_i32 dim 1 : vector<16x128xf32>, i32 -> vector<16x128xf32>
    %c119_i32 = arith.constant 119 : i32
    %90 = tpu.dynamic_rotate %84 by %c119_i32 dim 1 : vector<16x128xf32>, i32 -> vector<16x128xf32>
    %c118_i32 = arith.constant 118 : i32
    %91 = tpu.dynamic_rotate %84 by %c118_i32 dim 1 : vector<16x128xf32>, i32 -> vector<16x128xf32>
    %c117_i32 = arith.constant 117 : i32
    %92 = tpu.dynamic_rotate %84 by %c117_i32 dim 1 : vector<16x128xf32>, i32 -> vector<16x128xf32>
    %93 = tpu.concatenate %85, %86, %87, %88, %84, %89, %90, %91, %92 in 0 : vector<16x128xf32>, vector<16x128xf32>, vector<16x128xf32>, vector<16x128xf32>, vector<16x128xf32>, vector<16x128xf32>, vector<16x128xf32>, vector<16x128xf32>, vector<16x128xf32> -> vector<144x128xf32>
    %c0_62 = arith.constant 0 : index
    %c0_63 = arith.constant 0 : index
    %94 = vector.load %arg20[%c0_62, %c0_63] : memref<16x144xf32, #tpu.memory_space<vmem>>, vector<16x144xf32>
    %cst_64 = arith.constant dense<0.000000e+00> : vector<16x128xf32>
    %95 = tpu.matmul %94, %93, %cst_64 {dimension_numbers = #tpu.dot_dimension_numbers<[1], [0], [0], [1], [0, 0, 1, 1], [], []>} : vector<16x144xf32>, vector<144x128xf32>, vector<16x128xf32> -> vector<16x128xf32>
    %c0_65 = arith.constant 0 : index
    %c0_66 = arith.constant 0 : index
    %96 = vector.load %arg21[%c0_65, %c0_66] : memref<16x1xf32, #tpu.memory_space<vmem>>, vector<16x1xf32>
    %97 = vector.broadcast %96 : vector<16x1xf32> to vector<16x128xf32>
    %98 = arith.addf %95, %97 : vector<16x128xf32>
    %99 = arith.addf %98, %66 : vector<16x128xf32>
    %cst_67 = arith.constant 0.000000e+00 : f32
    %100 = vector.broadcast %cst_67 : f32 to vector<16x128xf32>
    %101 = arith.maximumf %99, %100 : vector<16x128xf32>
    %c0_68 = arith.constant 0 : index
    %c0_69 = arith.constant 0 : index
    %102 = vector.load %arg6[%c0_68, %c0_69] : memref<1x128xf32, #tpu.memory_space<vmem>>, vector<1x128xf32>
    %103 = vector.broadcast %102 : vector<1x128xf32> to vector<16x128xf32>
    %104 = arith.mulf %101, %103 : vector<16x128xf32>
    %c0_70 = arith.constant 0 : index
    %c0_71 = arith.constant 0 : index
    %105 = vector.load %arg11[%c0_70, %c0_71] : memref<128x128xf32, #tpu.memory_space<vmem>>, vector<128x128xf32>
    %cst_72 = arith.constant dense<0.000000e+00> : vector<16x128xf32>
    %106 = tpu.matmul %104, %105, %cst_72 {dimension_numbers = #tpu.dot_dimension_numbers<[1], [0], [0], [1], [0, 0, 1, 1], [], []>} : vector<16x128xf32>, vector<128x128xf32>, vector<16x128xf32> -> vector<16x128xf32>
    %c0_73 = arith.constant 0 : index
    %c0_74 = arith.constant 0 : index
    %107 = vector.load %arg28[%c0_73, %c0_74] : memref<32x16xf32, #tpu.memory_space<vmem>>, vector<32x16xf32>
    %cst_75 = arith.constant dense<0.000000e+00> : vector<32x128xf32>
    %108 = tpu.matmul %107, %106, %cst_75 {dimension_numbers = #tpu.dot_dimension_numbers<[1], [0], [0], [1], [0, 0, 1, 1], [], []>} : vector<32x16xf32>, vector<16x128xf32>, vector<32x128xf32> -> vector<32x128xf32>
    %c0_76 = arith.constant 0 : index
    %c0_77 = arith.constant 0 : index
    %109 = vector.load %arg29[%c0_76, %c0_77] : memref<32x1xf32, #tpu.memory_space<vmem>>, vector<32x1xf32>
    %110 = vector.broadcast %109 : vector<32x1xf32> to vector<32x128xf32>
    %111 = arith.addf %108, %110 : vector<32x128xf32>
    %c11_i32_78 = arith.constant 11 : i32
    %112 = tpu.dynamic_rotate %104 by %c11_i32_78 dim 1 : vector<16x128xf32>, i32 -> vector<16x128xf32>
    %c10_i32_79 = arith.constant 10 : i32
    %113 = tpu.dynamic_rotate %104 by %c10_i32_79 dim 1 : vector<16x128xf32>, i32 -> vector<16x128xf32>
    %c9_i32_80 = arith.constant 9 : i32
    %114 = tpu.dynamic_rotate %104 by %c9_i32_80 dim 1 : vector<16x128xf32>, i32 -> vector<16x128xf32>
    %c1_i32_81 = arith.constant 1 : i32
    %115 = tpu.dynamic_rotate %104 by %c1_i32_81 dim 1 : vector<16x128xf32>, i32 -> vector<16x128xf32>
    %c127_i32_82 = arith.constant 127 : i32
    %116 = tpu.dynamic_rotate %104 by %c127_i32_82 dim 1 : vector<16x128xf32>, i32 -> vector<16x128xf32>
    %c119_i32_83 = arith.constant 119 : i32
    %117 = tpu.dynamic_rotate %104 by %c119_i32_83 dim 1 : vector<16x128xf32>, i32 -> vector<16x128xf32>
    %c118_i32_84 = arith.constant 118 : i32
    %118 = tpu.dynamic_rotate %104 by %c118_i32_84 dim 1 : vector<16x128xf32>, i32 -> vector<16x128xf32>
    %c117_i32_85 = arith.constant 117 : i32
    %119 = tpu.dynamic_rotate %104 by %c117_i32_85 dim 1 : vector<16x128xf32>, i32 -> vector<16x128xf32>
    %120 = tpu.concatenate %112, %113, %114, %115, %104, %116, %117, %118, %119 in 0 : vector<16x128xf32>, vector<16x128xf32>, vector<16x128xf32>, vector<16x128xf32>, vector<16x128xf32>, vector<16x128xf32>, vector<16x128xf32>, vector<16x128xf32>, vector<16x128xf32> -> vector<144x128xf32>
    %c0_86 = arith.constant 0 : index
    %c0_87 = arith.constant 0 : index
    %121 = vector.load %arg24[%c0_86, %c0_87] : memref<32x144xf32, #tpu.memory_space<vmem>>, vector<32x144xf32>
    %cst_88 = arith.constant dense<0.000000e+00> : vector<32x128xf32>
    %122 = tpu.matmul %121, %120, %cst_88 {dimension_numbers = #tpu.dot_dimension_numbers<[1], [0], [0], [1], [0, 0, 1, 1], [], []>} : vector<32x144xf32>, vector<144x128xf32>, vector<32x128xf32> -> vector<32x128xf32>
    %c0_89 = arith.constant 0 : index
    %c0_90 = arith.constant 0 : index
    %123 = vector.load %arg25[%c0_89, %c0_90] : memref<32x1xf32, #tpu.memory_space<vmem>>, vector<32x1xf32>
    %124 = vector.broadcast %123 : vector<32x1xf32> to vector<32x128xf32>
    %125 = arith.addf %122, %124 : vector<32x128xf32>
    %cst_91 = arith.constant 0.000000e+00 : f32
    %126 = vector.broadcast %cst_91 : f32 to vector<32x128xf32>
    %127 = arith.maximumf %125, %126 : vector<32x128xf32>
    %c0_92 = arith.constant 0 : index
    %c0_93 = arith.constant 0 : index
    %128 = vector.load %arg11[%c0_92, %c0_93] : memref<128x128xf32, #tpu.memory_space<vmem>>, vector<128x128xf32>
    %cst_94 = arith.constant dense<0.000000e+00> : vector<32x128xf32>
    %129 = tpu.matmul %127, %128, %cst_94 {dimension_numbers = #tpu.dot_dimension_numbers<[1], [0], [0], [1], [0, 0, 1, 1], [], []>} : vector<32x128xf32>, vector<128x128xf32>, vector<32x128xf32> -> vector<32x128xf32>
    %c7_i32 = arith.constant 7 : i32
    %130 = tpu.dynamic_rotate %129 by %c7_i32 dim 1 : vector<32x128xf32>, i32 -> vector<32x128xf32>
    %c6_i32 = arith.constant 6 : i32
    %131 = tpu.dynamic_rotate %129 by %c6_i32 dim 1 : vector<32x128xf32>, i32 -> vector<32x128xf32>
    %c5_i32 = arith.constant 5 : i32
    %132 = tpu.dynamic_rotate %129 by %c5_i32 dim 1 : vector<32x128xf32>, i32 -> vector<32x128xf32>
    %c1_i32_95 = arith.constant 1 : i32
    %133 = tpu.dynamic_rotate %129 by %c1_i32_95 dim 1 : vector<32x128xf32>, i32 -> vector<32x128xf32>
    %c127_i32_96 = arith.constant 127 : i32
    %134 = tpu.dynamic_rotate %129 by %c127_i32_96 dim 1 : vector<32x128xf32>, i32 -> vector<32x128xf32>
    %c123_i32 = arith.constant 123 : i32
    %135 = tpu.dynamic_rotate %129 by %c123_i32 dim 1 : vector<32x128xf32>, i32 -> vector<32x128xf32>
    %c122_i32 = arith.constant 122 : i32
    %136 = tpu.dynamic_rotate %129 by %c122_i32 dim 1 : vector<32x128xf32>, i32 -> vector<32x128xf32>
    %c121_i32 = arith.constant 121 : i32
    %137 = tpu.dynamic_rotate %129 by %c121_i32 dim 1 : vector<32x128xf32>, i32 -> vector<32x128xf32>
    %138 = tpu.concatenate %130, %131, %132, %133, %129, %134, %135, %136, %137 in 0 : vector<32x128xf32>, vector<32x128xf32>, vector<32x128xf32>, vector<32x128xf32>, vector<32x128xf32>, vector<32x128xf32>, vector<32x128xf32>, vector<32x128xf32>, vector<32x128xf32> -> vector<288x128xf32>
    %c0_97 = arith.constant 0 : index
    %c0_98 = arith.constant 0 : index
    %139 = vector.load %arg26[%c0_97, %c0_98] : memref<32x288xf32, #tpu.memory_space<vmem>>, vector<32x288xf32>
    %cst_99 = arith.constant dense<0.000000e+00> : vector<32x128xf32>
    %140 = tpu.matmul %139, %138, %cst_99 {dimension_numbers = #tpu.dot_dimension_numbers<[1], [0], [0], [1], [0, 0, 1, 1], [], []>} : vector<32x288xf32>, vector<288x128xf32>, vector<32x128xf32> -> vector<32x128xf32>
    %c0_100 = arith.constant 0 : index
    %c0_101 = arith.constant 0 : index
    %141 = vector.load %arg27[%c0_100, %c0_101] : memref<32x1xf32, #tpu.memory_space<vmem>>, vector<32x1xf32>
    %142 = vector.broadcast %141 : vector<32x1xf32> to vector<32x128xf32>
    %143 = arith.addf %140, %142 : vector<32x128xf32>
    %144 = arith.addf %143, %111 : vector<32x128xf32>
    %cst_102 = arith.constant 0.000000e+00 : f32
    %145 = vector.broadcast %cst_102 : f32 to vector<32x128xf32>
    %146 = arith.maximumf %144, %145 : vector<32x128xf32>
    %c0_103 = arith.constant 0 : index
    %c0_104 = arith.constant 0 : index
    %147 = vector.load %arg7[%c0_103, %c0_104] : memref<1x128xf32, #tpu.memory_space<vmem>>, vector<1x128xf32>
    %148 = vector.broadcast %147 : vector<1x128xf32> to vector<32x128xf32>
    %149 = arith.mulf %146, %148 : vector<32x128xf32>
    %c0_105 = arith.constant 0 : index
    %c0_106 = arith.constant 0 : index
    %150 = vector.load %arg12[%c0_105, %c0_106] : memref<128x128xf32, #tpu.memory_space<vmem>>, vector<128x128xf32>
    %cst_107 = arith.constant dense<0.000000e+00> : vector<32x128xf32>
    %151 = tpu.matmul %149, %150, %cst_107 {dimension_numbers = #tpu.dot_dimension_numbers<[1], [0], [0], [1], [0, 0, 1, 1], [], []>} : vector<32x128xf32>, vector<128x128xf32>, vector<32x128xf32> -> vector<32x128xf32>
    %c0_108 = arith.constant 0 : index
    %c0_109 = arith.constant 0 : index
    %152 = vector.load %arg34[%c0_108, %c0_109] : memref<64x32xf32, #tpu.memory_space<vmem>>, vector<64x32xf32>
    %cst_110 = arith.constant dense<0.000000e+00> : vector<64x128xf32>
    %153 = tpu.matmul %152, %151, %cst_110 {dimension_numbers = #tpu.dot_dimension_numbers<[1], [0], [0], [1], [0, 0, 1, 1], [], []>} : vector<64x32xf32>, vector<32x128xf32>, vector<64x128xf32> -> vector<64x128xf32>
    %c0_111 = arith.constant 0 : index
    %c0_112 = arith.constant 0 : index
    %154 = vector.load %arg35[%c0_111, %c0_112] : memref<64x1xf32, #tpu.memory_space<vmem>>, vector<64x1xf32>
    %155 = vector.broadcast %154 : vector<64x1xf32> to vector<64x128xf32>
    %156 = arith.addf %153, %155 : vector<64x128xf32>
    %c7_i32_113 = arith.constant 7 : i32
    %157 = tpu.dynamic_rotate %149 by %c7_i32_113 dim 1 : vector<32x128xf32>, i32 -> vector<32x128xf32>
    %c6_i32_114 = arith.constant 6 : i32
    %158 = tpu.dynamic_rotate %149 by %c6_i32_114 dim 1 : vector<32x128xf32>, i32 -> vector<32x128xf32>
    %c5_i32_115 = arith.constant 5 : i32
    %159 = tpu.dynamic_rotate %149 by %c5_i32_115 dim 1 : vector<32x128xf32>, i32 -> vector<32x128xf32>
    %c1_i32_116 = arith.constant 1 : i32
    %160 = tpu.dynamic_rotate %149 by %c1_i32_116 dim 1 : vector<32x128xf32>, i32 -> vector<32x128xf32>
    %c127_i32_117 = arith.constant 127 : i32
    %161 = tpu.dynamic_rotate %149 by %c127_i32_117 dim 1 : vector<32x128xf32>, i32 -> vector<32x128xf32>
    %c123_i32_118 = arith.constant 123 : i32
    %162 = tpu.dynamic_rotate %149 by %c123_i32_118 dim 1 : vector<32x128xf32>, i32 -> vector<32x128xf32>
    %c122_i32_119 = arith.constant 122 : i32
    %163 = tpu.dynamic_rotate %149 by %c122_i32_119 dim 1 : vector<32x128xf32>, i32 -> vector<32x128xf32>
    %c121_i32_120 = arith.constant 121 : i32
    %164 = tpu.dynamic_rotate %149 by %c121_i32_120 dim 1 : vector<32x128xf32>, i32 -> vector<32x128xf32>
    %165 = tpu.concatenate %157, %158, %159, %160, %149, %161, %162, %163, %164 in 0 : vector<32x128xf32>, vector<32x128xf32>, vector<32x128xf32>, vector<32x128xf32>, vector<32x128xf32>, vector<32x128xf32>, vector<32x128xf32>, vector<32x128xf32>, vector<32x128xf32> -> vector<288x128xf32>
    %c0_121 = arith.constant 0 : index
    %c0_122 = arith.constant 0 : index
    %166 = vector.load %arg30[%c0_121, %c0_122] : memref<64x288xf32, #tpu.memory_space<vmem>>, vector<64x288xf32>
    %cst_123 = arith.constant dense<0.000000e+00> : vector<64x128xf32>
    %167 = tpu.matmul %166, %165, %cst_123 {dimension_numbers = #tpu.dot_dimension_numbers<[1], [0], [0], [1], [0, 0, 1, 1], [], []>} : vector<64x288xf32>, vector<288x128xf32>, vector<64x128xf32> -> vector<64x128xf32>
    %c0_124 = arith.constant 0 : index
    %c0_125 = arith.constant 0 : index
    %168 = vector.load %arg31[%c0_124, %c0_125] : memref<64x1xf32, #tpu.memory_space<vmem>>, vector<64x1xf32>
    %169 = vector.broadcast %168 : vector<64x1xf32> to vector<64x128xf32>
    %170 = arith.addf %167, %169 : vector<64x128xf32>
    %cst_126 = arith.constant 0.000000e+00 : f32
    %171 = vector.broadcast %cst_126 : f32 to vector<64x128xf32>
    %172 = arith.maximumf %170, %171 : vector<64x128xf32>
    %c0_127 = arith.constant 0 : index
    %c0_128 = arith.constant 0 : index
    %173 = vector.load %arg12[%c0_127, %c0_128] : memref<128x128xf32, #tpu.memory_space<vmem>>, vector<128x128xf32>
    %cst_129 = arith.constant dense<0.000000e+00> : vector<64x128xf32>
    %174 = tpu.matmul %172, %173, %cst_129 {dimension_numbers = #tpu.dot_dimension_numbers<[1], [0], [0], [1], [0, 0, 1, 1], [], []>} : vector<64x128xf32>, vector<128x128xf32>, vector<64x128xf32> -> vector<64x128xf32>
    %c5_i32_130 = arith.constant 5 : i32
    %175 = tpu.dynamic_rotate %174 by %c5_i32_130 dim 1 : vector<64x128xf32>, i32 -> vector<64x128xf32>
    %c4_i32 = arith.constant 4 : i32
    %176 = tpu.dynamic_rotate %174 by %c4_i32 dim 1 : vector<64x128xf32>, i32 -> vector<64x128xf32>
    %c3_i32 = arith.constant 3 : i32
    %177 = tpu.dynamic_rotate %174 by %c3_i32 dim 1 : vector<64x128xf32>, i32 -> vector<64x128xf32>
    %c1_i32_131 = arith.constant 1 : i32
    %178 = tpu.dynamic_rotate %174 by %c1_i32_131 dim 1 : vector<64x128xf32>, i32 -> vector<64x128xf32>
    %c127_i32_132 = arith.constant 127 : i32
    %179 = tpu.dynamic_rotate %174 by %c127_i32_132 dim 1 : vector<64x128xf32>, i32 -> vector<64x128xf32>
    %c125_i32 = arith.constant 125 : i32
    %180 = tpu.dynamic_rotate %174 by %c125_i32 dim 1 : vector<64x128xf32>, i32 -> vector<64x128xf32>
    %c124_i32 = arith.constant 124 : i32
    %181 = tpu.dynamic_rotate %174 by %c124_i32 dim 1 : vector<64x128xf32>, i32 -> vector<64x128xf32>
    %c123_i32_133 = arith.constant 123 : i32
    %182 = tpu.dynamic_rotate %174 by %c123_i32_133 dim 1 : vector<64x128xf32>, i32 -> vector<64x128xf32>
    %183 = tpu.concatenate %175, %176, %177, %178, %174, %179, %180, %181, %182 in 0 : vector<64x128xf32>, vector<64x128xf32>, vector<64x128xf32>, vector<64x128xf32>, vector<64x128xf32>, vector<64x128xf32>, vector<64x128xf32>, vector<64x128xf32>, vector<64x128xf32> -> vector<576x128xf32>
    %c0_134 = arith.constant 0 : index
    %c0_135 = arith.constant 0 : index
    %184 = vector.load %arg32[%c0_134, %c0_135] : memref<64x576xf32, #tpu.memory_space<vmem>>, vector<64x576xf32>
    %cst_136 = arith.constant dense<0.000000e+00> : vector<64x128xf32>
    %185 = tpu.matmul %184, %183, %cst_136 {dimension_numbers = #tpu.dot_dimension_numbers<[1], [0], [0], [1], [0, 0, 1, 1], [], []>} : vector<64x576xf32>, vector<576x128xf32>, vector<64x128xf32> -> vector<64x128xf32>
    %c0_137 = arith.constant 0 : index
    %c0_138 = arith.constant 0 : index
    %186 = vector.load %arg33[%c0_137, %c0_138] : memref<64x1xf32, #tpu.memory_space<vmem>>, vector<64x1xf32>
    %187 = vector.broadcast %186 : vector<64x1xf32> to vector<64x128xf32>
    %188 = arith.addf %185, %187 : vector<64x128xf32>
    %189 = arith.addf %188, %156 : vector<64x128xf32>
    %cst_139 = arith.constant 0.000000e+00 : f32
    %190 = vector.broadcast %cst_139 : f32 to vector<64x128xf32>
    %191 = arith.maximumf %189, %190 : vector<64x128xf32>
    %c0_140 = arith.constant 0 : index
    %c0_141 = arith.constant 0 : index
    %192 = vector.load %arg8[%c0_140, %c0_141] : memref<1x128xf32, #tpu.memory_space<vmem>>, vector<1x128xf32>
    %193 = vector.broadcast %192 : vector<1x128xf32> to vector<64x128xf32>
    %194 = arith.mulf %191, %193 : vector<64x128xf32>
    %c0_142 = arith.constant 0 : index
    %c0_143 = arith.constant 0 : index
    %195 = vector.load %arg13[%c0_142, %c0_143] : memref<128x256xf32, #tpu.memory_space<vmem>>, vector<128x256xf32>
    %cst_144 = arith.constant dense<0.000000e+00> : vector<64x256xf32>
    %196 = tpu.matmul %194, %195, %cst_144 {dimension_numbers = #tpu.dot_dimension_numbers<[1], [0], [0], [1], [0, 0, 1, 1], [], []>} : vector<64x128xf32>, vector<128x256xf32>, vector<64x256xf32> -> vector<64x256xf32>
    %c0_145 = arith.constant 0 : index
    %c0_146 = arith.constant 0 : index
    %197 = vector.load %arg36[%c0_145, %c0_146] : memref<64x256xf32, #tpu.memory_space<vmem>>, vector<64x256xf32>
    tpu.vector_store %arg36[%c0_145, %c0_146], %196 {strides = array<i32>} : memref<64x256xf32, #tpu.memory_space<vmem>>, vector<64x256xf32>,
    return
  }
  func.func @transform_0(%arg0: i32) -> (i32, i32) {
    %c0_i32 = arith.constant 0 : i32
    %c0_i32_0 = arith.constant 0 : i32
    %c0_i32_1 = arith.constant 0 : i32
    return %c0_i32, %c0_i32_0 : i32, i32
  }
  func.func @transform_1(%arg0: i32) -> (i32, i32) {
    %c0_i32 = arith.constant 0 : i32
    %c0_i32_0 = arith.constant 0 : i32
    %c0_i32_1 = arith.constant 0 : i32
    return %c0_i32, %c0_i32_0 : i32, i32
  }
  func.func @transform_2(%arg0: i32) -> (i32, i32) {
    %c0_i32 = arith.constant 0 : i32
    %c0_i32_0 = arith.constant 0 : i32
    %c0_i32_1 = arith.constant 0 : i32
    return %c0_i32, %c0_i32_0 : i32, i32
  }
  func.func @transform_3(%arg0: i32) -> (i32, i32) {
    %c0_i32 = arith.constant 0 : i32
    %c0_i32_0 = arith.constant 0 : i32
    %c0_i32_1 = arith.constant 0 : i32
    return %c0_i32, %c0_i32_0 : i32, i32
  }
  func.func @transform_4(%arg0: i32) -> (i32, i32) {
    %c0_i32 = arith.constant 0 : i32
    %c0_i32_0 = arith.constant 0 : i32
    %c0_i32_1 = arith.constant 0 : i32
    return %c0_i32, %c0_i32_0 : i32, i32
  }
  func.func @transform_5(%arg0: i32) -> (i32, i32) {
    %c0_i32 = arith.constant 0 : i32
    %c0_i32_0 = arith.constant 0 : i32
    %c0_i32_1 = arith.constant 0 : i32
    return %c0_i32, %c0_i32_0 : i32, i32
  }
  func.func @transform_6(%arg0: i32) -> (i32, i32) {
    %c0_i32 = arith.constant 0 : i32
    %c0_i32_0 = arith.constant 0 : i32
    %c0_i32_1 = arith.constant 0 : i32
    return %c0_i32, %c0_i32_0 : i32, i32
  }
  func.func @transform_7(%arg0: i32) -> (i32, i32) {
    %c0_i32 = arith.constant 0 : i32
    %c0_i32_0 = arith.constant 0 : i32
    %c0_i32_1 = arith.constant 0 : i32
    return %c0_i32, %c0_i32_0 : i32, i32
  }
  func.func @transform_8(%arg0: i32) -> (i32, i32) {
    %c0_i32 = arith.constant 0 : i32
    %c0_i32_0 = arith.constant 0 : i32
    %c0_i32_1 = arith.constant 0 : i32
    return %c0_i32, %c0_i32_0 : i32, i32
  }
  func.func @transform_9(%arg0: i32) -> (i32, i32) {
    %c0_i32 = arith.constant 0 : i32
    %c0_i32_0 = arith.constant 0 : i32
    %c0_i32_1 = arith.constant 0 : i32
    return %c0_i32, %c0_i32_0 : i32, i32
  }
  func.func @transform_10(%arg0: i32) -> (i32, i32) {
    %c0_i32 = arith.constant 0 : i32
    %c0_i32_0 = arith.constant 0 : i32
    %c0_i32_1 = arith.constant 0 : i32
    return %c0_i32, %c0_i32_0 : i32, i32
  }
  func.func @transform_11(%arg0: i32) -> (i32, i32) {
    %c0_i32 = arith.constant 0 : i32
    %c0_i32_0 = arith.constant 0 : i32
    %c0_i32_1 = arith.constant 0 : i32
    return %c0_i32, %c0_i32_0 : i32, i32
  }
  func.func @transform_12(%arg0: i32) -> (i32, i32) {
    %c0_i32 = arith.constant 0 : i32
    %c0_i32_0 = arith.constant 0 : i32
    %c0_i32_1 = arith.constant 0 : i32
    return %c0_i32, %c0_i32_0 : i32, i32
  }
  func.func @transform_13(%arg0: i32) -> (i32, i32) {
    %c0_i32 = arith.constant 0 : i32
    %c0_i32_0 = arith.constant 0 : i32
    %c0_i32_1 = arith.constant 0 : i32
    return %c0_i32, %c0_i32_0 : i32, i32
  }
  func.func @transform_14(%arg0: i32) -> (i32, i32) {
    %c0_i32 = arith.constant 0 : i32
    %c0_i32_0 = arith.constant 0 : i32
    %c0_i32_1 = arith.constant 0 : i32
    return %c0_i32, %c0_i32_0 : i32, i32
  }
  func.func @transform_15(%arg0: i32) -> (i32, i32) {
    %c0_i32 = arith.constant 0 : i32
    %c0_i32_0 = arith.constant 0 : i32
    %c0_i32_1 = arith.constant 0 : i32
    return %c0_i32, %c0_i32_0 : i32, i32
  }
  func.func @transform_16(%arg0: i32) -> (i32, i32) {
    %c0_i32 = arith.constant 0 : i32
    %c0_i32_0 = arith.constant 0 : i32
    %c0_i32_1 = arith.constant 0 : i32
    return %c0_i32, %c0_i32_0 : i32, i32
  }
  func.func @transform_17(%arg0: i32) -> (i32, i32) {
    %c0_i32 = arith.constant 0 : i32
    %c0_i32_0 = arith.constant 0 : i32
    %c0_i32_1 = arith.constant 0 : i32
    return %c0_i32, %c0_i32_0 : i32, i32
  }
  func.func @transform_18(%arg0: i32) -> (i32, i32) {
    %c0_i32 = arith.constant 0 : i32
    %c0_i32_0 = arith.constant 0 : i32
    %c0_i32_1 = arith.constant 0 : i32
    return %c0_i32, %c0_i32_0 : i32, i32
  }
  func.func @transform_19(%arg0: i32) -> (i32, i32) {
    %c0_i32 = arith.constant 0 : i32
    %c0_i32_0 = arith.constant 0 : i32
    %c0_i32_1 = arith.constant 0 : i32
    return %c0_i32, %c0_i32_0 : i32, i32
  }
  func.func @transform_20(%arg0: i32) -> (i32, i32) {
    %c0_i32 = arith.constant 0 : i32
    %c0_i32_0 = arith.constant 0 : i32
    %c0_i32_1 = arith.constant 0 : i32
    return %c0_i32, %c0_i32_0 : i32, i32
  }
  func.func @transform_21(%arg0: i32) -> (i32, i32) {
    %c0_i32 = arith.constant 0 : i32
    %c0_i32_0 = arith.constant 0 : i32
    %c0_i32_1 = arith.constant 0 : i32
    return %c0_i32, %c0_i32_0 : i32, i32
  }
  func.func @transform_22(%arg0: i32) -> (i32, i32) {
    %c0_i32 = arith.constant 0 : i32
    %c0_i32_0 = arith.constant 0 : i32
    %c0_i32_1 = arith.constant 0 : i32
    return %c0_i32, %c0_i32_0 : i32, i32
  }
  func.func @transform_23(%arg0: i32) -> (i32, i32) {
    %c0_i32 = arith.constant 0 : i32
    %c0_i32_0 = arith.constant 0 : i32
    %c0_i32_1 = arith.constant 0 : i32
    return %c0_i32, %c0_i32_0 : i32, i32
  }
  func.func @transform_24(%arg0: i32) -> (i32, i32) {
    %c0_i32 = arith.constant 0 : i32
    %c0_i32_0 = arith.constant 0 : i32
    %c0_i32_1 = arith.constant 0 : i32
    return %c0_i32, %c0_i32_0 : i32, i32
  }
  func.func @transform_25(%arg0: i32) -> (i32, i32) {
    %c0_i32 = arith.constant 0 : i32
    %c0_i32_0 = arith.constant 0 : i32
    %c0_i32_1 = arith.constant 0 : i32
    return %c0_i32, %c0_i32_0 : i32, i32
  }
  func.func @transform_26(%arg0: i32) -> (i32, i32) {
    %c0_i32 = arith.constant 0 : i32
    %c0_i32_0 = arith.constant 0 : i32
    %c0_i32_1 = arith.constant 0 : i32
    return %c0_i32, %c0_i32_0 : i32, i32
  }
  func.func @transform_27(%arg0: i32) -> (i32, i32) {
    %c0_i32 = arith.constant 0 : i32
    %c0_i32_0 = arith.constant 0 : i32
    %c0_i32_1 = arith.constant 0 : i32
    return %c0_i32, %c0_i32_0 : i32, i32
  }
  func.func @transform_28(%arg0: i32) -> (i32, i32) {
    %c0_i32 = arith.constant 0 : i32
    %c0_i32_0 = arith.constant 0 : i32
    %c0_i32_1 = arith.constant 0 : i32
    return %c0_i32, %c0_i32_0 : i32, i32
  }
  func.func @transform_29(%arg0: i32) -> (i32, i32) {
    %c0_i32 = arith.constant 0 : i32
    %c0_i32_0 = arith.constant 0 : i32
    %c0_i32_1 = arith.constant 0 : i32
    return %c0_i32, %c0_i32_0 : i32, i32
  }
  func.func @transform_30(%arg0: i32) -> (i32, i32) {
    %c0_i32 = arith.constant 0 : i32
    %c0_i32_0 = arith.constant 0 : i32
    %c0_i32_1 = arith.constant 0 : i32
    return %c0_i32, %c0_i32_0 : i32, i32
  }
  func.func @transform_31(%arg0: i32) -> (i32, i32) {
    %c0_i32 = arith.constant 0 : i32
    %c0_i32_0 = arith.constant 0 : i32
    %c0_i32_1 = arith.constant 0 : i32
    return %c0_i32, %c0_i32_0 : i32, i32
  }
  func.func @transform_32(%arg0: i32) -> (i32, i32) {
    %c0_i32 = arith.constant 0 : i32
    %c0_i32_0 = arith.constant 0 : i32
    %c0_i32_1 = arith.constant 0 : i32
    return %c0_i32, %c0_i32_0 : i32, i32
  }
  func.func @transform_33(%arg0: i32) -> (i32, i32) {
    %c0_i32 = arith.constant 0 : i32
    %c0_i32_0 = arith.constant 0 : i32
    %c0_i32_1 = arith.constant 0 : i32
    return %c0_i32, %c0_i32_0 : i32, i32
  }
  func.func @transform_34(%arg0: i32) -> (i32, i32) {
    %c0_i32 = arith.constant 0 : i32
    %c0_i32_0 = arith.constant 0 : i32
    %c0_i32_1 = arith.constant 0 : i32
    return %c0_i32, %c0_i32_0 : i32, i32
  }
  func.func @transform_35(%arg0: i32) -> (i32, i32) {
    %c0_i32 = arith.constant 0 : i32
    %c0_i32_0 = arith.constant 0 : i32
    %c0_i32_1 = arith.constant 0 : i32
    return %c0_i32, %c0_i32_0 : i32, i32
  }
}

</mosaic_0001>

<llo_original>
// kernel: my_resnet_forward.1
$region0: #{my_resnet_forward.1}
  #allocation0 [shape = 'u32[]', space=smem, size = 0x4, offset = 0x4, fixed_abs, tag = 'smem constant byte address 0x4 - core index']
  #allocation1 [shape = 'u32[72,128]{1,0:T(1,128)}', space=vmem, size = 0x9000, scoped, tag = 'internal scratch']
  %s0 = inlined_call_operand.smem [shape: u32[36], index: -1, kind: input, shape index: {}]
  %s1 = sld [smem:[%s0]]
  %s2 = scalar_lea.smem %s0, 1
  %s3 = sld [smem:[%s2]]
  %s4 = scalar_lea.smem %s0, 2
  %s5 = sld [smem:[%s4]]
  %s6 = scalar_lea.smem %s0, 3
  %s7 = sld [smem:[%s6]]
  %s8 = scalar_lea.smem %s0, 4
  %s9 = sld [smem:[%s8]]
  %s10 = scalar_lea.smem %s0, 5
  %s11 = sld [smem:[%s10]]
  %s12 = scalar_lea.smem %s0, 6
  %s13 = sld [smem:[%s12]]
  %s14 = scalar_lea.smem %s0, 7
  %s15 = sld [smem:[%s14]]
  %s16 = scalar_lea.smem %s0, 8
  %s17 = sld [smem:[%s16]]
  %s18 = scalar_lea.smem %s0, 9
  %s19 = sld [smem:[%s18]]
  %s20 = scalar_lea.smem %s0, 10
  %s21 = sld [smem:[%s20]]
  %s22 = scalar_lea.smem %s0, 11
  %s23 = sld [smem:[%s22]]
  %s24 = scalar_lea.smem %s0, 12
  %s25 = sld [smem:[%s24]]
  %s26 = scalar_lea.smem %s0, 13
  %s27 = sld [smem:[%s26]]
  %s28 = scalar_lea.smem %s0, 14
  %s29 = sld [smem:[%s28]]
  %s30 = scalar_lea.smem %s0, 15
  %s31 = sld [smem:[%s30]]
  %s32 = scalar_lea.smem %s0, 16
  %s33 = sld [smem:[%s32]]
  %s34 = scalar_lea.smem %s0, 17
  %s35 = sld [smem:[%s34]]
  %s36 = scalar_lea.smem %s0, 18
  %s37 = sld [smem:[%s36]]
  %s38 = scalar_lea.smem %s0, 19
  %s39 = sld [smem:[%s38]]
  %s40 = scalar_lea.smem %s0, 20
  %s41 = sld [smem:[%s40]]
  %s42 = scalar_lea.smem %s0, 21
  %s43 = sld [smem:[%s42]]
  %s44 = scalar_lea.smem %s0, 22
  %s45 = sld [smem:[%s44]]
  %s46 = scalar_lea.smem %s0, 23
  %s47 = sld [smem:[%s46]]
  %s48 = scalar_lea.smem %s0, 24
  %s49 = sld [smem:[%s48]]
  %s50 = scalar_lea.smem %s0, 25
  %s51 = sld [smem:[%s50]]
  %s52 = scalar_lea.smem %s0, 26
  %s53 = sld [smem:[%s52]]
  %s54 = scalar_lea.smem %s0, 27
  %s55 = sld [smem:[%s54]]
  %s56 = scalar_lea.smem %s0, 28
  %s57 = sld [smem:[%s56]]
  %s58 = scalar_lea.smem %s0, 29
  %s59 = sld [smem:[%s58]]
  %s60 = scalar_lea.smem %s0, 30
  %s61 = sld [smem:[%s60]]
  %s62 = scalar_lea.smem %s0, 31
  %s63 = sld [smem:[%s62]]
  %s64 = scalar_lea.smem %s0, 32
  %s65 = sld [smem:[%s64]]
  %s66 = scalar_lea.smem %s0, 33
  %s67 = sld [smem:[%s66]]
  %s68 = scalar_lea.smem %s0, 34
  %s69 = sld [smem:[%s68]]
  %s70 = scalar_lea.smem %s0, 35
  %s71 = sld [smem:[%s70]]
  %s72 = sld [smem:[#allocation0]]
  $region190: #{my_resnet_forward.1} parent=0
    _
  %s74 = ssub.s32 1, %s72
  %s75 = scalar_select 0, %s74, %s72
  $region1: #{my_resnet_forward.1} parent=0
    #allocation2 [shape = 'u8[5120]{0}', space=vmem, size = 0x1400, scoped, tag = 'input window, operand 3, single buffered']
    #allocation3 [shape = 's32[1]{0}', space=sflag, size = 0x4, scoped, tag = 'scoped memory for my_resnet_forward.1']
    #allocation4 [shape = 'u8[1536]{0}', space=vmem, size = 0x800, scoped, tag = 'input window, operand 4, single buffered']
    #allocation5 [shape = 's32[1]{0}', space=sflag, size = 0x4, scoped, tag = 'scoped memory for my_resnet_forward.1']
    #allocation6 [shape = 'u8[512]{0}', space=vmem, size = 0x400, scoped, tag = 'input window, operand 5, single buffered']
    #allocation7 [shape = 'u8[512]{0}', space=vmem, size = 0x400, scoped, tag = 'input window, operand 6, single buffered']
    #allocation8 [shape = 's32[1]{0}', space=sflag, size = 0x4, scoped, tag = 'scoped memory for my_resnet_forward.1']
    #allocation9 [shape = 'u8[512]{0}', space=vmem, size = 0x400, scoped, tag = 'input window, operand 7, single buffered']
    #allocation10 [shape = 'u8[1966080]{0}', space=vmem, size = 0x1e0000, scoped, tag = 'input window, operand 8, single buffered']
    #allocation11 [shape = 's32[1]{0}', space=sflag, size = 0x4, scoped, tag = 'scoped memory for my_resnet_forward.1']
    #allocation12 [shape = 'u8[196608]{0}', space=vmem, size = 0x30000, scoped, tag = 'input window, operand 9, single buffered']
    #allocation13 [shape = 'u8[65536]{0}', space=vmem, size = 0x10000, scoped, tag = 'input window, operand 10, single buffered']
    #allocation14 [shape = 's32[1]{0}', space=sflag, size = 0x4, scoped, tag = 'scoped memory for my_resnet_forward.1']
    #allocation15 [shape = 'u8[65536]{0}', space=vmem, size = 0x10000, scoped, tag = 'input window, operand 11, single buffered']
    #allocation16 [shape = 'u8[131072]{0}', space=vmem, size = 0x20000, scoped, tag = 'input window, operand 12, single buffered']
    #allocation17 [shape = 's32[1]{0}', space=sflag, size = 0x4, scoped, tag = 'scoped memory for my_resnet_forward.1']
    %76 = vsyncpa [#allocation3], 0
    %77 = vsyncpa [#allocation5], 0
    %78 = vsyncpa [#allocation8], 0
    %79 = vsyncpa [#allocation11], 0
    %80 = vsyncpa [#allocation14], 0
    %81 = vsyncpa [#allocation17], 0
    // Predicated region
    $region2: #{my_resnet_forward.1} parent=1 // pred_check
      _
    $region3: #{my_resnet_forward.1} parent=1 // pred_check_branch
      %83 = sbr.rel (0) target = $region5
    $region4: #{my_resnet_forward.1} parent=1 // pred_region
      _
    $region5: #{my_resnet_forward.1} parent=1 // pred_fallthru
      _
    // Predicated region
    $region6: #{my_resnet_forward.1} parent=1 // pred_check
      _
    $region7: #{my_resnet_forward.1} parent=1 // pred_check_branch
      %85 = sbr.rel (0) target = $region9
    $region8: #{my_resnet_forward.1} parent=1 // pred_region
      _
    $region9: #{my_resnet_forward.1} parent=1 // pred_fallthru
      _
    // Predicated region
    $region10: #{my_resnet_forward.1} parent=1 // pred_check
      _
    $region11: #{my_resnet_forward.1} parent=1 // pred_check_branch
      %87 = sbr.rel (0) target = $region13
    $region12: #{my_resnet_forward.1} parent=1 // pred_region
      _
    $region13: #{my_resnet_forward.1} parent=1 // pred_fallthru
      _
    // Predicated region
    $region14: #{my_resnet_forward.1} parent=1 // pred_check
      _
    $region15: #{my_resnet_forward.1} parent=1 // pred_check_branch
      %89 = sbr.rel (0) target = $region17
    $region16: #{my_resnet_forward.1} parent=1 // pred_region
      %91 = vsyncadd [#allocation3], 0
      %s93 = sshll.u32 %s7, 4
      %s94 = int_to_ptr.hbm [resolvable:$true] %s93
      %s95 = sshll.u32 [#allocation2], 4
      %s96 = int_to_ptr.vmem [resolvable:$true] %s95
      %98 = dma.hbm_to_vmem [thread:$0]  %s94, 160, %s96, [#allocation3]
    $region17: #{my_resnet_forward.1} parent=1 // pred_fallthru
      _
    // Predicated region
    $region18: #{my_resnet_forward.1} parent=1 // pred_check
      _
    $region19: #{my_resnet_forward.1} parent=1 // pred_check_branch
      %100 = sbr.rel (0) target = $region21
    $region20: #{my_resnet_forward.1} parent=1 // pred_region
      %102 = vsyncadd [#allocation5], 0
      %s104 = sshll.u32 %s9, 4
      %s105 = int_to_ptr.hbm [resolvable:$true] %s104
      %s106 = sshll.u32 [#allocation4], 4
      %s107 = int_to_ptr.vmem [resolvable:$true] %s106
      %109 = dma.hbm_to_vmem [thread:$0]  %s105, 48, %s107, [#allocation5]
    $region21: #{my_resnet_forward.1} parent=1 // pred_fallthru
      _
    // Predicated region
    $region22: #{my_resnet_forward.1} parent=1 // pred_check
      _
    $region23: #{my_resnet_forward.1} parent=1 // pred_check_branch
      %111 = sbr.rel (0) target = $region25
    $region24: #{my_resnet_forward.1} parent=1 // pred_region
      %113 = vsyncadd [#allocation5], 0
      %s115 = sshll.u32 %s11, 4
      %s116 = int_to_ptr.hbm [resolvable:$true] %s115
      %s117 = sshll.u32 [#allocation6], 4
      %s118 = int_to_ptr.vmem [resolvable:$true] %s117
      %120 = dma.hbm_to_vmem [thread:$0]  %s116, 16, %s118, [#allocation5]
    $region25: #{my_resnet_forward.1} parent=1 // pred_fallthru
      _
    // Predicated region
    $region26: #{my_resnet_forward.1} parent=1 // pred_check
      _
    $region27: #{my_resnet_forward.1} parent=1 // pred_check_branch
      %122 = sbr.rel (0) target = $region29
    $region28: #{my_resnet_forward.1} parent=1 // pred_region
      %124 = vsyncadd [#allocation8], 0
      %s126 = sshll.u32 %s13, 4
      %s127 = int_to_ptr.hbm [resolvable:$true] %s126
      %s128 = sshll.u32 [#allocation7], 4
      %s129 = int_to_ptr.vmem [resolvable:$true] %s128
      %131 = dma.hbm_to_vmem [thread:$0]  %s127, 16, %s129, [#allocation8]
    $region29: #{my_resnet_forward.1} parent=1 // pred_fallthru
      _
    // Predicated region
    $region30: #{my_resnet_forward.1} parent=1 // pred_check
      _
    $region31: #{my_resnet_forward.1} parent=1 // pred_check_branch
      %133 = sbr.rel (0) target = $region33
    $region32: #{my_resnet_forward.1} parent=1 // pred_region
      %135 = vsyncadd [#allocation8], 0
      %s137 = sshll.u32 %s15, 4
      %s138 = int_to_ptr.hbm [resolvable:$true] %s137
      %s139 = sshll.u32 [#allocation9], 4
      %s140 = int_to_ptr.vmem [resolvable:$true] %s139
      %142 = dma.hbm_to_vmem [thread:$0]  %s138, 16, %s140, [#allocation8]
    $region33: #{my_resnet_forward.1} parent=1 // pred_fallthru
      _
    // Predicated region
    $region34: #{my_resnet_forward.1} parent=1 // pred_check
      _
    $region35: #{my_resnet_forward.1} parent=1 // pred_check_branch
      %144 = sbr.rel (0) target = $region37
    $region36: #{my_resnet_forward.1} parent=1 // pred_region
      %146 = vsyncadd [#allocation11], 0
      %s147 = sshll.u32 %s17, 4
      %s148 = int_to_ptr.hbm [resolvable:$true] %s147
      %s149 = sshll.u32 [#allocation10], 4
      %s150 = int_to_ptr.vmem [resolvable:$true] %s149
      %155 = dma.hbm_to_vmem [thread:$0]  %s148, 61440, %s150, [#allocation11], 384, 384, 24
    $region37: #{my_resnet_forward.1} parent=1 // pred_fallthru
      _
    // Predicated region
    $region38: #{my_resnet_forward.1} parent=1 // pred_check
      _
    $region39: #{my_resnet_forward.1} parent=1 // pred_check_branch
      %157 = sbr.rel (0) target = $region41
    $region40: #{my_resnet_forward.1} parent=1 // pred_region
      %159 = vsyncadd [#allocation11], 0
      %s160 = sshll.u32 %s19, 4
      %s161 = int_to_ptr.hbm [resolvable:$true] %s160
      %s162 = sshll.u32 [#allocation12], 4
      %s163 = int_to_ptr.vmem [resolvable:$true] %s162
      %168 = dma.hbm_to_vmem [thread:$0]  %s161, 6144, %s163, [#allocation11], 128, 128, 8
    $region41: #{my_resnet_forward.1} parent=1 // pred_fallthru
      _
    // Predicated region
    $region42: #{my_resnet_forward.1} parent=1 // pred_check
      _
    $region43: #{my_resnet_forward.1} parent=1 // pred_check_branch
      %170 = sbr.rel (0) target = $region45
    $region44: #{my_resnet_forward.1} parent=1 // pred_region
      %172 = vsyncadd [#allocation14], 0
      %s173 = sshll.u32 %s21, 4
      %s174 = int_to_ptr.hbm [resolvable:$true] %s173
      %s175 = sshll.u32 [#allocation13], 4
      %s176 = int_to_ptr.vmem [resolvable:$true] %s175
      %181 = dma.hbm_to_vmem [thread:$0]  %s174, 2048, %s176, [#allocation14], 128, 128, 8
    $region45: #{my_resnet_forward.1} parent=1 // pred_fallthru
      _
    // Predicated region
    $region46: #{my_resnet_forward.1} parent=1 // pred_check
      _
    $region47: #{my_resnet_forward.1} parent=1 // pred_check_branch
      %183 = sbr.rel (0) target = $region49
    $region48: #{my_resnet_forward.1} parent=1 // pred_region
      %185 = vsyncadd [#allocation14], 0
      %s186 = sshll.u32 %s23, 4
      %s187 = int_to_ptr.hbm [resolvable:$true] %s186
      %s188 = sshll.u32 [#allocation15], 4
      %s189 = int_to_ptr.vmem [resolvable:$true] %s188
      %194 = dma.hbm_to_vmem [thread:$0]  %s187, 2048, %s189, [#allocation14], 128, 128, 8
    $region49: #{my_resnet_forward.1} parent=1 // pred_fallthru
      _
    // Predicated region
    $region50: #{my_resnet_forward.1} parent=1 // pred_check
      _
    $region51: #{my_resnet_forward.1} parent=1 // pred_check_branch
      %196 = sbr.rel (0) target = $region53
    $region52: #{my_resnet_forward.1} parent=1 // pred_region
      %198 = vsyncadd [#allocation17], 0
      %s199 = sshll.u32 %s25, 4
      %s200 = int_to_ptr.hbm [resolvable:$true] %s199
      %s201 = sshll.u32 [#allocation16], 4
      %s202 = int_to_ptr.vmem [resolvable:$true] %s201
      %207 = dma.hbm_to_vmem [thread:$0]  %s200, 4096, %s202, [#allocation17], 256, 256, 16
    $region53: #{my_resnet_forward.1} parent=1 // pred_fallthru
      _
    // Predicated region
    $region54: #{my_resnet_forward.1} parent=1 // pred_check
      _
    $region55: #{my_resnet_forward.1} parent=1 // pred_check_branch
      %209 = sbr.rel (0) target = $region57
    $region56: #{my_resnet_forward.1} parent=1 // pred_region
      _
    $region57: #{my_resnet_forward.1} parent=1 // pred_fallthru
      _
    // Predicated region
    $region58: #{my_resnet_forward.1} parent=1 // pred_check
      _
    $region59: #{my_resnet_forward.1} parent=1 // pred_check_branch
      %211 = sbr.rel (0) target = $region61
    $region60: #{my_resnet_forward.1} parent=1 // pred_region
      _
    $region61: #{my_resnet_forward.1} parent=1 // pred_fallthru
      _
    // Predicated region
    $region62: #{my_resnet_forward.1} parent=1 // pred_check
      _
    $region63: #{my_resnet_forward.1} parent=1 // pred_check_branch
      %213 = sbr.rel (0) target = $region65
    $region64: #{my_resnet_forward.1} parent=1 // pred_region
      _
    $region65: #{my_resnet_forward.1} parent=1 // pred_fallthru
      _
    // Predicated region
    $region66: #{my_resnet_forward.1} parent=1 // pred_check
      _
    $region67: #{my_resnet_forward.1} parent=1 // pred_check_branch
      %215 = sbr.rel (0) target = $region69
    $region68: #{my_resnet_forward.1} parent=1 // pred_region
      _
    $region69: #{my_resnet_forward.1} parent=1 // pred_fallthru
      _
    // Predicated region
    $region70: #{my_resnet_forward.1} parent=1 // pred_check
      _
    $region71: #{my_resnet_forward.1} parent=1 // pred_check_branch
      %217 = sbr.rel (0) target = $region73
    $region72: #{my_resnet_forward.1} parent=1 // pred_region
      _
    $region73: #{my_resnet_forward.1} parent=1 // pred_fallthru
      _
    // Predicated region
    $region74: #{my_resnet_forward.1} parent=1 // pred_check
      _
    $region75: #{my_resnet_forward.1} parent=1 // pred_check_branch
      %219 = sbr.rel (0) target = $region77
    $region76: #{my_resnet_forward.1} parent=1 // pred_region
      _
    $region77: #{my_resnet_forward.1} parent=1 // pred_fallthru
      _
    // Predicated region
    $region78: #{my_resnet_forward.1} parent=1 // pred_check
      _
    $region79: #{my_resnet_forward.1} parent=1 // pred_check_branch
      %221 = sbr.rel (0) target = $region81
    $region80: #{my_resnet_forward.1} parent=1 // pred_region
      _
    $region81: #{my_resnet_forward.1} parent=1 // pred_fallthru
      _
    // Predicated region
    $region82: #{my_resnet_forward.1} parent=1 // pred_check
      _
    $region83: #{my_resnet_forward.1} parent=1 // pred_check_branch
      %223 = sbr.rel (0) target = $region85
    $region84: #{my_resnet_forward.1} parent=1 // pred_region
      _
    $region85: #{my_resnet_forward.1} parent=1 // pred_fallthru
      _
    // Predicated region
    $region86: #{my_resnet_forward.1} parent=1 // pred_check
      _
    $region87: #{my_resnet_forward.1} parent=1 // pred_check_branch
      %225 = sbr.rel (0) target = $region89
    $region88: #{my_resnet_forward.1} parent=1 // pred_region
      _
    $region89: #{my_resnet_forward.1} parent=1 // pred_fallthru
      _
    // Predicated region
    $region90: #{my_resnet_forward.1} parent=1 // pred_check
      _
    $region91: #{my_resnet_forward.1} parent=1 // pred_check_branch
      %227 = sbr.rel (0) target = $region93
    $region92: #{my_resnet_forward.1} parent=1 // pred_region
      _
    $region93: #{my_resnet_forward.1} parent=1 // pred_fallthru
      _
    // Predicated region
    $region94: #{my_resnet_forward.1} parent=1 // pred_check
      _
    $region95: #{my_resnet_forward.1} parent=1 // pred_check_branch
      %229 = sbr.rel (0) target = $region97
    $region96: #{my_resnet_forward.1} parent=1 // pred_region
      _
    $region97: #{my_resnet_forward.1} parent=1 // pred_fallthru
      _
    // Predicated region
    $region98: #{my_resnet_forward.1} parent=1 // pred_check
      _
    $region99: #{my_resnet_forward.1} parent=1 // pred_check_branch
      %231 = sbr.rel (0) target = $region101
    $region100: #{my_resnet_forward.1} parent=1 // pred_region
      _
    $region101: #{my_resnet_forward.1} parent=1 // pred_fallthru
      _
    // Predicated region
    $region102: #{my_resnet_forward.1} parent=1 // pred_check
      _
    $region103: #{my_resnet_forward.1} parent=1 // pred_check_branch
      %233 = sbr.rel (0) target = $region105
    $region104: #{my_resnet_forward.1} parent=1 // pred_region
      _
    $region105: #{my_resnet_forward.1} parent=1 // pred_fallthru
      _
    // Predicated region
    $region106: #{my_resnet_forward.1} parent=1 // pred_check
      _
    $region107: #{my_resnet_forward.1} parent=1 // pred_check_branch
      %235 = sbr.rel (0) target = $region109
    $region108: #{my_resnet_forward.1} parent=1 // pred_region
      _
    $region109: #{my_resnet_forward.1} parent=1 // pred_fallthru
      _
    // Predicated region
    $region110: #{my_resnet_forward.1} parent=1 // pred_check
      _
    $region111: #{my_resnet_forward.1} parent=1 // pred_check_branch
      %237 = sbr.rel (0) target = $region113
    $region112: #{my_resnet_forward.1} parent=1 // pred_region
      _
    $region113: #{my_resnet_forward.1} parent=1 // pred_fallthru
      _
    // Predicated region
    $region114: #{my_resnet_forward.1} parent=1 // pred_check
      _
    $region115: #{my_resnet_forward.1} parent=1 // pred_check_branch
      %239 = sbr.rel (0) target = $region117
    $region116: #{my_resnet_forward.1} parent=1 // pred_region
      _
    $region117: #{my_resnet_forward.1} parent=1 // pred_fallthru
      _
    // Predicated region
    $region118: #{my_resnet_forward.1} parent=1 // pred_check
      _
    $region119: #{my_resnet_forward.1} parent=1 // pred_check_branch
      %241 = sbr.rel (0) target = $region121
    $region120: #{my_resnet_forward.1} parent=1 // pred_region
      _
    $region121: #{my_resnet_forward.1} parent=1 // pred_fallthru
      _
    // Predicated region
    $region122: #{my_resnet_forward.1} parent=1 // pred_check
      _
    $region123: #{my_resnet_forward.1} parent=1 // pred_check_branch
      %243 = sbr.rel (0) target = $region125
    $region124: #{my_resnet_forward.1} parent=1 // pred_region
      _
    $region125: #{my_resnet_forward.1} parent=1 // pred_fallthru
      _
    // Predicated region
    $region126: #{my_resnet_forward.1} parent=1 // pred_check
      _
    $region127: #{my_resnet_forward.1} parent=1 // pred_check_branch
      %245 = sbr.rel (0) target = $region129
    $region128: #{my_resnet_forward.1} parent=1 // pred_region
      _
    $region129: #{my_resnet_forward.1} parent=1 // pred_fallthru
      _
    // Predicated region
    $region130: #{my_resnet_forward.1} parent=1 // pred_check
      _
    $region131: #{my_resnet_forward.1} parent=1 // pred_check_branch
      %247 = sbr.rel (0) target = $region133
    $region132: #{my_resnet_forward.1} parent=1 // pred_region
      _
    $region133: #{my_resnet_forward.1} parent=1 // pred_fallthru
      _
    // Predicated region
    $region134: #{my_resnet_forward.1} parent=1 // pred_check
      _
    $region135: #{my_resnet_forward.1} parent=1 // pred_check_branch
      %249 = sbr.rel (0) target = $region137
    $region136: #{my_resnet_forward.1} parent=1 // pred_region
      _
    $region137: #{my_resnet_forward.1} parent=1 // pred_fallthru
      _
    // Predicated region
    $region138: #{my_resnet_forward.1} parent=1 // pred_check
      _
    $region139: #{my_resnet_forward.1} parent=1 // pred_check_branch
      %251 = sbr.rel (0) target = $region141
    $region140: #{my_resnet_forward.1} parent=1 // pred_region
      _
    $region141: #{my_resnet_forward.1} parent=1 // pred_fallthru
      _
    // Predicated region
    $region142: #{my_resnet_forward.1} parent=1 // pred_check
      _
    $region143: #{my_resnet_forward.1} parent=1 // pred_check_branch
      %253 = sbr.rel (0) target = $region145
    $region144: #{my_resnet_forward.1} parent=1 // pred_region
      %255 = dma.done [#allocation3], 160
    $region145: #{my_resnet_forward.1} parent=1 // pred_fallthru
      _
    // Predicated region
    $region146: #{my_resnet_forward.1} parent=1 // pred_check
      _
    $region147: #{my_resnet_forward.1} parent=1 // pred_check_branch
      %257 = sbr.rel (0) target = $region149
    $region148: #{my_resnet_forward.1} parent=1 // pred_region
      %259 = dma.done [#allocation5], 48
    $region149: #{my_resnet_forward.1} parent=1 // pred_fallthru
      _
    // Predicated region
    $region150: #{my_resnet_forward.1} parent=1 // pred_check
      _
    $region151: #{my_resnet_forward.1} parent=1 // pred_check_branch
      %261 = sbr.rel (0) target = $region153
    $region152: #{my_resnet_forward.1} parent=1 // pred_region
      %263 = dma.done [#allocation5], 16
    $region153: #{my_resnet_forward.1} parent=1 // pred_fallthru
      _
    // Predicated region
    $region154: #{my_resnet_forward.1} parent=1 // pred_check
      _
    $region155: #{my_resnet_forward.1} parent=1 // pred_check_branch
      %265 = sbr.rel (0) target = $region157
    $region156: #{my_resnet_forward.1} parent=1 // pred_region
      %267 = dma.done [#allocation8], 16
    $region157: #{my_resnet_forward.1} parent=1 // pred_fallthru
      _
    // Predicated region
    $region158: #{my_resnet_forward.1} parent=1 // pred_check
      _
    $region159: #{my_resnet_forward.1} parent=1 // pred_check_branch
      %269 = sbr.rel (0) target = $region161
    $region160: #{my_resnet_forward.1} parent=1 // pred_region
      %271 = dma.done [#allocation8], 16
    $region161: #{my_resnet_forward.1} parent=1 // pred_fallthru
      _
    // Predicated region
    $region162: #{my_resnet_forward.1} parent=1 // pred_check
      _
    $region163: #{my_resnet_forward.1} parent=1 // pred_check_branch
      %273 = sbr.rel (0) target = $region165
    $region164: #{my_resnet_forward.1} parent=1 // pred_region
      %275 = dma.done [#allocation11], 61440
    $region165: #{my_resnet_forward.1} parent=1 // pred_fallthru
      _
    // Predicated region
    $region166: #{my_resnet_forward.1} parent=1 // pred_check
      _
    $region167: #{my_resnet_forward.1} parent=1 // pred_check_branch
      %277 = sbr.rel (0) target = $region169
    $region168: #{my_resnet_forward.1} parent=1 // pred_region
      %279 = dma.done [#allocation11], 6144
    $region169: #{my_resnet_forward.1} parent=1 // pred_fallthru
      _
    // Predicated region
    $region170: #{my_resnet_forward.1} parent=1 // pred_check
      _
    $region171: #{my_resnet_forward.1} parent=1 // pred_check_branch
      %281 = sbr.rel (0) target = $region173
    $region172: #{my_resnet_forward.1} parent=1 // pred_region
      %283 = dma.done [#allocation14], 2048
    $region173: #{my_resnet_forward.1} parent=1 // pred_fallthru
      _
    // Predicated region
    $region174: #{my_resnet_forward.1} parent=1 // pred_check
      _
    $region175: #{my_resnet_forward.1} parent=1 // pred_check_branch
      %285 = sbr.rel (0) target = $region177
    $region176: #{my_resnet_forward.1} parent=1 // pred_region
      %287 = dma.done [#allocation14], 2048
    $region177: #{my_resnet_forward.1} parent=1 // pred_fallthru
      _
    // Predicated region
    $region178: #{my_resnet_forward.1} parent=1 // pred_check
      _
    $region179: #{my_resnet_forward.1} parent=1 // pred_check_branch
      %289 = sbr.rel (0) target = $region181
    $region180: #{my_resnet_forward.1} parent=1 // pred_region
      %291 = dma.done [#allocation17], 4096
    $region181: #{my_resnet_forward.1} parent=1 // pred_fallthru
      _
    %v292 = vld [vmem:[%s3] sm:$0xff]
    %v293 = vld [vmem:[%s3 + $0x8] sm:$0xff]
    %v294 = vld [vmem:[%s1] sm:$0xff]
    %v295 = vld [vmem:[%s1 + $0x8] sm:$0xff]
    %v296 = vld [vmem:[%s1 + $0x10] sm:$0xff]
    %v297 = vld [vmem:[%s1 + $0x18] sm:$0xff]
    %v298 = vld [vmem:[%s1 + $0x20] sm:$0xff]
    %v299 = vld [vmem:[%s1 + $0x28] sm:$0xff]
    %v300 = vld [vmem:[%s1 + $0x30] sm:$0xff]
    %v301 = vld [vmem:[%s1 + $0x38] sm:$0xff]
    %v302 = vld [vmem:[%s1 + $0x40] sm:$0xff]
    %v303 = vld [vmem:[%s1 + $0x48] sm:$0xff]
    %v304 = vld [vmem:[%s1 + $0x50] sm:$0xff]
    %v305 = vld [vmem:[%s1 + $0x58] sm:$0xff]
    %v306 = vld [vmem:[%s1 + $0x60] sm:$0xff]
    %v307 = vld [vmem:[%s1 + $0x68] sm:$0xff]
    %v308 = vld [vmem:[%s1 + $0x70] sm:$0xff]
    %v309 = vld [vmem:[%s1 + $0x78] sm:$0xff]
    %v310 = vld [vmem:[%s1 + $0x80] sm:$0xff]
    %v311 = vld [vmem:[%s1 + $0x88] sm:$0xff]
    %v312 = vld [vmem:[%s1 + $0x90] sm:$0xff]
    %v313 = vld [vmem:[%s1 + $0x98] sm:$0xff]
    %v314 = vld [vmem:[%s1 + $0xa0] sm:$0xff]
    %v315 = vld [vmem:[%s1 + $0xa8] sm:$0xff]
    %v316 = vld [vmem:[%s1 + $0xb0] sm:$0xff]
    %v317 = vld [vmem:[%s1 + $0xb8] sm:$0xff]
    %v318 = vld [vmem:[%s1 + $0xc0] sm:$0xff]
    %v319 = vld [vmem:[%s1 + $0xc8] sm:$0xff]
    %v320 = vld [vmem:[%s1 + $0xd0] sm:$0xff]
    %v321 = vld [vmem:[%s1 + $0xd8] sm:$0xff]
    %v322 = vld [vmem:[%s1 + $0xe0] sm:$0xff]
    %v323 = vld [vmem:[%s1 + $0xe8] sm:$0xff]
    %v324 = vld [vmem:[%s1 + $0xf0] sm:$0xff]
    %v325 = vld [vmem:[%s1 + $0xf8] sm:$0xff]
    %v326 = vld [vmem:[%s1 + $0x100] sm:$0xff]
    %v327 = vld [vmem:[%s1 + $0x108] sm:$0xff]
    %v328 = vld [vmem:[%s1 + $0x110] sm:$0xff]
    %v329 = vld [vmem:[%s1 + $0x118] sm:$0xff]
    %v330 = vld [vmem:[%s1 + $0x120] sm:$0xff]
    %v331 = vld [vmem:[%s1 + $0x128] sm:$0xff]
    %v332 = vld [vmem:[%s1 + $0x130] sm:$0xff]
    %v333 = vld [vmem:[%s1 + $0x138] sm:$0xff]
    %v334 = vld [vmem:[%s1 + $0x140] sm:$0xff]
    %v335 = vld [vmem:[%s1 + $0x148] sm:$0xff]
    %v336 = vld [vmem:[%s1 + $0x150] sm:$0xff]
    %v337 = vld [vmem:[%s1 + $0x158] sm:$0xff]
    %v338 = vld [vmem:[%s1 + $0x160] sm:$0xff]
    %v339 = vld [vmem:[%s1 + $0x168] sm:$0xff]
    %v340 = vld [vmem:[%s1 + $0x170] sm:$0xff]
    %v341 = vld [vmem:[%s1 + $0x178] sm:$0xff]
    %v342 = vld [vmem:[%s1 + $0x180] sm:$0xff]
    %v343 = vld [vmem:[%s1 + $0x188] sm:$0xff]
    %v344 = vld [vmem:[%s1 + $0x190] sm:$0xff]
    %v345 = vld [vmem:[%s1 + $0x198] sm:$0xff]
    %v346 = vld [vmem:[%s1 + $0x1a0] sm:$0xff]
    %v347 = vld [vmem:[%s1 + $0x1a8] sm:$0xff]
    %v348 = vld [vmem:[%s1 + $0x1b0] sm:$0xff]
    %v349 = vld [vmem:[%s1 + $0x1b8] sm:$0xff]
    %v350 = vld [vmem:[%s1 + $0x1c0] sm:$0xff]
    %v351 = vld [vmem:[%s1 + $0x1c8] sm:$0xff]
    %v352 = vld [vmem:[%s1 + $0x1d0] sm:$0xff]
    %v353 = vld [vmem:[%s1 + $0x1d8] sm:$0xff]
    %v354 = vld [vmem:[%s1 + $0x1e0] sm:$0xff]
    %v355 = vld [vmem:[%s1 + $0x1e8] sm:$0xff]
    %v356 = vld [vmem:[%s1 + $0x1f0] sm:$0xff]
    %v357 = vld [vmem:[%s1 + $0x1f8] sm:$0xff]
    %v358 = vld [vmem:[%s1 + $0x200] sm:$0xff]
    %v359 = vld [vmem:[%s1 + $0x208] sm:$0xff]
    %v360 = vld [vmem:[%s1 + $0x210] sm:$0xff]
    %v361 = vld [vmem:[%s1 + $0x218] sm:$0xff]
    %v362 = vld [vmem:[%s1 + $0x220] sm:$0xff]
    %v363 = vld [vmem:[%s1 + $0x228] sm:$0xff]
    %v364 = vld [vmem:[%s1 + $0x230] sm:$0xff]
    %v365 = vld [vmem:[%s1 + $0x238] sm:$0xff]
    %v366 = vld [vmem:[%s1 + $0x240] sm:$0xff]
    %v367 = vld [vmem:[%s1 + $0x248] sm:$0xff]
    %v368 = vld [vmem:[%s1 + $0x250] sm:$0xff]
    %v369 = vld [vmem:[%s1 + $0x258] sm:$0xff]
    %v370 = vld [vmem:[%s1 + $0x260] sm:$0xff]
    %v371 = vld [vmem:[%s1 + $0x268] sm:$0xff]
    %v372 = vld [vmem:[%s1 + $0x270] sm:$0xff]
    %v373 = vld [vmem:[%s1 + $0x278] sm:$0xff]
    %v374 = vld [vmem:[%s1 + $0x280] sm:$0xff]
    %v375 = vld [vmem:[%s1 + $0x288] sm:$0xff]
    %v376 = vld [vmem:[%s1 + $0x290] sm:$0xff]
    %v377 = vld [vmem:[%s1 + $0x298] sm:$0xff]
    %v378 = vld [vmem:[%s1 + $0x2a0] sm:$0xff]
    %v379 = vld [vmem:[%s1 + $0x2a8] sm:$0xff]
    %v380 = vld [vmem:[%s1 + $0x2b0] sm:$0xff]
    %v381 = vld [vmem:[%s1 + $0x2b8] sm:$0xff]
    %v382 = vld [vmem:[%s1 + $0x2c0] sm:$0xff]
    %v383 = vld [vmem:[%s1 + $0x2c8] sm:$0xff]
    %v384 = vld [vmem:[%s1 + $0x2d0] sm:$0xff]
    %v385 = vld [vmem:[%s1 + $0x2d8] sm:$0xff]
    %v386 = vld [vmem:[%s1 + $0x2e0] sm:$0xff]
    %v387 = vld [vmem:[%s1 + $0x2e8] sm:$0xff]
    %v388 = vld [vmem:[%s1 + $0x2f0] sm:$0xff]
    %v389 = vld [vmem:[%s1 + $0x2f8] sm:$0xff]
    %v390 = vld [vmem:[%s1 + $0x300] sm:$0xff]
    %v391 = vld [vmem:[%s1 + $0x308] sm:$0xff]
    %v392 = vld [vmem:[%s1 + $0x310] sm:$0xff]
    %v393 = vld [vmem:[%s1 + $0x318] sm:$0xff]
    %v394 = vld [vmem:[%s1 + $0x320] sm:$0xff]
    %v395 = vld [vmem:[%s1 + $0x328] sm:$0xff]
    %v396 = vld [vmem:[%s1 + $0x330] sm:$0xff]
    %v397 = vld [vmem:[%s1 + $0x338] sm:$0xff]
    %v398 = vld [vmem:[%s1 + $0x340] sm:$0xff]
    %v399 = vld [vmem:[%s1 + $0x348] sm:$0xff]
    %v400 = vld [vmem:[%s1 + $0x350] sm:$0xff]
    %v401 = vld [vmem:[%s1 + $0x358] sm:$0xff]
    %v402 = vld [vmem:[%s1 + $0x360] sm:$0xff]
    %v403 = vld [vmem:[%s1 + $0x368] sm:$0xff]
    %v404 = vld [vmem:[%s1 + $0x370] sm:$0xff]
    %v405 = vld [vmem:[%s1 + $0x378] sm:$0xff]
    %v406 = vld [vmem:[%s1 + $0x380] sm:$0xff]
    %v407 = vld [vmem:[%s1 + $0x388] sm:$0xff]
    %v408 = vld [vmem:[%s1 + $0x390] sm:$0xff]
    %v409 = vld [vmem:[%s1 + $0x398] sm:$0xff]
    %v410 = vld [vmem:[%s1 + $0x3a0] sm:$0xff]
    %v411 = vld [vmem:[%s1 + $0x3a8] sm:$0xff]
    %v412 = vld [vmem:[%s1 + $0x3b0] sm:$0xff]
    %v413 = vld [vmem:[%s1 + $0x3b8] sm:$0xff]
    %v414 = vld [vmem:[%s1 + $0x3c0] sm:$0xff]
    %v415 = vld [vmem:[%s1 + $0x3c8] sm:$0xff]
    %v416 = vld [vmem:[%s1 + $0x3d0] sm:$0xff]
    %v417 = vld [vmem:[%s1 + $0x3d8] sm:$0xff]
    %v418 = vld [vmem:[%s1 + $0x3e0] sm:$0xff]
    %v419 = vld [vmem:[%s1 + $0x3e8] sm:$0xff]
    %v420 = vld [vmem:[%s1 + $0x3f0] sm:$0xff]
    %v421 = vld [vmem:[%s1 + $0x3f8] sm:$0xff]
    %v422 = vld [vmem:[%s1 + $0x400] sm:$0xff]
    %v423 = vld [vmem:[%s1 + $0x408] sm:$0xff]
    %v424 = vld [vmem:[%s1 + $0x410] sm:$0xff]
    %v425 = vld [vmem:[%s1 + $0x418] sm:$0xff]
    %v426 = vld [vmem:[%s1 + $0x420] sm:$0xff]
    %v427 = vld [vmem:[%s1 + $0x428] sm:$0xff]
    %v428 = vld [vmem:[%s1 + $0x430] sm:$0xff]
    %v429 = vld [vmem:[%s1 + $0x438] sm:$0xff]
    %v430 = vld [vmem:[%s1 + $0x440] sm:$0xff]
    %v431 = vld [vmem:[%s1 + $0x448] sm:$0xff]
    %v432 = vld [vmem:[%s1 + $0x450] sm:$0xff]
    %v433 = vld [vmem:[%s1 + $0x458] sm:$0xff]
    %v434 = vld [vmem:[%s1 + $0x460] sm:$0xff]
    %v435 = vld [vmem:[%s1 + $0x468] sm:$0xff]
    %v436 = vld [vmem:[%s1 + $0x470] sm:$0xff]
    %v437 = vld [vmem:[%s1 + $0x478] sm:$0xff]
    %v438 = vld [vmem:[%s1 + $0x480] sm:$0xff]
    %v439 = vld [vmem:[%s1 + $0x488] sm:$0xff]
    %v440 = vld [vmem:[%s1 + $0x490] sm:$0xff]
    %v441 = vld [vmem:[%s1 + $0x498] sm:$0xff]
    %v442 = vld [vmem:[%s1 + $0x4a0] sm:$0xff]
    %v443 = vld [vmem:[%s1 + $0x4a8] sm:$0xff]
    %v444 = vld [vmem:[%s1 + $0x4b0] sm:$0xff]
    %v445 = vld [vmem:[%s1 + $0x4b8] sm:$0xff]
    %v446 = vld [vmem:[%s1 + $0x4c0] sm:$0xff]
    %v447 = vld [vmem:[%s1 + $0x4c8] sm:$0xff]
    %v448 = vld [vmem:[%s1 + $0x4d0] sm:$0xff]
    %v449 = vld [vmem:[%s1 + $0x4d8] sm:$0xff]
    %v450 = vld [vmem:[%s1 + $0x4e0] sm:$0xff]
    %v451 = vld [vmem:[%s1 + $0x4e8] sm:$0xff]
    %v452 = vld [vmem:[%s1 + $0x4f0] sm:$0xff]
    %v453 = vld [vmem:[%s1 + $0x4f8] sm:$0xff]
    %v454 = vld [vmem:[%s1 + $0x500] sm:$0xff]
    %v455 = vld [vmem:[%s1 + $0x508] sm:$0xff]
    %v456 = vld [vmem:[%s1 + $0x510] sm:$0xff]
    %v457 = vld [vmem:[%s1 + $0x518] sm:$0xff]
    %v458 = vld [vmem:[%s1 + $0x520] sm:$0xff]
    %v459 = vld [vmem:[%s1 + $0x528] sm:$0xff]
    %v460 = vld [vmem:[%s1 + $0x530] sm:$0xff]
    %v461 = vld [vmem:[%s1 + $0x538] sm:$0xff]
    %v462 = vld [vmem:[%s1 + $0x540] sm:$0xff]
    %v463 = vld [vmem:[%s1 + $0x548] sm:$0xff]
    %v464 = vld [vmem:[%s1 + $0x550] sm:$0xff]
    %v465 = vld [vmem:[%s1 + $0x558] sm:$0xff]
    %v466 = vld [vmem:[%s1 + $0x560] sm:$0xff]
    %v467 = vld [vmem:[%s1 + $0x568] sm:$0xff]
    %v468 = vld [vmem:[%s1 + $0x570] sm:$0xff]
    %v469 = vld [vmem:[%s1 + $0x578] sm:$0xff]
    %v470 = vld [vmem:[%s1 + $0x580] sm:$0xff]
    %v471 = vld [vmem:[%s1 + $0x588] sm:$0xff]
    %v472 = vld [vmem:[%s1 + $0x590] sm:$0xff]
    %v473 = vld [vmem:[%s1 + $0x598] sm:$0xff]
    %v474 = vld [vmem:[%s1 + $0x5a0] sm:$0xff]
    %v475 = vld [vmem:[%s1 + $0x5a8] sm:$0xff]
    %v476 = vld [vmem:[%s1 + $0x5b0] sm:$0xff]
    %v477 = vld [vmem:[%s1 + $0x5b8] sm:$0xff]
    %v478 = vld [vmem:[%s1 + $0x5c0] sm:$0xff]
    %v479 = vld [vmem:[%s1 + $0x5c8] sm:$0xff]
    %v480 = vld [vmem:[%s1 + $0x5d0] sm:$0xff]
    %v481 = vld [vmem:[%s1 + $0x5d8] sm:$0xff]
    %v482 = vld [vmem:[%s1 + $0x5e0] sm:$0xff]
    %v483 = vld [vmem:[%s1 + $0x5e8] sm:$0xff]
    %v484 = vld [vmem:[%s1 + $0x5f0] sm:$0xff]
    %v485 = vld [vmem:[%s1 + $0x5f8] sm:$0xff]
    %v486 = vld [vmem:[%s1 + $0x600] sm:$0xff]
    %v487 = vld [vmem:[%s1 + $0x608] sm:$0xff]
    %v488 = vld [vmem:[%s1 + $0x610] sm:$0xff]
    %v489 = vld [vmem:[%s1 + $0x618] sm:$0xff]
    %v490 = vld [vmem:[%s1 + $0x620] sm:$0xff]
    %v491 = vld [vmem:[%s1 + $0x628] sm:$0xff]
    %v492 = vld [vmem:[%s1 + $0x630] sm:$0xff]
    %v493 = vld [vmem:[%s1 + $0x638] sm:$0xff]
    %v494 = vld [vmem:[%s5] sm:$0xff]
    %496 = vset.pattern.permute.xlu0 0
    %497 = vperm.xlu0 %496, %v494
    %v498 = vpop.permute.xlu0 %497
    %vm500 = vcmask 261120
    %v502 = vsel %vm500, %v293, 0
    %504 = vmatpush.msra.mxu0 %v444
    %505 = vmatpush.msra.mxu0 %v434
    %506 = vmatpush.msra.mxu0 %v424
    %507 = vmatpush.msra.mxu0 %v414
    %508 = vmatpush.msra.mxu0 %v404
    %509 = vmatpush.msra.mxu0 %v394
    %510 = vmatpush.msra.mxu0 %v384
    %511 = vmatpush.msra.mxu0 %v374
    %512 = vmatpush.msra.mxu0 %v364
    %513 = vmatpush.msra.mxu0 %v354
    %514 = vmatpush.msra.mxu0 %v344
    %515 = vmatpush.msra.mxu0 %v334
    %516 = vmatpush.msra.mxu0 %v324
    %517 = vmatpush.msra.mxu0 %v314
    %518 = vmatpush.msra.mxu0 %v304
    %519 = vmatpush.msra.mxu0 %v294
    %520 = vmatmul.f32.gmra.mxu0 %v292
    %v521 = vpop.f32.mrf.mxu0
    %v522 = vadd.f32 %v498, %v521
    %523 = vdwg.mxu0
    %524 = vmatpush.msra.mxu0 0.0
    %525 = vmatpush.msra.mxu0 0.0
    %526 = vmatpush.msra.mxu0 0.0
    %527 = vmatpush.msra.mxu0 0.0
    %528 = vmatpush.msra.mxu0 0.0
    %529 = vmatpush.msra.mxu0 0.0
    %530 = vmatpush.msra.mxu0 0.0
    %531 = vmatpush.msra.mxu0 0.0
    %532 = vmatpush.msra.mxu0 0.0
    %533 = vmatpush.msra.mxu0 0.0
    %534 = vmatpush.msra.mxu0 0.0
    %535 = vmatpush.msra.mxu0 0.0
    %536 = vmatpush.msra.mxu0 %v484
    %537 = vmatpush.msra.mxu0 %v474
    %538 = vmatpush.msra.mxu0 %v464
    %539 = vmatpush.msra.mxu0 %v454
    %540 = vmatmul.f32.gmra.mxu0 %v502
    %v541 = vpop.f32.mrf.mxu0
    %v542 = vadd.f32 %v522, %v541
    %543 = vdwg.mxu0
    %544 = vmatpush.msra.mxu0 %v445
    %545 = vmatpush.msra.mxu0 %v435
    %546 = vmatpush.msra.mxu0 %v425
    %547 = vmatpush.msra.mxu0 %v415
    %548 = vmatpush.msra.mxu0 %v405
    %549 = vmatpush.msra.mxu0 %v395
    %550 = vmatpush.msra.mxu0 %v385
    %551 = vmatpush.msra.mxu0 %v375
    %552 = vmatpush.msra.mxu0 %v365
    %553 = vmatpush.msra.mxu0 %v355
    %554 = vmatpush.msra.mxu0 %v345
    %555 = vmatpush.msra.mxu0 %v335
    %556 = vmatpush.msra.mxu0 %v325
    %557 = vmatpush.msra.mxu0 %v315
    %558 = vmatpush.msra.mxu0 %v305
    %559 = vmatpush.msra.mxu0 %v295
    %560 = vmatmul.f32.gmra.mxu0 %v292
    %v561 = vpop.f32.mrf.mxu0
    %v562 = vadd.f32 %v498, %v561
    %563 = vdwg.mxu0
    %564 = vmatpush.msra.mxu0 0.0
    %565 = vmatpush.msra.mxu0 0.0
    %566 = vmatpush.msra.mxu0 0.0
    %567 = vmatpush.msra.mxu0 0.0
    %568 = vmatpush.msra.mxu0 0.0
    %569 = vmatpush.msra.mxu0 0.0
    %570 = vmatpush.msra.mxu0 0.0
    %571 = vmatpush.msra.mxu0 0.0
    %572 = vmatpush.msra.mxu0 0.0
    %573 = vmatpush.msra.mxu0 0.0
    %574 = vmatpush.msra.mxu0 0.0
    %575 = vmatpush.msra.mxu0 0.0
    %576 = vmatpush.msra.mxu0 %v485
    %577 = vmatpush.msra.mxu0 %v475
    %578 = vmatpush.msra.mxu0 %v465
    %579 = vmatpush.msra.mxu0 %v455
    %580 = vmatmul.f32.gmra.mxu0 %v502
    %v581 = vpop.f32.mrf.mxu0
    %v582 = vadd.f32 %v562, %v581
    %583 = vdwg.mxu0
    %584 = vmatpush.msra.mxu0 %v446
    %585 = vmatpush.msra.mxu0 %v436
    %586 = vmatpush.msra.mxu0 %v426
    %587 = vmatpush.msra.mxu0 %v416
    %588 = vmatpush.msra.mxu0 %v406
    %589 = vmatpush.msra.mxu0 %v396
    %590 = vmatpush.msra.mxu0 %v386
    %591 = vmatpush.msra.mxu0 %v376
    %592 = vmatpush.msra.mxu0 %v366
    %593 = vmatpush.msra.mxu0 %v356
    %594 = vmatpush.msra.mxu0 %v346
    %595 = vmatpush.msra.mxu0 %v336
    %596 = vmatpush.msra.mxu0 %v326
    %597 = vmatpush.msra.mxu0 %v316
    %598 = vmatpush.msra.mxu0 %v306
    %599 = vmatpush.msra.mxu0 %v296
    %600 = vmatmul.f32.gmra.mxu0 %v292
    %v601 = vpop.f32.mrf.mxu0
    %v602 = vadd.f32 %v498, %v601
    %603 = vdwg.mxu0
    %604 = vmatpush.msra.mxu0 0.0
    %605 = vmatpush.msra.mxu0 0.0
    %606 = vmatpush.msra.mxu0 0.0
    %607 = vmatpush.msra.mxu0 0.0
    %608 = vmatpush.msra.mxu0 0.0
    %609 = vmatpush.msra.mxu0 0.0
    %610 = vmatpush.msra.mxu0 0.0
    %611 = vmatpush.msra.mxu0 0.0
    %612 = vmatpush.msra.mxu0 0.0
    %613 = vmatpush.msra.mxu0 0.0
    %614 = vmatpush.msra.mxu0 0.0
    %615 = vmatpush.msra.mxu0 0.0
    %616 = vmatpush.msra.mxu0 %v486
    %617 = vmatpush.msra.mxu0 %v476
    %618 = vmatpush.msra.mxu0 %v466
    %619 = vmatpush.msra.mxu0 %v456
    %620 = vmatmul.f32.gmra.mxu0 %v502
    %v621 = vpop.f32.mrf.mxu0
    %v622 = vadd.f32 %v602, %v621
    %623 = vdwg.mxu0
    %624 = vmatpush.msra.mxu0 %v447
    %625 = vmatpush.msra.mxu0 %v437
    %626 = vmatpush.msra.mxu0 %v427
    %627 = vmatpush.msra.mxu0 %v417
    %628 = vmatpush.msra.mxu0 %v407
    %629 = vmatpush.msra.mxu0 %v397
    %630 = vmatpush.msra.mxu0 %v387
    %631 = vmatpush.msra.mxu0 %v377
    %632 = vmatpush.msra.mxu0 %v367
    %633 = vmatpush.msra.mxu0 %v357
    %634 = vmatpush.msra.mxu0 %v347
    %635 = vmatpush.msra.mxu0 %v337
    %636 = vmatpush.msra.mxu0 %v327
    %637 = vmatpush.msra.mxu0 %v317
    %638 = vmatpush.msra.mxu0 %v307
    %639 = vmatpush.msra.mxu0 %v297
    %640 = vmatmul.f32.gmra.mxu0 %v292
    %v641 = vpop.f32.mrf.mxu0
    %v642 = vadd.f32 %v498, %v641
    %643 = vdwg.mxu0
    %644 = vmatpush.msra.mxu0 0.0
    %645 = vmatpush.msra.mxu0 0.0
    %646 = vmatpush.msra.mxu0 0.0
    %647 = vmatpush.msra.mxu0 0.0
    %648 = vmatpush.msra.mxu0 0.0
    %649 = vmatpush.msra.mxu0 0.0
    %650 = vmatpush.msra.mxu0 0.0
    %651 = vmatpush.msra.mxu0 0.0
    %652 = vmatpush.msra.mxu0 0.0
    %653 = vmatpush.msra.mxu0 0.0
    %654 = vmatpush.msra.mxu0 0.0
    %655 = vmatpush.msra.mxu0 0.0
    %656 = vmatpush.msra.mxu0 %v487
    %657 = vmatpush.msra.mxu0 %v477
    %658 = vmatpush.msra.mxu0 %v467
    %659 = vmatpush.msra.mxu0 %v457
    %660 = vmatmul.f32.gmra.mxu0 %v502
    %v661 = vpop.f32.mrf.mxu0
    %v662 = vadd.f32 %v642, %v661
    %663 = vdwg.mxu0
    %664 = vmatpush.msra.mxu0 %v448
    %665 = vmatpush.msra.mxu0 %v438
    %666 = vmatpush.msra.mxu0 %v428
    %667 = vmatpush.msra.mxu0 %v418
    %668 = vmatpush.msra.mxu0 %v408
    %669 = vmatpush.msra.mxu0 %v398
    %670 = vmatpush.msra.mxu0 %v388
    %671 = vmatpush.msra.mxu0 %v378
    %672 = vmatpush.msra.mxu0 %v368
    %673 = vmatpush.msra.mxu0 %v358
    %674 = vmatpush.msra.mxu0 %v348
    %675 = vmatpush.msra.mxu0 %v338
    %676 = vmatpush.msra.mxu0 %v328
    %677 = vmatpush.msra.mxu0 %v318
    %678 = vmatpush.msra.mxu0 %v308
    %679 = vmatpush.msra.mxu0 %v298
    %680 = vmatmul.f32.gmra.mxu0 %v292
    %v681 = vpop.f32.mrf.mxu0
    %v682 = vadd.f32 %v498, %v681
    %683 = vdwg.mxu0
    %684 = vmatpush.msra.mxu0 0.0
    %685 = vmatpush.msra.mxu0 0.0
    %686 = vmatpush.msra.mxu0 0.0
    %687 = vmatpush.msra.mxu0 0.0
    %688 = vmatpush.msra.mxu0 0.0
    %689 = vmatpush.msra.mxu0 0.0
    %690 = vmatpush.msra.mxu0 0.0
    %691 = vmatpush.msra.mxu0 0.0
    %692 = vmatpush.msra.mxu0 0.0
    %693 = vmatpush.msra.mxu0 0.0
    %694 = vmatpush.msra.mxu0 0.0
    %695 = vmatpush.msra.mxu0 0.0
    %696 = vmatpush.msra.mxu0 %v488
    %697 = vmatpush.msra.mxu0 %v478
    %698 = vmatpush.msra.mxu0 %v468
    %699 = vmatpush.msra.mxu0 %v458
    %700 = vmatmul.f32.gmra.mxu0 %v502
    %v701 = vpop.f32.mrf.mxu0
    %v702 = vadd.f32 %v682, %v701
    %703 = vdwg.mxu0
    %704 = vmatpush.msra.mxu0 %v449
    %705 = vmatpush.msra.mxu0 %v439
    %706 = vmatpush.msra.mxu0 %v429
    %707 = vmatpush.msra.mxu0 %v419
    %708 = vmatpush.msra.mxu0 %v409
    %709 = vmatpush.msra.mxu0 %v399
    %710 = vmatpush.msra.mxu0 %v389
    %711 = vmatpush.msra.mxu0 %v379
    %712 = vmatpush.msra.mxu0 %v369
    %713 = vmatpush.msra.mxu0 %v359
    %714 = vmatpush.msra.mxu0 %v349
    %715 = vmatpush.msra.mxu0 %v339
    %716 = vmatpush.msra.mxu0 %v329
    %717 = vmatpush.msra.mxu0 %v319
    %718 = vmatpush.msra.mxu0 %v309
    %719 = vmatpush.msra.mxu0 %v299
    %720 = vmatmul.f32.gmra.mxu0 %v292
    %v721 = vpop.f32.mrf.mxu0
    %v722 = vadd.f32 %v498, %v721
    %723 = vdwg.mxu0
    %724 = vmatpush.msra.mxu0 0.0
    %725 = vmatpush.msra.mxu0 0.0
    %726 = vmatpush.msra.mxu0 0.0
    %727 = vmatpush.msra.mxu0 0.0
    %728 = vmatpush.msra.mxu0 0.0
    %729 = vmatpush.msra.mxu0 0.0
    %730 = vmatpush.msra.mxu0 0.0
    %731 = vmatpush.msra.mxu0 0.0
    %732 = vmatpush.msra.mxu0 0.0
    %733 = vmatpush.msra.mxu0 0.0
    %734 = vmatpush.msra.mxu0 0.0
    %735 = vmatpush.msra.mxu0 0.0
    %736 = vmatpush.msra.mxu0 %v489
    %737 = vmatpush.msra.mxu0 %v479
    %738 = vmatpush.msra.mxu0 %v469
    %739 = vmatpush.msra.mxu0 %v459
    %740 = vmatmul.f32.gmra.mxu0 %v502
    %v741 = vpop.f32.mrf.mxu0
    %v742 = vadd.f32 %v722, %v741
    %743 = vdwg.mxu0
    %744 = vmatpush.msra.mxu0 %v450
    %745 = vmatpush.msra.mxu0 %v440
    %746 = vmatpush.msra.mxu0 %v430
    %747 = vmatpush.msra.mxu0 %v420
    %748 = vmatpush.msra.mxu0 %v410
    %749 = vmatpush.msra.mxu0 %v400
    %750 = vmatpush.msra.mxu0 %v390
    %751 = vmatpush.msra.mxu0 %v380
    %752 = vmatpush.msra.mxu0 %v370
    %753 = vmatpush.msra.mxu0 %v360
    %754 = vmatpush.msra.mxu0 %v350
    %755 = vmatpush.msra.mxu0 %v340
    %756 = vmatpush.msra.mxu0 %v330
    %757 = vmatpush.msra.mxu0 %v320
    %758 = vmatpush.msra.mxu0 %v310
    %759 = vmatpush.msra.mxu0 %v300
    %760 = vmatmul.f32.gmra.mxu0 %v292
    %v761 = vpop.f32.mrf.mxu0
    %v762 = vadd.f32 %v498, %v761
    %763 = vdwg.mxu0
    %764 = vmatpush.msra.mxu0 0.0
    %765 = vmatpush.msra.mxu0 0.0
    %766 = vmatpush.msra.mxu0 0.0
    %767 = vmatpush.msra.mxu0 0.0
    %768 = vmatpush.msra.mxu0 0.0
    %769 = vmatpush.msra.mxu0 0.0
    %770 = vmatpush.msra.mxu0 0.0
    %771 = vmatpush.msra.mxu0 0.0
    %772 = vmatpush.msra.mxu0 0.0
    %773 = vmatpush.msra.mxu0 0.0
    %774 = vmatpush.msra.mxu0 0.0
    %775 = vmatpush.msra.mxu0 0.0
    %776 = vmatpush.msra.mxu0 %v490
    %777 = vmatpush.msra.mxu0 %v480
    %778 = vmatpush.msra.mxu0 %v470
    %779 = vmatpush.msra.mxu0 %v460
    %780 = vmatmul.f32.gmra.mxu0 %v502
    %v781 = vpop.f32.mrf.mxu0
    %v782 = vadd.f32 %v762, %v781
    %783 = vdwg.mxu0
    %784 = vmatpush.msra.mxu0 %v451
    %785 = vmatpush.msra.mxu0 %v441
    %786 = vmatpush.msra.mxu0 %v431
    %787 = vmatpush.msra.mxu0 %v421
    %788 = vmatpush.msra.mxu0 %v411
    %789 = vmatpush.msra.mxu0 %v401
    %790 = vmatpush.msra.mxu0 %v391
    %791 = vmatpush.msra.mxu0 %v381
    %792 = vmatpush.msra.mxu0 %v371
    %793 = vmatpush.msra.mxu0 %v361
    %794 = vmatpush.msra.mxu0 %v351
    %795 = vmatpush.msra.mxu0 %v341
    %796 = vmatpush.msra.mxu0 %v331
    %797 = vmatpush.msra.mxu0 %v321
    %798 = vmatpush.msra.mxu0 %v311
    %799 = vmatpush.msra.mxu0 %v301
    %800 = vmatmul.f32.gmra.mxu0 %v292
    %v801 = vpop.f32.mrf.mxu0
    %v802 = vadd.f32 %v498, %v801
    %803 = vdwg.mxu0
    %804 = vmatpush.msra.mxu0 0.0
    %805 = vmatpush.msra.mxu0 0.0
    %806 = vmatpush.msra.mxu0 0.0
    %807 = vmatpush.msra.mxu0 0.0
    %808 = vmatpush.msra.mxu0 0.0
    %809 = vmatpush.msra.mxu0 0.0
    %810 = vmatpush.msra.mxu0 0.0
    %811 = vmatpush.msra.mxu0 0.0
    %812 = vmatpush.msra.mxu0 0.0
    %813 = vmatpush.msra.mxu0 0.0
    %814 = vmatpush.msra.mxu0 0.0
    %815 = vmatpush.msra.mxu0 0.0
    %816 = vmatpush.msra.mxu0 %v491
    %817 = vmatpush.msra.mxu0 %v481
    %818 = vmatpush.msra.mxu0 %v471
    %819 = vmatpush.msra.mxu0 %v461
    %820 = vmatmul.f32.gmra.mxu0 %v502
    %v821 = vpop.f32.mrf.mxu0
    %v822 = vadd.f32 %v802, %v821
    %823 = vdwg.mxu0
    %824 = vmatpush.msra.mxu0 %v452
    %825 = vmatpush.msra.mxu0 %v442
    %826 = vmatpush.msra.mxu0 %v432
    %827 = vmatpush.msra.mxu0 %v422
    %828 = vmatpush.msra.mxu0 %v412
    %829 = vmatpush.msra.mxu0 %v402
    %830 = vmatpush.msra.mxu0 %v392
    %831 = vmatpush.msra.mxu0 %v382
    %832 = vmatpush.msra.mxu0 %v372
    %833 = vmatpush.msra.mxu0 %v362
    %834 = vmatpush.msra.mxu0 %v352
    %835 = vmatpush.msra.mxu0 %v342
    %836 = vmatpush.msra.mxu0 %v332
    %837 = vmatpush.msra.mxu0 %v322
    %838 = vmatpush.msra.mxu0 %v312
    %839 = vmatpush.msra.mxu0 %v302
    %840 = vmatmul.f32.gmra.mxu0 %v292
    %v841 = vpop.f32.mrf.mxu0
    %v842 = vadd.f32 %v498, %v841
    %843 = vdwg.mxu0
    %844 = vmatpush.msra.mxu0 0.0
    %845 = vmatpush.msra.mxu0 0.0
    %846 = vmatpush.msra.mxu0 0.0
    %847 = vmatpush.msra.mxu0 0.0
    %848 = vmatpush.msra.mxu0 0.0
    %849 = vmatpush.msra.mxu0 0.0
    %850 = vmatpush.msra.mxu0 0.0
    %851 = vmatpush.msra.mxu0 0.0
    %852 = vmatpush.msra.mxu0 0.0
    %853 = vmatpush.msra.mxu0 0.0
    %854 = vmatpush.msra.mxu0 0.0
    %855 = vmatpush.msra.mxu0 0.0
    %856 = vmatpush.msra.mxu0 %v492
    %857 = vmatpush.msra.mxu0 %v482
    %858 = vmatpush.msra.mxu0 %v472
    %859 = vmatpush.msra.mxu0 %v462
    %860 = vmatmul.f32.gmra.mxu0 %v502
    %v861 = vpop.f32.mrf.mxu0
    %v862 = vadd.f32 %v842, %v861
    %863 = vdwg.mxu0
    %864 = vmatpush.msra.mxu0 %v453
    %865 = vmatpush.msra.mxu0 %v443
    %866 = vmatpush.msra.mxu0 %v433
    %867 = vmatpush.msra.mxu0 %v423
    %868 = vmatpush.msra.mxu0 %v413
    %869 = vmatpush.msra.mxu0 %v403
    %870 = vmatpush.msra.mxu0 %v393
    %871 = vmatpush.msra.mxu0 %v383
    %872 = vmatpush.msra.mxu0 %v373
    %873 = vmatpush.msra.mxu0 %v363
    %874 = vmatpush.msra.mxu0 %v353
    %875 = vmatpush.msra.mxu0 %v343
    %876 = vmatpush.msra.mxu0 %v333
    %877 = vmatpush.msra.mxu0 %v323
    %878 = vmatpush.msra.mxu0 %v313
    %879 = vmatpush.msra.mxu0 %v303
    %880 = vmatmul.f32.gmra.mxu0 %v292
    %v881 = vpop.f32.mrf.mxu0
    %v882 = vadd.f32 %v498, %v881
    %883 = vdwg.mxu0
    %884 = vmatpush.msra.mxu0 0.0
    %885 = vmatpush.msra.mxu0 0.0
    %886 = vmatpush.msra.mxu0 0.0
    %887 = vmatpush.msra.mxu0 0.0
    %888 = vmatpush.msra.mxu0 0.0
    %889 = vmatpush.msra.mxu0 0.0
    %890 = vmatpush.msra.mxu0 0.0
    %891 = vmatpush.msra.mxu0 0.0
    %892 = vmatpush.msra.mxu0 0.0
    %893 = vmatpush.msra.mxu0 0.0
    %894 = vmatpush.msra.mxu0 0.0
    %895 = vmatpush.msra.mxu0 0.0
    %896 = vmatpush.msra.mxu0 %v493
    %897 = vmatpush.msra.mxu0 %v483
    %898 = vmatpush.msra.mxu0 %v473
    %899 = vmatpush.msra.mxu0 %v463
    %900 = vmatmul.f32.gmra.mxu0 %v502
    %v901 = vpop.f32.mrf.mxu0
    %v902 = vadd.f32 %v882, %v901
    %903 = vdwg.mxu0
    %v904 = vmax.f32 %v542, 0.0
    %v905 = vmax.f32 %v582, 0.0
    %v906 = vmax.f32 %v622, 0.0
    %v907 = vmax.f32 %v662, 0.0
    %v908 = vmax.f32 %v702, 0.0
    %v909 = vmax.f32 %v742, 0.0
    %v910 = vmax.f32 %v782, 0.0
    %v911 = vmax.f32 %v822, 0.0
    %v912 = vmax.f32 %v862, 0.0
    %v913 = vmax.f32 %v902, 0.0
    %v914 = vld [vmem:[#allocation2] sm:$0xff]
    %v915 = vld [vmem:[#allocation2 + $0x8] sm:$0x3]
    %v918 = vperm.slane %v914, 0
    %v919 = vperm.slane %v914, 1
    %v920 = vperm.slane %v914, 2
    %v921 = vperm.slane %v914, 3
    %v922 = vperm.slane %v914, 4
    %v923 = vperm.slane %v914, 5
    %v924 = vperm.slane %v914, 6
    %v925 = vperm.slane %v914, 7
    %v926 = vperm.slane %v915, 0
    %v927 = vperm.slane %v915, 1
    %v938 = vmul.f32 %v904, %v918
    %v939 = vmul.f32 %v905, %v919
    %v940 = vmul.f32 %v906, %v920
    %v941 = vmul.f32 %v907, %v921
    %v942 = vmul.f32 %v908, %v922
    %v943 = vmul.f32 %v909, %v923
    %v944 = vmul.f32 %v910, %v924
    %v945 = vmul.f32 %v911, %v925
    %v946 = vmul.f32 %v912, %v926
    %v947 = vmul.f32 %v913, %v927
    %948 = vrot.lane.b32.xlu0 %v938, 94
    %v949 = vpop.permute.xlu0 %948
    %950 = vrot.lane.b32.xlu0 %v939, 94
    %v951 = vpop.permute.xlu0 %950
    %952 = vrot.lane.b32.xlu0 %v940, 94
    %v953 = vpop.permute.xlu0 %952
    %954 = vrot.lane.b32.xlu0 %v941, 94
    %v955 = vpop.permute.xlu0 %954
    %956 = vrot.lane.b32.xlu0 %v942, 94
    %v957 = vpop.permute.xlu0 %956
    %958 = vrot.lane.b32.xlu0 %v943, 94
    %v959 = vpop.permute.xlu0 %958
    %960 = vrot.lane.b32.xlu0 %v944, 94
    %v961 = vpop.permute.xlu0 %960
    %962 = vrot.lane.b32.xlu0 %v945, 94
    %v963 = vpop.permute.xlu0 %962
    %964 = vrot.lane.b32.xlu0 %v946, 94
    %v965 = vpop.permute.xlu0 %964
    %966 = vrot.lane.b32.xlu0 %v947, 94
    %v967 = vpop.permute.xlu0 %966
    %v968 = vlaneseq
    %v969 = vand.u32 %v968, 127
    %vm970 = vcmp.lt.s32.totalorder %v969, 94
    %v971 = vsel %vm970, %v965, %v967
    %v972 = vsel %vm970, %v963, %v965
    %v973 = vsel %vm970, %v961, %v963
    %v974 = vsel %vm970, %v959, %v961
    %v975 = vsel %vm970, %v957, %v959
    %v976 = vsel %vm970, %v955, %v957
    %v977 = vsel %vm970, %v953, %v955
    %v978 = vsel %vm970, %v951, %v953
    %v979 = vsel %vm970, %v949, %v951
    %v980 = vsel %vm970, %v967, %v949
    %v981 = vmax.f32 %v938, %v979
    %v982 = vmax.f32 %v939, %v978
    %v983 = vmax.f32 %v940, %v977
    %v984 = vmax.f32 %v941, %v976
    %v985 = vmax.f32 %v942, %v975
    %v986 = vmax.f32 %v943, %v974
    %v987 = vmax.f32 %v944, %v973
    %v988 = vmax.f32 %v945, %v972
    %v989 = vmax.f32 %v946, %v971
    %v990 = vmax.f32 %v947, %v980
    %991 = vrot.lane.b32.xlu0 %v938, 34
    %v992 = vpop.permute.xlu0 %991
    %993 = vrot.lane.b32.xlu0 %v939, 34
    %v994 = vpop.permute.xlu0 %993
    %995 = vrot.lane.b32.xlu0 %v940, 34
    %v996 = vpop.permute.xlu0 %995
    %997 = vrot.lane.b32.xlu0 %v941, 34
    %v998 = vpop.permute.xlu0 %997
    %999 = vrot.lane.b32.xlu0 %v942, 34
    %v1000 = vpop.permute.xlu0 %999
    %1001 = vrot.lane.b32.xlu0 %v943, 34
    %v1002 = vpop.permute.xlu0 %1001
    %1003 = vrot.lane.b32.xlu0 %v944, 34
    %v1004 = vpop.permute.xlu0 %1003
    %1005 = vrot.lane.b32.xlu0 %v945, 34
    %v1006 = vpop.permute.xlu0 %1005
    %1007 = vrot.lane.b32.xlu0 %v946, 34
    %v1008 = vpop.permute.xlu0 %1007
    %1009 = vrot.lane.b32.xlu0 %v947, 34
    %v1010 = vpop.permute.xlu0 %1009
    %vm1011 = vcmp.lt.s32.totalorder %v969, 34
    %v1012 = vsel %vm1011, %v1008, %v1010
    %v1013 = vsel %vm1011, %v1006, %v1008
    %v1014 = vsel %vm1011, %v1004, %v1006
    %v1015 = vsel %vm1011, %v1002, %v1004
    %v1016 = vsel %vm1011, %v1000, %v1002
    %v1017 = vsel %vm1011, %v998, %v1000
    %v1018 = vsel %vm1011, %v996, %v998
    %v1019 = vsel %vm1011, %v994, %v996
    %v1020 = vsel %vm1011, %v992, %v994
    %v1021 = vsel %vm1011, %v1010, %v992
    %v1022 = vmax.f32 %v981, %v1021
    %v1023 = vmax.f32 %v982, %v1020
    %v1024 = vmax.f32 %v983, %v1019
    %v1025 = vmax.f32 %v984, %v1018
    %v1026 = vmax.f32 %v985, %v1017
    %v1027 = vmax.f32 %v986, %v1016
    %v1028 = vmax.f32 %v987, %v1015
    %v1029 = vmax.f32 %v988, %v1014
    %v1030 = vmax.f32 %v989, %v1013
    %v1031 = vmax.f32 %v990, %v1012
    %1032 = vrot.lane.b32.xlu0 %v1022, 127
    %v1033 = vpop.permute.xlu0 %1032
    %1034 = vrot.lane.b32.xlu0 %v1023, 127
    %v1035 = vpop.permute.xlu0 %1034
    %1036 = vrot.lane.b32.xlu0 %v1024, 127
    %v1037 = vpop.permute.xlu0 %1036
    %1038 = vrot.lane.b32.xlu0 %v1025, 127
    %v1039 = vpop.permute.xlu0 %1038
    %1040 = vrot.lane.b32.xlu0 %v1026, 127
    %v1041 = vpop.permute.xlu0 %1040
    %1042 = vrot.lane.b32.xlu0 %v1027, 127
    %v1043 = vpop.permute.xlu0 %1042
    %1044 = vrot.lane.b32.xlu0 %v1028, 127
    %v1045 = vpop.permute.xlu0 %1044
    %1046 = vrot.lane.b32.xlu0 %v1029, 127
    %v1047 = vpop.permute.xlu0 %1046
    %1048 = vrot.lane.b32.xlu0 %v1030, 127
    %v1049 = vpop.permute.xlu0 %1048
    %1050 = vrot.lane.b32.xlu0 %v1031, 127
    %v1051 = vpop.permute.xlu0 %1050
    %vm1052 = vcmp.lt.s32.totalorder %v969, 127
    %v1053 = vsel %vm1052, %v1049, %v1051
    %v1054 = vsel %vm1052, %v1047, %v1049
    %v1055 = vsel %vm1052, %v1045, %v1047
    %v1056 = vsel %vm1052, %v1043, %v1045
    %v1057 = vsel %vm1052, %v1041, %v1043
    %v1058 = vsel %vm1052, %v1039, %v1041
    %v1059 = vsel %vm1052, %v1037, %v1039
    %v1060 = vsel %vm1052, %v1035, %v1037
    %v1061 = vsel %vm1052, %v1033, %v1035
    %v1062 = vsel %vm1052, %v1051, %v1033
    %v1063 = vmax.f32 %v1022, %v1061
    %v1064 = vmax.f32 %v1023, %v1060
    %v1065 = vmax.f32 %v1024, %v1059
    %v1066 = vmax.f32 %v1025, %v1058
    %v1067 = vmax.f32 %v1026, %v1057
    %v1068 = vmax.f32 %v1027, %v1056
    %v1069 = vmax.f32 %v1028, %v1055
    %v1070 = vmax.f32 %v1029, %v1054
    %v1071 = vmax.f32 %v1030, %v1053
    %v1072 = vmax.f32 %v1031, %v1062
    %1073 = vrot.lane.b32.xlu0 %v1022, 1
    %v1074 = vpop.permute.xlu0 %1073
    %1075 = vrot.lane.b32.xlu0 %v1023, 1
    %v1076 = vpop.permute.xlu0 %1075
    %1077 = vrot.lane.b32.xlu0 %v1024, 1
    %v1078 = vpop.permute.xlu0 %1077
    %1079 = vrot.lane.b32.xlu0 %v1025, 1
    %v1080 = vpop.permute.xlu0 %1079
    %1081 = vrot.lane.b32.xlu0 %v1026, 1
    %v1082 = vpop.permute.xlu0 %1081
    %1083 = vrot.lane.b32.xlu0 %v1027, 1
    %v1084 = vpop.permute.xlu0 %1083
    %1085 = vrot.lane.b32.xlu0 %v1028, 1
    %v1086 = vpop.permute.xlu0 %1085
    %1087 = vrot.lane.b32.xlu0 %v1029, 1
    %v1088 = vpop.permute.xlu0 %1087
    %1089 = vrot.lane.b32.xlu0 %v1030, 1
    %v1090 = vpop.permute.xlu0 %1089
    %1091 = vrot.lane.b32.xlu0 %v1031, 1
    %v1092 = vpop.permute.xlu0 %1091
    %vm1093 = vcmp.lt.s32.totalorder %v969, 1
    %v1094 = vsel %vm1093, %v1090, %v1092
    %v1095 = vsel %vm1093, %v1088, %v1090
    %v1096 = vsel %vm1093, %v1086, %v1088
    %v1097 = vsel %vm1093, %v1084, %v1086
    %v1098 = vsel %vm1093, %v1082, %v1084
    %v1099 = vsel %vm1093, %v1080, %v1082
    %v1100 = vsel %vm1093, %v1078, %v1080
    %v1101 = vsel %vm1093, %v1076, %v1078
    %v1102 = vsel %vm1093, %v1074, %v1076
    %v1103 = vsel %vm1093, %v1092, %v1074
    %v1104 = vmax.f32 %v1063, %v1103
    %v1105 = vmax.f32 %v1064, %v1102
    %v1106 = vmax.f32 %v1065, %v1101
    %v1107 = vmax.f32 %v1066, %v1100
    %v1108 = vmax.f32 %v1067, %v1099
    %v1109 = vmax.f32 %v1068, %v1098
    %v1110 = vmax.f32 %v1069, %v1097
    %v1111 = vmax.f32 %v1070, %v1096
    %v1112 = vmax.f32 %v1071, %v1095
    %v1113 = vmax.f32 %v1072, %v1094
    %v1114 = vld [vmem:[#allocation10] sm:$0xff]
    %v1115 = vld [vmem:[#allocation10 + $0x8] sm:$0xff]
    %v1116 = vld [vmem:[#allocation10 + $0x10] sm:$0xff]
    %v1117 = vld [vmem:[#allocation10 + $0x18] sm:$0xff]
    %v1118 = vld [vmem:[#allocation10 + $0x20] sm:$0xff]
    %v1119 = vld [vmem:[#allocation10 + $0x28] sm:$0xff]
    %v1120 = vld [vmem:[#allocation10 + $0x30] sm:$0xff]
    %v1121 = vld [vmem:[#allocation10 + $0x38] sm:$0xff]
    %v1122 = vld [vmem:[#allocation10 + $0x40] sm:$0xff]
    %v1123 = vld [vmem:[#allocation10 + $0x48] sm:$0xff]
    %v1124 = vld [vmem:[#allocation10 + $0x50] sm:$0xff]
    %v1125 = vld [vmem:[#allocation10 + $0x58] sm:$0xff]
    %v1126 = vld [vmem:[#allocation10 + $0x60] sm:$0xff]
    %v1127 = vld [vmem:[#allocation10 + $0x68] sm:$0xff]
    %v1128 = vld [vmem:[#allocation10 + $0x70] sm:$0xff]
    %v1129 = vld [vmem:[#allocation10 + $0x78] sm:$0xff]
    %v1130 = vld [vmem:[#allocation10 + $0x80] sm:$0xff]
    %v1131 = vld [vmem:[#allocation10 + $0x88] sm:$0xff]
    %v1132 = vld [vmem:[#allocation10 + $0x90] sm:$0xff]
    %v1133 = vld [vmem:[#allocation10 + $0x98] sm:$0xff]
    %v1134 = vld [vmem:[#allocation10 + $0xa0] sm:$0xff]
    %v1135 = vld [vmem:[#allocation10 + $0xa8] sm:$0xff]
    %v1136 = vld [vmem:[#allocation10 + $0xb0] sm:$0xff]
    %v1137 = vld [vmem:[#allocation10 + $0xb8] sm:$0xff]
    %v1138 = vld [vmem:[#allocation10 + $0xc0] sm:$0xff]
    %v1139 = vld [vmem:[#allocation10 + $0xc8] sm:$0xff]
    %v1140 = vld [vmem:[#allocation10 + $0xd0] sm:$0xff]
    %v1141 = vld [vmem:[#allocation10 + $0xd8] sm:$0xff]
    %v1142 = vld [vmem:[#allocation10 + $0xe0] sm:$0xff]
    %v1143 = vld [vmem:[#allocation10 + $0xe8] sm:$0xff]
    %v1144 = vld [vmem:[#allocation10 + $0xf0] sm:$0xff]
    %v1145 = vld [vmem:[#allocation10 + $0xf8] sm:$0xff]
    %v1146 = vld [vmem:[#allocation10 + $0x100] sm:$0xff]
    %v1147 = vld [vmem:[#allocation10 + $0x108] sm:$0xff]
    %v1148 = vld [vmem:[#allocation10 + $0x110] sm:$0xff]
    %v1149 = vld [vmem:[#allocation10 + $0x118] sm:$0xff]
    %v1150 = vld [vmem:[#allocation10 + $0x120] sm:$0xff]
    %v1151 = vld [vmem:[#allocation10 + $0x128] sm:$0xff]
    %v1152 = vld [vmem:[#allocation10 + $0x130] sm:$0xff]
    %v1153 = vld [vmem:[#allocation10 + $0x138] sm:$0xff]
    %v1154 = vld [vmem:[#allocation10 + $0x140] sm:$0xff]
    %v1155 = vld [vmem:[#allocation10 + $0x148] sm:$0xff]
    %v1156 = vld [vmem:[#allocation10 + $0x150] sm:$0xff]
    %v1157 = vld [vmem:[#allocation10 + $0x158] sm:$0xff]
    %v1158 = vld [vmem:[#allocation10 + $0x160] sm:$0xff]
    %v1159 = vld [vmem:[#allocation10 + $0x168] sm:$0xff]
    %v1160 = vld [vmem:[#allocation10 + $0x170] sm:$0xff]
    %v1161 = vld [vmem:[#allocation10 + $0x178] sm:$0xff]
    %v1162 = vld [vmem:[#allocation10 + $0x180] sm:$0xff]
    %v1163 = vld [vmem:[#allocation10 + $0x188] sm:$0xff]
    %v1164 = vld [vmem:[#allocation10 + $0x190] sm:$0xff]
    %v1165 = vld [vmem:[#allocation10 + $0x198] sm:$0xff]
    %v1166 = vld [vmem:[#allocation10 + $0x1a0] sm:$0xff]
    %v1167 = vld [vmem:[#allocation10 + $0x1a8] sm:$0xff]
    %v1168 = vld [vmem:[#allocation10 + $0x1b0] sm:$0xff]
    %v1169 = vld [vmem:[#allocation10 + $0x1b8] sm:$0xff]
    %v1170 = vld [vmem:[#allocation10 + $0x1c0] sm:$0xff]
    %v1171 = vld [vmem:[#allocation10 + $0x1c8] sm:$0xff]
    %v1172 = vld [vmem:[#allocation10 + $0x1d0] sm:$0xff]
    %v1173 = vld [vmem:[#allocation10 + $0x1d8] sm:$0xff]
    %v1174 = vld [vmem:[#allocation10 + $0x1e0] sm:$0xff]
    %v1175 = vld [vmem:[#allocation10 + $0x1e8] sm:$0xff]
    %v1176 = vld [vmem:[#allocation10 + $0x1f0] sm:$0xff]
    %v1177 = vld [vmem:[#allocation10 + $0x1f8] sm:$0xff]
    %v1178 = vld [vmem:[#allocation10 + $0x200] sm:$0xff]
    %v1179 = vld [vmem:[#allocation10 + $0x208] sm:$0xff]
    %v1180 = vld [vmem:[#allocation10 + $0x210] sm:$0xff]
    %v1181 = vld [vmem:[#allocation10 + $0x218] sm:$0xff]
    %v1182 = vld [vmem:[#allocation10 + $0x220] sm:$0xff]
    %v1183 = vld [vmem:[#allocation10 + $0x228] sm:$0xff]
    %v1184 = vld [vmem:[#allocation10 + $0x230] sm:$0xff]
    %v1185 = vld [vmem:[#allocation10 + $0x238] sm:$0xff]
    %v1186 = vld [vmem:[#allocation10 + $0x240] sm:$0xff]
    %v1187 = vld [vmem:[#allocation10 + $0x248] sm:$0xff]
    %v1188 = vld [vmem:[#allocation10 + $0x250] sm:$0xff]
    %v1189 = vld [vmem:[#allocation10 + $0x258] sm:$0xff]
    %v1190 = vld [vmem:[#allocation10 + $0x260] sm:$0xff]
    %v1191 = vld [vmem:[#allocation10 + $0x268] sm:$0xff]
    %v1192 = vld [vmem:[#allocation10 + $0x270] sm:$0xff]
    %v1193 = vld [vmem:[#allocation10 + $0x278] sm:$0xff]
    %v1194 = vld [vmem:[#allocation10 + $0x280] sm:$0xff]
    %v1195 = vld [vmem:[#allocation10 + $0x288] sm:$0xff]
    %v1196 = vld [vmem:[#allocation10 + $0x290] sm:$0xff]
    %v1197 = vld [vmem:[#allocation10 + $0x298] sm:$0xff]
    %v1198 = vld [vmem:[#allocation10 + $0x2a0] sm:$0xff]
    %v1199 = vld [vmem:[#allocation10 + $0x2a8] sm:$0xff]
    %v1200 = vld [vmem:[#allocation10 + $0x2b0] sm:$0xff]
    %v1201 = vld [vmem:[#allocation10 + $0x2b8] sm:$0xff]
    %v1202 = vld [vmem:[#allocation10 + $0x2c0] sm:$0xff]
    %v1203 = vld [vmem:[#allocation10 + $0x2c8] sm:$0xff]
    %v1204 = vld [vmem:[#allocation10 + $0x2d0] sm:$0xff]
    %v1205 = vld [vmem:[#allocation10 + $0x2d8] sm:$0xff]
    %v1206 = vld [vmem:[#allocation10 + $0x2e0] sm:$0xff]
    %v1207 = vld [vmem:[#allocation10 + $0x2e8] sm:$0xff]
    %v1208 = vld [vmem:[#allocation10 + $0x2f0] sm:$0xff]
    %v1209 = vld [vmem:[#allocation10 + $0x2f8] sm:$0xff]
    %v1210 = vld [vmem:[#allocation10 + $0x300] sm:$0xff]
    %v1211 = vld [vmem:[#allocation10 + $0x308] sm:$0xff]
    %v1212 = vld [vmem:[#allocation10 + $0x310] sm:$0xff]
    %v1213 = vld [vmem:[#allocation10 + $0x318] sm:$0xff]
    %v1214 = vld [vmem:[#allocation10 + $0x320] sm:$0xff]
    %v1215 = vld [vmem:[#allocation10 + $0x328] sm:$0xff]
    %v1216 = vld [vmem:[#allocation10 + $0x330] sm:$0xff]
    %v1217 = vld [vmem:[#allocation10 + $0x338] sm:$0xff]
    %v1218 = vld [vmem:[#allocation10 + $0x340] sm:$0xff]
    %v1219 = vld [vmem:[#allocation10 + $0x348] sm:$0xff]
    %v1220 = vld [vmem:[#allocation10 + $0x350] sm:$0xff]
    %v1221 = vld [vmem:[#allocation10 + $0x358] sm:$0xff]
    %v1222 = vld [vmem:[#allocation10 + $0x360] sm:$0xff]
    %v1223 = vld [vmem:[#allocation10 + $0x368] sm:$0xff]
    %v1224 = vld [vmem:[#allocation10 + $0x370] sm:$0xff]
    %v1225 = vld [vmem:[#allocation10 + $0x378] sm:$0xff]
    %v1226 = vld [vmem:[#allocation10 + $0x380] sm:$0xff]
    %v1227 = vld [vmem:[#allocation10 + $0x388] sm:$0xff]
    %v1228 = vld [vmem:[#allocation10 + $0x390] sm:$0xff]
    %v1229 = vld [vmem:[#allocation10 + $0x398] sm:$0xff]
    %v1230 = vld [vmem:[#allocation10 + $0x3a0] sm:$0xff]
    %v1231 = vld [vmem:[#allocation10 + $0x3a8] sm:$0xff]
    %v1232 = vld [vmem:[#allocation10 + $0x3b0] sm:$0xff]
    %v1233 = vld [vmem:[#allocation10 + $0x3b8] sm:$0xff]
    %v1234 = vld [vmem:[#allocation10 + $0x3c0] sm:$0xff]
    %v1235 = vld [vmem:[#allocation10 + $0x3c8] sm:$0xff]
    %v1236 = vld [vmem:[#allocation10 + $0x3d0] sm:$0xff]
    %v1237 = vld [vmem:[#allocation10 + $0x3d8] sm:$0xff]
    %v1238 = vld [vmem:[#allocation10 + $0x3e0] sm:$0xff]
    %v1239 = vld [vmem:[#allocation10 + $0x3e8] sm:$0xff]
    %v1240 = vld [vmem:[#allocation10 + $0x3f0] sm:$0xff]
    %v1241 = vld [vmem:[#allocation10 + $0x3f8] sm:$0xff]
    %v1242 = vld [vmem:[#allocation10 + $0x400] sm:$0xff]
    %v1243 = vld [vmem:[#allocation10 + $0x408] sm:$0xff]
    %v1244 = vld [vmem:[#allocation10 + $0x410] sm:$0xff]
    %v1245 = vld [vmem:[#allocation10 + $0x418] sm:$0xff]
    %v1246 = vld [vmem:[#allocation10 + $0x420] sm:$0xff]
    %v1247 = vld [vmem:[#allocation10 + $0x428] sm:$0xff]
    %v1248 = vld [vmem:[#allocation10 + $0x430] sm:$0xff]
    %v1249 = vld [vmem:[#allocation10 + $0x438] sm:$0xff]
    %v1250 = vld [vmem:[#allocation10 + $0x440] sm:$0xff]
    %v1251 = vld [vmem:[#allocation10 + $0x448] sm:$0xff]
    %v1252 = vld [vmem:[#allocation10 + $0x450] sm:$0xff]
    %v1253 = vld [vmem:[#allocation10 + $0x458] sm:$0xff]
    %v1254 = vld [vmem:[#allocation10 + $0x460] sm:$0xff]
    %v1255 = vld [vmem:[#allocation10 + $0x468] sm:$0xff]
    %v1256 = vld [vmem:[#allocation10 + $0x470] sm:$0xff]
    %v1257 = vld [vmem:[#allocation10 + $0x478] sm:$0xff]
    %v1258 = vld [vmem:[#allocation10 + $0x480] sm:$0xff]
    %v1259 = vld [vmem:[#allocation10 + $0x488] sm:$0xff]
    %v1260 = vld [vmem:[#allocation10 + $0x490] sm:$0xff]
    %v1261 = vld [vmem:[#allocation10 + $0x498] sm:$0xff]
    %v1262 = vld [vmem:[#allocation10 + $0x4a0] sm:$0xff]
    %v1263 = vld [vmem:[#allocation10 + $0x4a8] sm:$0xff]
    %v1264 = vld [vmem:[#allocation10 + $0x4b0] sm:$0xff]
    %v1265 = vld [vmem:[#allocation10 + $0x4b8] sm:$0xff]
    %v1266 = vld [vmem:[#allocation10 + $0x4c0] sm:$0xff]
    %v1267 = vld [vmem:[#allocation10 + $0x4c8] sm:$0xff]
    %v1268 = vld [vmem:[#allocation10 + $0x4d0] sm:$0xff]
    %v1269 = vld [vmem:[#allocation10 + $0x4d8] sm:$0xff]
    %v1270 = vld [vmem:[#allocation10 + $0x4e0] sm:$0xff]
    %v1271 = vld [vmem:[#allocation10 + $0x4e8] sm:$0xff]
    %v1272 = vld [vmem:[#allocation10 + $0x4f0] sm:$0xff]
    %v1273 = vld [vmem:[#allocation10 + $0x4f8] sm:$0xff]
    %v1274 = vld [vmem:[#allocation10 + $0x500] sm:$0xff]
    %v1275 = vld [vmem:[#allocation10 + $0x508] sm:$0xff]
    %v1276 = vld [vmem:[#allocation10 + $0x510] sm:$0xff]
    %v1277 = vld [vmem:[#allocation10 + $0x518] sm:$0xff]
    %v1278 = vld [vmem:[#allocation10 + $0x520] sm:$0xff]
    %v1279 = vld [vmem:[#allocation10 + $0x528] sm:$0xff]
    %v1280 = vld [vmem:[#allocation10 + $0x530] sm:$0xff]
    %v1281 = vld [vmem:[#allocation10 + $0x538] sm:$0xff]
    %v1282 = vld [vmem:[#allocation10 + $0x540] sm:$0xff]
    %v1283 = vld [vmem:[#allocation10 + $0x548] sm:$0xff]
    %v1284 = vld [vmem:[#allocation10 + $0x550] sm:$0xff]
    %v1285 = vld [vmem:[#allocation10 + $0x558] sm:$0xff]
    %v1286 = vld [vmem:[#allocation10 + $0x560] sm:$0xff]
    %v1287 = vld [vmem:[#allocation10 + $0x568] sm:$0xff]
    %v1288 = vld [vmem:[#allocation10 + $0x570] sm:$0xff]
    %v1289 = vld [vmem:[#allocation10 + $0x578] sm:$0xff]
    %v1290 = vld [vmem:[#allocation10 + $0x580] sm:$0xff]
    %v1291 = vld [vmem:[#allocation10 + $0x588] sm:$0xff]
    %v1292 = vld [vmem:[#allocation10 + $0x590] sm:$0xff]
    %v1293 = vld [vmem:[#allocation10 + $0x598] sm:$0xff]
    %v1294 = vld [vmem:[#allocation10 + $0x5a0] sm:$0xff]
    %v1295 = vld [vmem:[#allocation10 + $0x5a8] sm:$0xff]
    %v1296 = vld [vmem:[#allocation10 + $0x5b0] sm:$0xff]
    %v1297 = vld [vmem:[#allocation10 + $0x5b8] sm:$0xff]
    %v1298 = vld [vmem:[#allocation10 + $0x5c0] sm:$0xff]
    %v1299 = vld [vmem:[#allocation10 + $0x5c8] sm:$0xff]
    %v1300 = vld [vmem:[#allocation10 + $0x5d0] sm:$0xff]
    %v1301 = vld [vmem:[#allocation10 + $0x5d8] sm:$0xff]
    %v1302 = vld [vmem:[#allocation10 + $0x5e0] sm:$0xff]
    %v1303 = vld [vmem:[#allocation10 + $0x5e8] sm:$0xff]
    %v1304 = vld [vmem:[#allocation10 + $0x5f0] sm:$0xff]
    %v1305 = vld [vmem:[#allocation10 + $0x5f8] sm:$0xff]
    %v1306 = vld [vmem:[#allocation10 + $0x600] sm:$0xff]
    %v1307 = vld [vmem:[#allocation10 + $0x608] sm:$0xff]
    %v1308 = vld [vmem:[#allocation10 + $0x610] sm:$0xff]
    %v1309 = vld [vmem:[#allocation10 + $0x618] sm:$0xff]
    %v1310 = vld [vmem:[#allocation10 + $0x620] sm:$0xff]
    %v1311 = vld [vmem:[#allocation10 + $0x628] sm:$0xff]
    %v1312 = vld [vmem:[#allocation10 + $0x630] sm:$0xff]
    %v1313 = vld [vmem:[#allocation10 + $0x638] sm:$0xff]
    %v1314 = vld [vmem:[#allocation10 + $0x640] sm:$0xff]
    %v1315 = vld [vmem:[#allocation10 + $0x648] sm:$0xff]
    %v1316 = vld [vmem:[#allocation10 + $0x650] sm:$0xff]
    %v1317 = vld [vmem:[#allocation10 + $0x658] sm:$0xff]
    %v1318 = vld [vmem:[#allocation10 + $0x660] sm:$0xff]
    %v1319 = vld [vmem:[#allocation10 + $0x668] sm:$0xff]
    %v1320 = vld [vmem:[#allocation10 + $0x670] sm:$0xff]
    %v1321 = vld [vmem:[#allocation10 + $0x678] sm:$0xff]
    %v1322 = vld [vmem:[#allocation10 + $0x680] sm:$0xff]
    %v1323 = vld [vmem:[#allocation10 + $0x688] sm:$0xff]
    %v1324 = vld [vmem:[#allocation10 + $0x690] sm:$0xff]
    %v1325 = vld [vmem:[#allocation10 + $0x698] sm:$0xff]
    %v1326 = vld [vmem:[#allocation10 + $0x6a0] sm:$0xff]
    %v1327 = vld [vmem:[#allocation10 + $0x6a8] sm:$0xff]
    %v1328 = vld [vmem:[#allocation10 + $0x6b0] sm:$0xff]
    %v1329 = vld [vmem:[#allocation10 + $0x6b8] sm:$0xff]
    %v1330 = vld [vmem:[#allocation10 + $0x6c0] sm:$0xff]
    %v1331 = vld [vmem:[#allocation10 + $0x6c8] sm:$0xff]
    %v1332 = vld [vmem:[#allocation10 + $0x6d0] sm:$0xff]
    %v1333 = vld [vmem:[#allocation10 + $0x6d8] sm:$0xff]
    %v1334 = vld [vmem:[#allocation10 + $0x6e0] sm:$0xff]
    %v1335 = vld [vmem:[#allocation10 + $0x6e8] sm:$0xff]
    %v1336 = vld [vmem:[#allocation10 + $0x6f0] sm:$0xff]
    %v1337 = vld [vmem:[#allocation10 + $0x6f8] sm:$0xff]
    %v1338 = vld [vmem:[#allocation10 + $0x700] sm:$0xff]
    %v1339 = vld [vmem:[#allocation10 + $0x708] sm:$0xff]
    %v1340 = vld [vmem:[#allocation10 + $0x710] sm:$0xff]
    %v1341 = vld [vmem:[#allocation10 + $0x718] sm:$0xff]
    %v1342 = vld [vmem:[#allocation10 + $0x720] sm:$0xff]
    %v1343 = vld [vmem:[#allocation10 + $0x728] sm:$0xff]
    %v1344 = vld [vmem:[#allocation10 + $0x730] sm:$0xff]
    %v1345 = vld [vmem:[#allocation10 + $0x738] sm:$0xff]
    %v1346 = vld [vmem:[#allocation10 + $0x740] sm:$0xff]
    %v1347 = vld [vmem:[#allocation10 + $0x748] sm:$0xff]
    %v1348 = vld [vmem:[#allocation10 + $0x750] sm:$0xff]
    %v1349 = vld [vmem:[#allocation10 + $0x758] sm:$0xff]
    %v1350 = vld [vmem:[#allocation10 + $0x760] sm:$0xff]
    %v1351 = vld [vmem:[#allocation10 + $0x768] sm:$0xff]
    %v1352 = vld [vmem:[#allocation10 + $0x770] sm:$0xff]
    %v1353 = vld [vmem:[#allocation10 + $0x778] sm:$0xff]
    %v1354 = vld [vmem:[#allocation10 + $0x780] sm:$0xff]
    %v1355 = vld [vmem:[#allocation10 + $0x788] sm:$0xff]
    %v1356 = vld [vmem:[#allocation10 + $0x790] sm:$0xff]
    %v1357 = vld [vmem:[#allocation10 + $0x798] sm:$0xff]
    %v1358 = vld [vmem:[#allocation10 + $0x7a0] sm:$0xff]
    %v1359 = vld [vmem:[#allocation10 + $0x7a8] sm:$0xff]
    %v1360 = vld [vmem:[#allocation10 + $0x7b0] sm:$0xff]
    %v1361 = vld [vmem:[#allocation10 + $0x7b8] sm:$0xff]
    %v1362 = vld [vmem:[#allocation10 + $0x7c0] sm:$0xff]
    %v1363 = vld [vmem:[#allocation10 + $0x7c8] sm:$0xff]
    %v1364 = vld [vmem:[#allocation10 + $0x7d0] sm:$0xff]
    %v1365 = vld [vmem:[#allocation10 + $0x7d8] sm:$0xff]
    %v1366 = vld [vmem:[#allocation10 + $0x7e0] sm:$0xff]
    %v1367 = vld [vmem:[#allocation10 + $0x7e8] sm:$0xff]
    %v1368 = vld [vmem:[#allocation10 + $0x7f0] sm:$0xff]
    %v1369 = vld [vmem:[#allocation10 + $0x7f8] sm:$0xff]
    %v1370 = vld [vmem:[#allocation10 + $0x800] sm:$0xff]
    %v1371 = vld [vmem:[#allocation10 + $0x808] sm:$0xff]
    %v1372 = vld [vmem:[#allocation10 + $0x810] sm:$0xff]
    %v1373 = vld [vmem:[#allocation10 + $0x818] sm:$0xff]
    %v1374 = vld [vmem:[#allocation10 + $0x820] sm:$0xff]
    %v1375 = vld [vmem:[#allocation10 + $0x828] sm:$0xff]
    %v1376 = vld [vmem:[#allocation10 + $0x830] sm:$0xff]
    %v1377 = vld [vmem:[#allocation10 + $0x838] sm:$0xff]
    %v1378 = vld [vmem:[#allocation10 + $0x840] sm:$0xff]
    %v1379 = vld [vmem:[#allocation10 + $0x848] sm:$0xff]
    %v1380 = vld [vmem:[#allocation10 + $0x850] sm:$0xff]
    %v1381 = vld [vmem:[#allocation10 + $0x858] sm:$0xff]
    %v1382 = vld [vmem:[#allocation10 + $0x860] sm:$0xff]
    %v1383 = vld [vmem:[#allocation10 + $0x868] sm:$0xff]
    %v1384 = vld [vmem:[#allocation10 + $0x870] sm:$0xff]
    %v1385 = vld [vmem:[#allocation10 + $0x878] sm:$0xff]
    %v1386 = vld [vmem:[#allocation10 + $0x880] sm:$0xff]
    %v1387 = vld [vmem:[#allocation10 + $0x888] sm:$0xff]
    %v1388 = vld [vmem:[#allocation10 + $0x890] sm:$0xff]
    %v1389 = vld [vmem:[#allocation10 + $0x898] sm:$0xff]
    %v1390 = vld [vmem:[#allocation10 + $0x8a0] sm:$0xff]
    %v1391 = vld [vmem:[#allocation10 + $0x8a8] sm:$0xff]
    %v1392 = vld [vmem:[#allocation10 + $0x8b0] sm:$0xff]
    %v1393 = vld [vmem:[#allocation10 + $0x8b8] sm:$0xff]
    %v1394 = vld [vmem:[#allocation10 + $0x8c0] sm:$0xff]
    %v1395 = vld [vmem:[#allocation10 + $0x8c8] sm:$0xff]
    %v1396 = vld [vmem:[#allocation10 + $0x8d0] sm:$0xff]
    %v1397 = vld [vmem:[#allocation10 + $0x8d8] sm:$0xff]
    %v1398 = vld [vmem:[#allocation10 + $0x8e0] sm:$0xff]
    %v1399 = vld [vmem:[#allocation10 + $0x8e8] sm:$0xff]
    %v1400 = vld [vmem:[#allocation10 + $0x8f0] sm:$0xff]
    %v1401 = vld [vmem:[#allocation10 + $0x8f8] sm:$0xff]
    %v1402 = vld [vmem:[#allocation10 + $0x900] sm:$0xff]
    %v1403 = vld [vmem:[#allocation10 + $0x908] sm:$0xff]
    %v1404 = vld [vmem:[#allocation10 + $0x910] sm:$0xff]
    %v1405 = vld [vmem:[#allocation10 + $0x918] sm:$0xff]
    %v1406 = vld [vmem:[#allocation10 + $0x920] sm:$0xff]
    %v1407 = vld [vmem:[#allocation10 + $0x928] sm:$0xff]
    %v1408 = vld [vmem:[#allocation10 + $0x930] sm:$0xff]
    %v1409 = vld [vmem:[#allocation10 + $0x938] sm:$0xff]
    %v1410 = vld [vmem:[#allocation10 + $0x940] sm:$0xff]
    %v1411 = vld [vmem:[#allocation10 + $0x948] sm:$0xff]
    %v1412 = vld [vmem:[#allocation10 + $0x950] sm:$0xff]
    %v1413 = vld [vmem:[#allocation10 + $0x958] sm:$0xff]
    %v1414 = vld [vmem:[#allocation10 + $0x960] sm:$0xff]
    %v1415 = vld [vmem:[#allocation10 + $0x968] sm:$0xff]
    %v1416 = vld [vmem:[#allocation10 + $0x970] sm:$0xff]
    %v1417 = vld [vmem:[#allocation10 + $0x978] sm:$0xff]
    %v1418 = vld [vmem:[#allocation10 + $0x980] sm:$0xff]
    %v1419 = vld [vmem:[#allocation10 + $0x988] sm:$0xff]
    %v1420 = vld [vmem:[#allocation10 + $0x990] sm:$0xff]
    %v1421 = vld [vmem:[#allocation10 + $0x998] sm:$0xff]
    %v1422 = vld [vmem:[#allocation10 + $0x9a0] sm:$0xff]
    %v1423 = vld [vmem:[#allocation10 + $0x9a8] sm:$0xff]
    %v1424 = vld [vmem:[#allocation10 + $0x9b0] sm:$0xff]
    %v1425 = vld [vmem:[#allocation10 + $0x9b8] sm:$0xff]
    %v1426 = vld [vmem:[#allocation10 + $0x9c0] sm:$0xff]
    %v1427 = vld [vmem:[#allocation10 + $0x9c8] sm:$0xff]
    %v1428 = vld [vmem:[#allocation10 + $0x9d0] sm:$0xff]
    %v1429 = vld [vmem:[#allocation10 + $0x9d8] sm:$0xff]
    %v1430 = vld [vmem:[#allocation10 + $0x9e0] sm:$0xff]
    %v1431 = vld [vmem:[#allocation10 + $0x9e8] sm:$0xff]
    %v1432 = vld [vmem:[#allocation10 + $0x9f0] sm:$0xff]
    %v1433 = vld [vmem:[#allocation10 + $0x9f8] sm:$0xff]
    %v1434 = vld [vmem:[#allocation10 + $0xa00] sm:$0xff]
    %v1435 = vld [vmem:[#allocation10 + $0xa08] sm:$0xff]
    %v1436 = vld [vmem:[#allocation10 + $0xa10] sm:$0xff]
    %v1437 = vld [vmem:[#allocation10 + $0xa18] sm:$0xff]
    %v1438 = vld [vmem:[#allocation10 + $0xa20] sm:$0xff]
    %v1439 = vld [vmem:[#allocation10 + $0xa28] sm:$0xff]
    %v1440 = vld [vmem:[#allocation10 + $0xa30] sm:$0xff]
    %v1441 = vld [vmem:[#allocation10 + $0xa38] sm:$0xff]
    %v1442 = vld [vmem:[#allocation10 + $0xa40] sm:$0xff]
    %v1443 = vld [vmem:[#allocation10 + $0xa48] sm:$0xff]
    %v1444 = vld [vmem:[#allocation10 + $0xa50] sm:$0xff]
    %v1445 = vld [vmem:[#allocation10 + $0xa58] sm:$0xff]
    %v1446 = vld [vmem:[#allocation10 + $0xa60] sm:$0xff]
    %v1447 = vld [vmem:[#allocation10 + $0xa68] sm:$0xff]
    %v1448 = vld [vmem:[#allocation10 + $0xa70] sm:$0xff]
    %v1449 = vld [vmem:[#allocation10 + $0xa78] sm:$0xff]
    %v1450 = vld [vmem:[#allocation10 + $0xa80] sm:$0xff]
    %v1451 = vld [vmem:[#allocation10 + $0xa88] sm:$0xff]
    %v1452 = vld [vmem:[#allocation10 + $0xa90] sm:$0xff]
    %v1453 = vld [vmem:[#allocation10 + $0xa98] sm:$0xff]
    %v1454 = vld [vmem:[#allocation10 + $0xaa0] sm:$0xff]
    %v1455 = vld [vmem:[#allocation10 + $0xaa8] sm:$0xff]
    %v1456 = vld [vmem:[#allocation10 + $0xab0] sm:$0xff]
    %v1457 = vld [vmem:[#allocation10 + $0xab8] sm:$0xff]
    %v1458 = vld [vmem:[#allocation10 + $0xac0] sm:$0xff]
    %v1459 = vld [vmem:[#allocation10 + $0xac8] sm:$0xff]
    %v1460 = vld [vmem:[#allocation10 + $0xad0] sm:$0xff]
    %v1461 = vld [vmem:[#allocation10 + $0xad8] sm:$0xff]
    %v1462 = vld [vmem:[#allocation10 + $0xae0] sm:$0xff]
    %v1463 = vld [vmem:[#allocation10 + $0xae8] sm:$0xff]
    %v1464 = vld [vmem:[#allocation10 + $0xaf0] sm:$0xff]
    %v1465 = vld [vmem:[#allocation10 + $0xaf8] sm:$0xff]
    %v1466 = vld [vmem:[#allocation10 + $0xb00] sm:$0xff]
    %v1467 = vld [vmem:[#allocation10 + $0xb08] sm:$0xff]
    %v1468 = vld [vmem:[#allocation10 + $0xb10] sm:$0xff]
    %v1469 = vld [vmem:[#allocation10 + $0xb18] sm:$0xff]
    %v1470 = vld [vmem:[#allocation10 + $0xb20] sm:$0xff]
    %v1471 = vld [vmem:[#allocation10 + $0xb28] sm:$0xff]
    %v1472 = vld [vmem:[#allocation10 + $0xb30] sm:$0xff]
    %v1473 = vld [vmem:[#allocation10 + $0xb38] sm:$0xff]
    %v1474 = vld [vmem:[#allocation10 + $0xb40] sm:$0xff]
    %v1475 = vld [vmem:[#allocation10 + $0xb48] sm:$0xff]
    %v1476 = vld [vmem:[#allocation10 + $0xb50] sm:$0xff]
    %v1477 = vld [vmem:[#allocation10 + $0xb58] sm:$0xff]
    %v1478 = vld [vmem:[#allocation10 + $0xb60] sm:$0xff]
    %v1479 = vld [vmem:[#allocation10 + $0xb68] sm:$0xff]
    %v1480 = vld [vmem:[#allocation10 + $0xb70] sm:$0xff]
    %v1481 = vld [vmem:[#allocation10 + $0xb78] sm:$0xff]
    %v1482 = vld [vmem:[#allocation10 + $0xb80] sm:$0xff]
    %v1483 = vld [vmem:[#allocation10 + $0xb88] sm:$0xff]
    %v1484 = vld [vmem:[#allocation10 + $0xb90] sm:$0xff]
    %v1485 = vld [vmem:[#allocation10 + $0xb98] sm:$0xff]
    %v1486 = vld [vmem:[#allocation10 + $0xba0] sm:$0xff]
    %v1487 = vld [vmem:[#allocation10 + $0xba8] sm:$0xff]
    %v1488 = vld [vmem:[#allocation10 + $0xbb0] sm:$0xff]
    %v1489 = vld [vmem:[#allocation10 + $0xbb8] sm:$0xff]
    %v1490 = vld [vmem:[#allocation10 + $0xbc0] sm:$0xff]
    %v1491 = vld [vmem:[#allocation10 + $0xbc8] sm:$0xff]
    %v1492 = vld [vmem:[#allocation10 + $0xbd0] sm:$0xff]
    %v1493 = vld [vmem:[#allocation10 + $0xbd8] sm:$0xff]
    %v1494 = vld [vmem:[#allocation10 + $0xbe0] sm:$0xff]
    %v1495 = vld [vmem:[#allocation10 + $0xbe8] sm:$0xff]
    %v1496 = vld [vmem:[#allocation10 + $0xbf0] sm:$0xff]
    %v1497 = vld [vmem:[#allocation10 + $0xbf8] sm:$0xff]
    %v1498 = vld [vmem:[#allocation10 + $0xc00] sm:$0xff]
    %v1499 = vld [vmem:[#allocation10 + $0xc08] sm:$0xff]
    %v1500 = vld [vmem:[#allocation10 + $0xc10] sm:$0xff]
    %v1501 = vld [vmem:[#allocation10 + $0xc18] sm:$0xff]
    %v1502 = vld [vmem:[#allocation10 + $0xc20] sm:$0xff]
    %v1503 = vld [vmem:[#allocation10 + $0xc28] sm:$0xff]
    %v1504 = vld [vmem:[#allocation10 + $0xc30] sm:$0xff]
    %v1505 = vld [vmem:[#allocation10 + $0xc38] sm:$0xff]
    %v1506 = vld [vmem:[#allocation10 + $0xc40] sm:$0xff]
    %v1507 = vld [vmem:[#allocation10 + $0xc48] sm:$0xff]
    %v1508 = vld [vmem:[#allocation10 + $0xc50] sm:$0xff]
    %v1509 = vld [vmem:[#allocation10 + $0xc58] sm:$0xff]
    %v1510 = vld [vmem:[#allocation10 + $0xc60] sm:$0xff]
    %v1511 = vld [vmem:[#allocation10 + $0xc68] sm:$0xff]
    %v1512 = vld [vmem:[#allocation10 + $0xc70] sm:$0xff]
    %v1513 = vld [vmem:[#allocation10 + $0xc78] sm:$0xff]
    %v1514 = vld [vmem:[#allocation10 + $0xc80] sm:$0xff]
    %v1515 = vld [vmem:[#allocation10 + $0xc88] sm:$0xff]
    %v1516 = vld [vmem:[#allocation10 + $0xc90] sm:$0xff]
    %v1517 = vld [vmem:[#allocation10 + $0xc98] sm:$0xff]
    %v1518 = vld [vmem:[#allocation10 + $0xca0] sm:$0xff]
    %v1519 = vld [vmem:[#allocation10 + $0xca8] sm:$0xff]
    %v1520 = vld [vmem:[#allocation10 + $0xcb0] sm:$0xff]
    %v1521 = vld [vmem:[#allocation10 + $0xcb8] sm:$0xff]
    %v1522 = vld [vmem:[#allocation10 + $0xcc0] sm:$0xff]
    %v1523 = vld [vmem:[#allocation10 + $0xcc8] sm:$0xff]
    %v1524 = vld [vmem:[#allocation10 + $0xcd0] sm:$0xff]
    %v1525 = vld [vmem:[#allocation10 + $0xcd8] sm:$0xff]
    %v1526 = vld [vmem:[#allocation10 + $0xce0] sm:$0xff]
    %v1527 = vld [vmem:[#allocation10 + $0xce8] sm:$0xff]
    %v1528 = vld [vmem:[#allocation10 + $0xcf0] sm:$0xff]
    %v1529 = vld [vmem:[#allocation10 + $0xcf8] sm:$0xff]
    %v1530 = vld [vmem:[#allocation10 + $0xd00] sm:$0xff]
    %v1531 = vld [vmem:[#allocation10 + $0xd08] sm:$0xff]
    %v1532 = vld [vmem:[#allocation10 + $0xd10] sm:$0xff]
    %v1533 = vld [vmem:[#allocation10 + $0xd18] sm:$0xff]
    %v1534 = vld [vmem:[#allocation10 + $0xd20] sm:$0xff]
    %v1535 = vld [vmem:[#allocation10 + $0xd28] sm:$0xff]
    %v1536 = vld [vmem:[#allocation10 + $0xd30] sm:$0xff]
    %v1537 = vld [vmem:[#allocation10 + $0xd38] sm:$0xff]
    %v1538 = vld [vmem:[#allocation10 + $0xd40] sm:$0xff]
    %v1539 = vld [vmem:[#allocation10 + $0xd48] sm:$0xff]
    %v1540 = vld [vmem:[#allocation10 + $0xd50] sm:$0xff]
    %v1541 = vld [vmem:[#allocation10 + $0xd58] sm:$0xff]
    %v1542 = vld [vmem:[#allocation10 + $0xd60] sm:$0xff]
    %v1543 = vld [vmem:[#allocation10 + $0xd68] sm:$0xff]
    %v1544 = vld [vmem:[#allocation10 + $0xd70] sm:$0xff]
    %v1545 = vld [vmem:[#allocation10 + $0xd78] sm:$0xff]
    %v1546 = vld [vmem:[#allocation10 + $0xd80] sm:$0xff]
    %v1547 = vld [vmem:[#allocation10 + $0xd88] sm:$0xff]
    %v1548 = vld [vmem:[#allocation10 + $0xd90] sm:$0xff]
    %v1549 = vld [vmem:[#allocation10 + $0xd98] sm:$0xff]
    %v1550 = vld [vmem:[#allocation10 + $0xda0] sm:$0xff]
    %v1551 = vld [vmem:[#allocation10 + $0xda8] sm:$0xff]
    %v1552 = vld [vmem:[#allocation10 + $0xdb0] sm:$0xff]
    %v1553 = vld [vmem:[#allocation10 + $0xdb8] sm:$0xff]
    %v1554 = vld [vmem:[#allocation10 + $0xdc0] sm:$0xff]
    %v1555 = vld [vmem:[#allocation10 + $0xdc8] sm:$0xff]
    %v1556 = vld [vmem:[#allocation10 + $0xdd0] sm:$0xff]
    %v1557 = vld [vmem:[#allocation10 + $0xdd8] sm:$0xff]
    %v1558 = vld [vmem:[#allocation10 + $0xde0] sm:$0xff]
    %v1559 = vld [vmem:[#allocation10 + $0xde8] sm:$0xff]
    %v1560 = vld [vmem:[#allocation10 + $0xdf0] sm:$0xff]
    %v1561 = vld [vmem:[#allocation10 + $0xdf8] sm:$0xff]
    %v1562 = vld [vmem:[#allocation10 + $0xe00] sm:$0xff]
    %v1563 = vld [vmem:[#allocation10 + $0xe08] sm:$0xff]
    %v1564 = vld [vmem:[#allocation10 + $0xe10] sm:$0xff]
    %v1565 = vld [vmem:[#allocation10 + $0xe18] sm:$0xff]
    %v1566 = vld [vmem:[#allocation10 + $0xe20] sm:$0xff]
    %v1567 = vld [vmem:[#allocation10 + $0xe28] sm:$0xff]
    %v1568 = vld [vmem:[#allocation10 + $0xe30] sm:$0xff]
    %v1569 = vld [vmem:[#allocation10 + $0xe38] sm:$0xff]
    %v1570 = vld [vmem:[#allocation10 + $0xe40] sm:$0xff]
    %v1571 = vld [vmem:[#allocation10 + $0xe48] sm:$0xff]
    %v1572 = vld [vmem:[#allocation10 + $0xe50] sm:$0xff]
    %v1573 = vld [vmem:[#allocation10 + $0xe58] sm:$0xff]
    %v1574 = vld [vmem:[#allocation10 + $0xe60] sm:$0xff]
    %v1575 = vld [vmem:[#allocation10 + $0xe68] sm:$0xff]
    %v1576 = vld [vmem:[#allocation10 + $0xe70] sm:$0xff]
    %v1577 = vld [vmem:[#allocation10 + $0xe78] sm:$0xff]
    %v1578 = vld [vmem:[#allocation10 + $0xe80] sm:$0xff]
    %v1579 = vld [vmem:[#allocation10 + $0xe88] sm:$0xff]
    %v1580 = vld [vmem:[#allocation10 + $0xe90] sm:$0xff]
    %v1581 = vld [vmem:[#allocation10 + $0xe98] sm:$0xff]
    %v1582 = vld [vmem:[#allocation10 + $0xea0] sm:$0xff]
    %v1583 = vld [vmem:[#allocation10 + $0xea8] sm:$0xff]
    %v1584 = vld [vmem:[#allocation10 + $0xeb0] sm:$0xff]
    %v1585 = vld [vmem:[#allocation10 + $0xeb8] sm:$0xff]
    %v1586 = vld [vmem:[#allocation10 + $0xec0] sm:$0xff]
    %v1587 = vld [vmem:[#allocation10 + $0xec8] sm:$0xff]
    %v1588 = vld [vmem:[#allocation10 + $0xed0] sm:$0xff]
    %v1589 = vld [vmem:[#allocation10 + $0xed8] sm:$0xff]
    %v1590 = vld [vmem:[#allocation10 + $0xee0] sm:$0xff]
    %v1591 = vld [vmem:[#allocation10 + $0xee8] sm:$0xff]
    %v1592 = vld [vmem:[#allocation10 + $0xef0] sm:$0xff]
    %v1593 = vld [vmem:[#allocation10 + $0xef8] sm:$0xff]
    %1594 = vmatpush.msra.mxu0 %v1159
    %1595 = vmatpush.msra.mxu0 %v1156
    %1596 = vmatpush.msra.mxu0 %v1153
    %1597 = vmatpush.msra.mxu0 %v1150
    %1598 = vmatpush.msra.mxu0 %v1147
    %1599 = vmatpush.msra.mxu0 %v1144
    %1600 = vmatpush.msra.mxu0 %v1141
    %1601 = vmatpush.msra.mxu0 %v1138
    %1602 = vmatpush.msra.mxu0 %v1135
    %1603 = vmatpush.msra.mxu0 %v1132
    %1604 = vmatpush.msra.mxu0 %v1129
    %1605 = vmatpush.msra.mxu0 %v1126
    %1606 = vmatpush.msra.mxu0 %v1123
    %1607 = vmatpush.msra.mxu0 %v1120
    %1608 = vmatpush.msra.mxu0 %v1117
    %1609 = vmatpush.msra.mxu0 %v1114
    %1610 = vmatmul.f32.gmra.mxu0 %v1104
    %v1611 = vpop.f32.mrf.mxu0
    %v1612 = vadd.f32 0.0, %v1611
    %1613 = vdwg.mxu0
    %1614 = vmatpush.msra.mxu0 %v1207
    %1615 = vmatpush.msra.mxu0 %v1204
    %1616 = vmatpush.msra.mxu0 %v1201
    %1617 = vmatpush.msra.mxu0 %v1198
    %1618 = vmatpush.msra.mxu0 %v1195
    %1619 = vmatpush.msra.mxu0 %v1192
    %1620 = vmatpush.msra.mxu0 %v1189
    %1621 = vmatpush.msra.mxu0 %v1186
    %1622 = vmatpush.msra.mxu0 %v1183
    %1623 = vmatpush.msra.mxu0 %v1180
    %1624 = vmatpush.msra.mxu0 %v1177
    %1625 = vmatpush.msra.mxu0 %v1174
    %1626 = vmatpush.msra.mxu0 %v1171
    %1627 = vmatpush.msra.mxu0 %v1168
    %1628 = vmatpush.msra.mxu0 %v1165
    %1629 = vmatpush.msra.mxu0 %v1162
    %1630 = vmatmul.f32.gmra.mxu0 %v1105
    %v1631 = vpop.f32.mrf.mxu0
    %v1632 = vadd.f32 %v1612, %v1631
    %1633 = vdwg.mxu0
    %1634 = vmatpush.msra.mxu0 %v1255
    %1635 = vmatpush.msra.mxu0 %v1252
    %1636 = vmatpush.msra.mxu0 %v1249
    %1637 = vmatpush.msra.mxu0 %v1246
    %1638 = vmatpush.msra.mxu0 %v1243
    %1639 = vmatpush.msra.mxu0 %v1240
    %1640 = vmatpush.msra.mxu0 %v1237
    %1641 = vmatpush.msra.mxu0 %v1234
    %1642 = vmatpush.msra.mxu0 %v1231
    %1643 = vmatpush.msra.mxu0 %v1228
    %1644 = vmatpush.msra.mxu0 %v1225
    %1645 = vmatpush.msra.mxu0 %v1222
    %1646 = vmatpush.msra.mxu0 %v1219
    %1647 = vmatpush.msra.mxu0 %v1216
    %1648 = vmatpush.msra.mxu0 %v1213
    %1649 = vmatpush.msra.mxu0 %v1210
    %1650 = vmatmul.f32.gmra.mxu0 %v1106
    %v1651 = vpop.f32.mrf.mxu0
    %v1652 = vadd.f32 %v1632, %v1651
    %1653 = vdwg.mxu0
    %1654 = vmatpush.msra.mxu0 %v1303
    %1655 = vmatpush.msra.mxu0 %v1300
    %1656 = vmatpush.msra.mxu0 %v1297
    %1657 = vmatpush.msra.mxu0 %v1294
    %1658 = vmatpush.msra.mxu0 %v1291
    %1659 = vmatpush.msra.mxu0 %v1288
    %1660 = vmatpush.msra.mxu0 %v1285
    %1661 = vmatpush.msra.mxu0 %v1282
    %1662 = vmatpush.msra.mxu0 %v1279
    %1663 = vmatpush.msra.mxu0 %v1276
    %1664 = vmatpush.msra.mxu0 %v1273
    %1665 = vmatpush.msra.mxu0 %v1270
    %1666 = vmatpush.msra.mxu0 %v1267
    %1667 = vmatpush.msra.mxu0 %v1264
    %1668 = vmatpush.msra.mxu0 %v1261
    %1669 = vmatpush.msra.mxu0 %v1258
    %1670 = vmatmul.f32.gmra.mxu0 %v1107
    %v1671 = vpop.f32.mrf.mxu0
    %v1672 = vadd.f32 %v1652, %v1671
    %1673 = vdwg.mxu0
    %1674 = vmatpush.msra.mxu0 %v1351
    %1675 = vmatpush.msra.mxu0 %v1348
    %1676 = vmatpush.msra.mxu0 %v1345
    %1677 = vmatpush.msra.mxu0 %v1342
    %1678 = vmatpush.msra.mxu0 %v1339
    %1679 = vmatpush.msra.mxu0 %v1336
    %1680 = vmatpush.msra.mxu0 %v1333
    %1681 = vmatpush.msra.mxu0 %v1330
    %1682 = vmatpush.msra.mxu0 %v1327
    %1683 = vmatpush.msra.mxu0 %v1324
    %1684 = vmatpush.msra.mxu0 %v1321
    %1685 = vmatpush.msra.mxu0 %v1318
    %1686 = vmatpush.msra.mxu0 %v1315
    %1687 = vmatpush.msra.mxu0 %v1312
    %1688 = vmatpush.msra.mxu0 %v1309
    %1689 = vmatpush.msra.mxu0 %v1306
    %1690 = vmatmul.f32.gmra.mxu0 %v1108
    %v1691 = vpop.f32.mrf.mxu0
    %v1692 = vadd.f32 %v1672, %v1691
    %1693 = vdwg.mxu0
    %1694 = vmatpush.msra.mxu0 %v1399
    %1695 = vmatpush.msra.mxu0 %v1396
    %1696 = vmatpush.msra.mxu0 %v1393
    %1697 = vmatpush.msra.mxu0 %v1390
    %1698 = vmatpush.msra.mxu0 %v1387
    %1699 = vmatpush.msra.mxu0 %v1384
    %1700 = vmatpush.msra.mxu0 %v1381
    %1701 = vmatpush.msra.mxu0 %v1378
    %1702 = vmatpush.msra.mxu0 %v1375
    %1703 = vmatpush.msra.mxu0 %v1372
    %1704 = vmatpush.msra.mxu0 %v1369
    %1705 = vmatpush.msra.mxu0 %v1366
    %1706 = vmatpush.msra.mxu0 %v1363
    %1707 = vmatpush.msra.mxu0 %v1360
    %1708 = vmatpush.msra.mxu0 %v1357
    %1709 = vmatpush.msra.mxu0 %v1354
    %1710 = vmatmul.f32.gmra.mxu0 %v1109
    %v1711 = vpop.f32.mrf.mxu0
    %v1712 = vadd.f32 %v1692, %v1711
    %1713 = vdwg.mxu0
    %1714 = vmatpush.msra.mxu0 %v1447
    %1715 = vmatpush.msra.mxu0 %v1444
    %1716 = vmatpush.msra.mxu0 %v1441
    %1717 = vmatpush.msra.mxu0 %v1438
    %1718 = vmatpush.msra.mxu0 %v1435
    %1719 = vmatpush.msra.mxu0 %v1432
    %1720 = vmatpush.msra.mxu0 %v1429
    %1721 = vmatpush.msra.mxu0 %v1426
    %1722 = vmatpush.msra.mxu0 %v1423
    %1723 = vmatpush.msra.mxu0 %v1420
    %1724 = vmatpush.msra.mxu0 %v1417
    %1725 = vmatpush.msra.mxu0 %v1414
    %1726 = vmatpush.msra.mxu0 %v1411
    %1727 = vmatpush.msra.mxu0 %v1408
    %1728 = vmatpush.msra.mxu0 %v1405
    %1729 = vmatpush.msra.mxu0 %v1402
    %1730 = vmatmul.f32.gmra.mxu0 %v1110
    %v1731 = vpop.f32.mrf.mxu0
    %v1732 = vadd.f32 %v1712, %v1731
    %1733 = vdwg.mxu0
    %1734 = vmatpush.msra.mxu0 %v1495
    %1735 = vmatpush.msra.mxu0 %v1492
    %1736 = vmatpush.msra.mxu0 %v1489
    %1737 = vmatpush.msra.mxu0 %v1486
    %1738 = vmatpush.msra.mxu0 %v1483
    %1739 = vmatpush.msra.mxu0 %v1480
    %1740 = vmatpush.msra.mxu0 %v1477
    %1741 = vmatpush.msra.mxu0 %v1474
    %1742 = vmatpush.msra.mxu0 %v1471
    %1743 = vmatpush.msra.mxu0 %v1468
    %1744 = vmatpush.msra.mxu0 %v1465
    %1745 = vmatpush.msra.mxu0 %v1462
    %1746 = vmatpush.msra.mxu0 %v1459
    %1747 = vmatpush.msra.mxu0 %v1456
    %1748 = vmatpush.msra.mxu0 %v1453
    %1749 = vmatpush.msra.mxu0 %v1450
    %1750 = vmatmul.f32.gmra.mxu0 %v1111
    %v1751 = vpop.f32.mrf.mxu0
    %v1752 = vadd.f32 %v1732, %v1751
    %1753 = vdwg.mxu0
    %1754 = vmatpush.msra.mxu0 %v1543
    %1755 = vmatpush.msra.mxu0 %v1540
    %1756 = vmatpush.msra.mxu0 %v1537
    %1757 = vmatpush.msra.mxu0 %v1534
    %1758 = vmatpush.msra.mxu0 %v1531
    %1759 = vmatpush.msra.mxu0 %v1528
    %1760 = vmatpush.msra.mxu0 %v1525
    %1761 = vmatpush.msra.mxu0 %v1522
    %1762 = vmatpush.msra.mxu0 %v1519
    %1763 = vmatpush.msra.mxu0 %v1516
    %1764 = vmatpush.msra.mxu0 %v1513
    %1765 = vmatpush.msra.mxu0 %v1510
    %1766 = vmatpush.msra.mxu0 %v1507
    %1767 = vmatpush.msra.mxu0 %v1504
    %1768 = vmatpush.msra.mxu0 %v1501
    %1769 = vmatpush.msra.mxu0 %v1498
    %1770 = vmatmul.f32.gmra.mxu0 %v1112
    %v1771 = vpop.f32.mrf.mxu0
    %v1772 = vadd.f32 %v1752, %v1771
    %1773 = vdwg.mxu0
    %1774 = vmatpush.msra.mxu0 %v1591
    %1775 = vmatpush.msra.mxu0 %v1588
    %1776 = vmatpush.msra.mxu0 %v1585
    %1777 = vmatpush.msra.mxu0 %v1582
    %1778 = vmatpush.msra.mxu0 %v1579
    %1779 = vmatpush.msra.mxu0 %v1576
    %1780 = vmatpush.msra.mxu0 %v1573
    %1781 = vmatpush.msra.mxu0 %v1570
    %1782 = vmatpush.msra.mxu0 %v1567
    %1783 = vmatpush.msra.mxu0 %v1564
    %1784 = vmatpush.msra.mxu0 %v1561
    %1785 = vmatpush.msra.mxu0 %v1558
    %1786 = vmatpush.msra.mxu0 %v1555
    %1787 = vmatpush.msra.mxu0 %v1552
    %1788 = vmatpush.msra.mxu0 %v1549
    %1789 = vmatpush.msra.mxu0 %v1546
    %1790 = vmatmul.f32.gmra.mxu0 %v1113
    %v1791 = vpop.f32.mrf.mxu0
    %v1792 = vadd.f32 %v1772, %v1791
    %1793 = vdwg.mxu0
    %1794 = vmatpush.msra.mxu0 %v1160
    %1795 = vmatpush.msra.mxu0 %v1157
    %1796 = vmatpush.msra.mxu0 %v1154
    %1797 = vmatpush.msra.mxu0 %v1151
    %1798 = vmatpush.msra.mxu0 %v1148
    %1799 = vmatpush.msra.mxu0 %v1145
    %1800 = vmatpush.msra.mxu0 %v1142
    %1801 = vmatpush.msra.mxu0 %v1139
    %1802 = vmatpush.msra.mxu0 %v1136
    %1803 = vmatpush.msra.mxu0 %v1133
    %1804 = vmatpush.msra.mxu0 %v1130
    %1805 = vmatpush.msra.mxu0 %v1127
    %1806 = vmatpush.msra.mxu0 %v1124
    %1807 = vmatpush.msra.mxu0 %v1121
    %1808 = vmatpush.msra.mxu0 %v1118
    %1809 = vmatpush.msra.mxu0 %v1115
    %1810 = vmatmul.f32.gmra.mxu0 %v1104
    %v1811 = vpop.f32.mrf.mxu0
    %v1812 = vadd.f32 0.0, %v1811
    %1813 = vdwg.mxu0
    %1814 = vmatpush.msra.mxu0 %v1208
    %1815 = vmatpush.msra.mxu0 %v1205
    %1816 = vmatpush.msra.mxu0 %v1202
    %1817 = vmatpush.msra.mxu0 %v1199
    %1818 = vmatpush.msra.mxu0 %v1196
    %1819 = vmatpush.msra.mxu0 %v1193
    %1820 = vmatpush.msra.mxu0 %v1190
    %1821 = vmatpush.msra.mxu0 %v1187
    %1822 = vmatpush.msra.mxu0 %v1184
    %1823 = vmatpush.msra.mxu0 %v1181
    %1824 = vmatpush.msra.mxu0 %v1178
    %1825 = vmatpush.msra.mxu0 %v1175
    %1826 = vmatpush.msra.mxu0 %v1172
    %1827 = vmatpush.msra.mxu0 %v1169
    %1828 = vmatpush.msra.mxu0 %v1166
    %1829 = vmatpush.msra.mxu0 %v1163
    %1830 = vmatmul.f32.gmra.mxu0 %v1105
    %v1831 = vpop.f32.mrf.mxu0
    %v1832 = vadd.f32 %v1812, %v1831
    %1833 = vdwg.mxu0
    %1834 = vmatpush.msra.mxu0 %v1256
    %1835 = vmatpush.msra.mxu0 %v1253
    %1836 = vmatpush.msra.mxu0 %v1250
    %1837 = vmatpush.msra.mxu0 %v1247
    %1838 = vmatpush.msra.mxu0 %v1244
    %1839 = vmatpush.msra.mxu0 %v1241
    %1840 = vmatpush.msra.mxu0 %v1238
    %1841 = vmatpush.msra.mxu0 %v1235
    %1842 = vmatpush.msra.mxu0 %v1232
    %1843 = vmatpush.msra.mxu0 %v1229
    %1844 = vmatpush.msra.mxu0 %v1226
    %1845 = vmatpush.msra.mxu0 %v1223
    %1846 = vmatpush.msra.mxu0 %v1220
    %1847 = vmatpush.msra.mxu0 %v1217
    %1848 = vmatpush.msra.mxu0 %v1214
    %1849 = vmatpush.msra.mxu0 %v1211
    %1850 = vmatmul.f32.gmra.mxu0 %v1106
    %v1851 = vpop.f32.mrf.mxu0
    %v1852 = vadd.f32 %v1832, %v1851
    %1853 = vdwg.mxu0
    %1854 = vmatpush.msra.mxu0 %v1304
    %1855 = vmatpush.msra.mxu0 %v1301
    %1856 = vmatpush.msra.mxu0 %v1298
    %1857 = vmatpush.msra.mxu0 %v1295
    %1858 = vmatpush.msra.mxu0 %v1292
    %1859 = vmatpush.msra.mxu0 %v1289
    %1860 = vmatpush.msra.mxu0 %v1286
    %1861 = vmatpush.msra.mxu0 %v1283
    %1862 = vmatpush.msra.mxu0 %v1280
    %1863 = vmatpush.msra.mxu0 %v1277
    %1864 = vmatpush.msra.mxu0 %v1274
    %1865 = vmatpush.msra.mxu0 %v1271
    %1866 = vmatpush.msra.mxu0 %v1268
    %1867 = vmatpush.msra.mxu0 %v1265
    %1868 = vmatpush.msra.mxu0 %v1262
    %1869 = vmatpush.msra.mxu0 %v1259
    %1870 = vmatmul.f32.gmra.mxu0 %v1107
    %v1871 = vpop.f32.mrf.mxu0
    %v1872 = vadd.f32 %v1852, %v1871
    %1873 = vdwg.mxu0
    %1874 = vmatpush.msra.mxu0 %v1352
    %1875 = vmatpush.msra.mxu0 %v1349
    %1876 = vmatpush.msra.mxu0 %v1346
    %1877 = vmatpush.msra.mxu0 %v1343
    %1878 = vmatpush.msra.mxu0 %v1340
    %1879 = vmatpush.msra.mxu0 %v1337
    %1880 = vmatpush.msra.mxu0 %v1334
    %1881 = vmatpush.msra.mxu0 %v1331
    %1882 = vmatpush.msra.mxu0 %v1328
    %1883 = vmatpush.msra.mxu0 %v1325
    %1884 = vmatpush.msra.mxu0 %v1322
    %1885 = vmatpush.msra.mxu0 %v1319
    %1886 = vmatpush.msra.mxu0 %v1316
    %1887 = vmatpush.msra.mxu0 %v1313
    %1888 = vmatpush.msra.mxu0 %v1310
    %1889 = vmatpush.msra.mxu0 %v1307
    %1890 = vmatmul.f32.gmra.mxu0 %v1108
    %v1891 = vpop.f32.mrf.mxu0
    %v1892 = vadd.f32 %v1872, %v1891
    %1893 = vdwg.mxu0
    %1894 = vmatpush.msra.mxu0 %v1400
    %1895 = vmatpush.msra.mxu0 %v1397
    %1896 = vmatpush.msra.mxu0 %v1394
    %1897 = vmatpush.msra.mxu0 %v1391
    %1898 = vmatpush.msra.mxu0 %v1388
    %1899 = vmatpush.msra.mxu0 %v1385
    %1900 = vmatpush.msra.mxu0 %v1382
    %1901 = vmatpush.msra.mxu0 %v1379
    %1902 = vmatpush.msra.mxu0 %v1376
    %1903 = vmatpush.msra.mxu0 %v1373
    %1904 = vmatpush.msra.mxu0 %v1370
    %1905 = vmatpush.msra.mxu0 %v1367
    %1906 = vmatpush.msra.mxu0 %v1364
    %1907 = vmatpush.msra.mxu0 %v1361
    %1908 = vmatpush.msra.mxu0 %v1358
    %1909 = vmatpush.msra.mxu0 %v1355
    %1910 = vmatmul.f32.gmra.mxu0 %v1109
    %v1911 = vpop.f32.mrf.mxu0
    %v1912 = vadd.f32 %v1892, %v1911
    %1913 = vdwg.mxu0
    %1914 = vmatpush.msra.mxu0 %v1448
    %1915 = vmatpush.msra.mxu0 %v1445
    %1916 = vmatpush.msra.mxu0 %v1442
    %1917 = vmatpush.msra.mxu0 %v1439
    %1918 = vmatpush.msra.mxu0 %v1436
    %1919 = vmatpush.msra.mxu0 %v1433
    %1920 = vmatpush.msra.mxu0 %v1430
    %1921 = vmatpush.msra.mxu0 %v1427
    %1922 = vmatpush.msra.mxu0 %v1424
    %1923 = vmatpush.msra.mxu0 %v1421
    %1924 = vmatpush.msra.mxu0 %v1418
    %1925 = vmatpush.msra.mxu0 %v1415
    %1926 = vmatpush.msra.mxu0 %v1412
    %1927 = vmatpush.msra.mxu0 %v1409
    %1928 = vmatpush.msra.mxu0 %v1406
    %1929 = vmatpush.msra.mxu0 %v1403
    %1930 = vmatmul.f32.gmra.mxu0 %v1110
    %v1931 = vpop.f32.mrf.mxu0
    %v1932 = vadd.f32 %v1912, %v1931
    %1933 = vdwg.mxu0
    %1934 = vmatpush.msra.mxu0 %v1496
    %1935 = vmatpush.msra.mxu0 %v1493
    %1936 = vmatpush.msra.mxu0 %v1490
    %1937 = vmatpush.msra.mxu0 %v1487
    %1938 = vmatpush.msra.mxu0 %v1484
    %1939 = vmatpush.msra.mxu0 %v1481
    %1940 = vmatpush.msra.mxu0 %v1478
    %1941 = vmatpush.msra.mxu0 %v1475
    %1942 = vmatpush.msra.mxu0 %v1472
    %1943 = vmatpush.msra.mxu0 %v1469
    %1944 = vmatpush.msra.mxu0 %v1466
    %1945 = vmatpush.msra.mxu0 %v1463
    %1946 = vmatpush.msra.mxu0 %v1460
    %1947 = vmatpush.msra.mxu0 %v1457
    %1948 = vmatpush.msra.mxu0 %v1454
    %1949 = vmatpush.msra.mxu0 %v1451
    %1950 = vmatmul.f32.gmra.mxu0 %v1111
    %v1951 = vpop.f32.mrf.mxu0
    %v1952 = vadd.f32 %v1932, %v1951
    %1953 = vdwg.mxu0
    %1954 = vmatpush.msra.mxu0 %v1544
    %1955 = vmatpush.msra.mxu0 %v1541
    %1956 = vmatpush.msra.mxu0 %v1538
    %1957 = vmatpush.msra.mxu0 %v1535
    %1958 = vmatpush.msra.mxu0 %v1532
    %1959 = vmatpush.msra.mxu0 %v1529
    %1960 = vmatpush.msra.mxu0 %v1526
    %1961 = vmatpush.msra.mxu0 %v1523
    %1962 = vmatpush.msra.mxu0 %v1520
    %1963 = vmatpush.msra.mxu0 %v1517
    %1964 = vmatpush.msra.mxu0 %v1514
    %1965 = vmatpush.msra.mxu0 %v1511
    %1966 = vmatpush.msra.mxu0 %v1508
    %1967 = vmatpush.msra.mxu0 %v1505
    %1968 = vmatpush.msra.mxu0 %v1502
    %1969 = vmatpush.msra.mxu0 %v1499
    %1970 = vmatmul.f32.gmra.mxu0 %v1112
    %v1971 = vpop.f32.mrf.mxu0
    %v1972 = vadd.f32 %v1952, %v1971
    %1973 = vdwg.mxu0
    %1974 = vmatpush.msra.mxu0 %v1592
    %1975 = vmatpush.msra.mxu0 %v1589
    %1976 = vmatpush.msra.mxu0 %v1586
    %1977 = vmatpush.msra.mxu0 %v1583
    %1978 = vmatpush.msra.mxu0 %v1580
    %1979 = vmatpush.msra.mxu0 %v1577
    %1980 = vmatpush.msra.mxu0 %v1574
    %1981 = vmatpush.msra.mxu0 %v1571
    %1982 = vmatpush.msra.mxu0 %v1568
    %1983 = vmatpush.msra.mxu0 %v1565
    %1984 = vmatpush.msra.mxu0 %v1562
    %1985 = vmatpush.msra.mxu0 %v1559
    %1986 = vmatpush.msra.mxu0 %v1556
    %1987 = vmatpush.msra.mxu0 %v1553
    %1988 = vmatpush.msra.mxu0 %v1550
    %1989 = vmatpush.msra.mxu0 %v1547
    %1990 = vmatmul.f32.gmra.mxu0 %v1113
    %v1991 = vpop.f32.mrf.mxu0
    %v1992 = vadd.f32 %v1972, %v1991
    %1993 = vdwg.mxu0
    %1994 = vmatpush.msra.mxu0 %v1161
    %1995 = vmatpush.msra.mxu0 %v1158
    %1996 = vmatpush.msra.mxu0 %v1155
    %1997 = vmatpush.msra.mxu0 %v1152
    %1998 = vmatpush.msra.mxu0 %v1149
    %1999 = vmatpush.msra.mxu0 %v1146
    %2000 = vmatpush.msra.mxu0 %v1143
    %2001 = vmatpush.msra.mxu0 %v1140
    %2002 = vmatpush.msra.mxu0 %v1137
    %2003 = vmatpush.msra.mxu0 %v1134
    %2004 = vmatpush.msra.mxu0 %v1131
    %2005 = vmatpush.msra.mxu0 %v1128
    %2006 = vmatpush.msra.mxu0 %v1125
    %2007 = vmatpush.msra.mxu0 %v1122
    %2008 = vmatpush.msra.mxu0 %v1119
    %2009 = vmatpush.msra.mxu0 %v1116
    %2010 = vmatmul.f32.gmra.mxu0 %v1104
    %v2011 = vpop.f32.mrf.mxu0
    %v2012 = vadd.f32 0.0, %v2011
    %2013 = vdwg.mxu0
    %2014 = vmatpush.msra.mxu0 %v1209
    %2015 = vmatpush.msra.mxu0 %v1206
    %2016 = vmatpush.msra.mxu0 %v1203
    %2017 = vmatpush.msra.mxu0 %v1200
    %2018 = vmatpush.msra.mxu0 %v1197
    %2019 = vmatpush.msra.mxu0 %v1194
    %2020 = vmatpush.msra.mxu0 %v1191
    %2021 = vmatpush.msra.mxu0 %v1188
    %2022 = vmatpush.msra.mxu0 %v1185
    %2023 = vmatpush.msra.mxu0 %v1182
    %2024 = vmatpush.msra.mxu0 %v1179
    %2025 = vmatpush.msra.mxu0 %v1176
    %2026 = vmatpush.msra.mxu0 %v1173
    %2027 = vmatpush.msra.mxu0 %v1170
    %2028 = vmatpush.msra.mxu0 %v1167
    %2029 = vmatpush.msra.mxu0 %v1164
    %2030 = vmatmul.f32.gmra.mxu0 %v1105
    %v2031 = vpop.f32.mrf.mxu0
    %v2032 = vadd.f32 %v2012, %v2031
    %2033 = vdwg.mxu0
    %2034 = vmatpush.msra.mxu0 %v1257
    %2035 = vmatpush.msra.mxu0 %v1254
    %2036 = vmatpush.msra.mxu0 %v1251
    %2037 = vmatpush.msra.mxu0 %v1248
    %2038 = vmatpush.msra.mxu0 %v1245
    %2039 = vmatpush.msra.mxu0 %v1242
    %2040 = vmatpush.msra.mxu0 %v1239
    %2041 = vmatpush.msra.mxu0 %v1236
    %2042 = vmatpush.msra.mxu0 %v1233
    %2043 = vmatpush.msra.mxu0 %v1230
    %2044 = vmatpush.msra.mxu0 %v1227
    %2045 = vmatpush.msra.mxu0 %v1224
    %2046 = vmatpush.msra.mxu0 %v1221
    %2047 = vmatpush.msra.mxu0 %v1218
    %2048 = vmatpush.msra.mxu0 %v1215
    %2049 = vmatpush.msra.mxu0 %v1212
    %2050 = vmatmul.f32.gmra.mxu0 %v1106
    %v2051 = vpop.f32.mrf.mxu0
    %v2052 = vadd.f32 %v2032, %v2051
    %2053 = vdwg.mxu0
    %2054 = vmatpush.msra.mxu0 %v1305
    %2055 = vmatpush.msra.mxu0 %v1302
    %2056 = vmatpush.msra.mxu0 %v1299
    %2057 = vmatpush.msra.mxu0 %v1296
    %2058 = vmatpush.msra.mxu0 %v1293
    %2059 = vmatpush.msra.mxu0 %v1290
    %2060 = vmatpush.msra.mxu0 %v1287
    %2061 = vmatpush.msra.mxu0 %v1284
    %2062 = vmatpush.msra.mxu0 %v1281
    %2063 = vmatpush.msra.mxu0 %v1278
    %2064 = vmatpush.msra.mxu0 %v1275
    %2065 = vmatpush.msra.mxu0 %v1272
    %2066 = vmatpush.msra.mxu0 %v1269
    %2067 = vmatpush.msra.mxu0 %v1266
    %2068 = vmatpush.msra.mxu0 %v1263
    %2069 = vmatpush.msra.mxu0 %v1260
    %2070 = vmatmul.f32.gmra.mxu0 %v1107
    %v2071 = vpop.f32.mrf.mxu0
    %v2072 = vadd.f32 %v2052, %v2071
    %2073 = vdwg.mxu0
    %2074 = vmatpush.msra.mxu0 %v1353
    %2075 = vmatpush.msra.mxu0 %v1350
    %2076 = vmatpush.msra.mxu0 %v1347
    %2077 = vmatpush.msra.mxu0 %v1344
    %2078 = vmatpush.msra.mxu0 %v1341
    %2079 = vmatpush.msra.mxu0 %v1338
    %2080 = vmatpush.msra.mxu0 %v1335
    %2081 = vmatpush.msra.mxu0 %v1332
    %2082 = vmatpush.msra.mxu0 %v1329
    %2083 = vmatpush.msra.mxu0 %v1326
    %2084 = vmatpush.msra.mxu0 %v1323
    %2085 = vmatpush.msra.mxu0 %v1320
    %2086 = vmatpush.msra.mxu0 %v1317
    %2087 = vmatpush.msra.mxu0 %v1314
    %2088 = vmatpush.msra.mxu0 %v1311
    %2089 = vmatpush.msra.mxu0 %v1308
    %2090 = vmatmul.f32.gmra.mxu0 %v1108
    %v2091 = vpop.f32.mrf.mxu0
    %v2092 = vadd.f32 %v2072, %v2091
    %2093 = vdwg.mxu0
    %2094 = vmatpush.msra.mxu0 %v1401
    %2095 = vmatpush.msra.mxu0 %v1398
    %2096 = vmatpush.msra.mxu0 %v1395
    %2097 = vmatpush.msra.mxu0 %v1392
    %2098 = vmatpush.msra.mxu0 %v1389
    %2099 = vmatpush.msra.mxu0 %v1386
    %2100 = vmatpush.msra.mxu0 %v1383
    %2101 = vmatpush.msra.mxu0 %v1380
    %2102 = vmatpush.msra.mxu0 %v1377
    %2103 = vmatpush.msra.mxu0 %v1374
    %2104 = vmatpush.msra.mxu0 %v1371
    %2105 = vmatpush.msra.mxu0 %v1368
    %2106 = vmatpush.msra.mxu0 %v1365
    %2107 = vmatpush.msra.mxu0 %v1362
    %2108 = vmatpush.msra.mxu0 %v1359
    %2109 = vmatpush.msra.mxu0 %v1356
    %2110 = vmatmul.f32.gmra.mxu0 %v1109
    %v2111 = vpop.f32.mrf.mxu0
    %v2112 = vadd.f32 %v2092, %v2111
    %2113 = vdwg.mxu0
    %2114 = vmatpush.msra.mxu0 %v1449
    %2115 = vmatpush.msra.mxu0 %v1446
    %2116 = vmatpush.msra.mxu0 %v1443
    %2117 = vmatpush.msra.mxu0 %v1440
    %2118 = vmatpush.msra.mxu0 %v1437
    %2119 = vmatpush.msra.mxu0 %v1434
    %2120 = vmatpush.msra.mxu0 %v1431
    %2121 = vmatpush.msra.mxu0 %v1428
    %2122 = vmatpush.msra.mxu0 %v1425
    %2123 = vmatpush.msra.mxu0 %v1422
    %2124 = vmatpush.msra.mxu0 %v1419
    %2125 = vmatpush.msra.mxu0 %v1416
    %2126 = vmatpush.msra.mxu0 %v1413
    %2127 = vmatpush.msra.mxu0 %v1410
    %2128 = vmatpush.msra.mxu0 %v1407
    %2129 = vmatpush.msra.mxu0 %v1404
    %2130 = vmatmul.f32.gmra.mxu0 %v1110
    %v2131 = vpop.f32.mrf.mxu0
    %v2132 = vadd.f32 %v2112, %v2131
    %2133 = vdwg.mxu0
    %2134 = vmatpush.msra.mxu0 %v1497
    %2135 = vmatpush.msra.mxu0 %v1494
    %2136 = vmatpush.msra.mxu0 %v1491
    %2137 = vmatpush.msra.mxu0 %v1488
    %2138 = vmatpush.msra.mxu0 %v1485
    %2139 = vmatpush.msra.mxu0 %v1482
    %2140 = vmatpush.msra.mxu0 %v1479
    %2141 = vmatpush.msra.mxu0 %v1476
    %2142 = vmatpush.msra.mxu0 %v1473
    %2143 = vmatpush.msra.mxu0 %v1470
    %2144 = vmatpush.msra.mxu0 %v1467
    %2145 = vmatpush.msra.mxu0 %v1464
    %2146 = vmatpush.msra.mxu0 %v1461
    %2147 = vmatpush.msra.mxu0 %v1458
    %2148 = vmatpush.msra.mxu0 %v1455
    %2149 = vmatpush.msra.mxu0 %v1452
    %2150 = vmatmul.f32.gmra.mxu0 %v1111
    %v2151 = vpop.f32.mrf.mxu0
    %v2152 = vadd.f32 %v2132, %v2151
    %2153 = vdwg.mxu0
    %2154 = vmatpush.msra.mxu0 %v1545
    %2155 = vmatpush.msra.mxu0 %v1542
    %2156 = vmatpush.msra.mxu0 %v1539
    %2157 = vmatpush.msra.mxu0 %v1536
    %2158 = vmatpush.msra.mxu0 %v1533
    %2159 = vmatpush.msra.mxu0 %v1530
    %2160 = vmatpush.msra.mxu0 %v1527
    %2161 = vmatpush.msra.mxu0 %v1524
    %2162 = vmatpush.msra.mxu0 %v1521
    %2163 = vmatpush.msra.mxu0 %v1518
    %2164 = vmatpush.msra.mxu0 %v1515
    %2165 = vmatpush.msra.mxu0 %v1512
    %2166 = vmatpush.msra.mxu0 %v1509
    %2167 = vmatpush.msra.mxu0 %v1506
    %2168 = vmatpush.msra.mxu0 %v1503
    %2169 = vmatpush.msra.mxu0 %v1500
    %2170 = vmatmul.f32.gmra.mxu0 %v1112
    %v2171 = vpop.f32.mrf.mxu0
    %v2172 = vadd.f32 %v2152, %v2171
    %2173 = vdwg.mxu0
    %2174 = vmatpush.msra.mxu0 %v1593
    %2175 = vmatpush.msra.mxu0 %v1590
    %2176 = vmatpush.msra.mxu0 %v1587
    %2177 = vmatpush.msra.mxu0 %v1584
    %2178 = vmatpush.msra.mxu0 %v1581
    %2179 = vmatpush.msra.mxu0 %v1578
    %2180 = vmatpush.msra.mxu0 %v1575
    %2181 = vmatpush.msra.mxu0 %v1572
    %2182 = vmatpush.msra.mxu0 %v1569
    %2183 = vmatpush.msra.mxu0 %v1566
    %2184 = vmatpush.msra.mxu0 %v1563
    %2185 = vmatpush.msra.mxu0 %v1560
    %2186 = vmatpush.msra.mxu0 %v1557
    %2187 = vmatpush.msra.mxu0 %v1554
    %2188 = vmatpush.msra.mxu0 %v1551
    %2189 = vmatpush.msra.mxu0 %v1548
    %2190 = vmatmul.f32.gmra.mxu0 %v1113
    %v2191 = vpop.f32.mrf.mxu0
    %v2192 = vadd.f32 %v2172, %v2191
    %2193 = vdwg.mxu0
    %2194 = vrot.lane.b32.xlu0 %v1792, 19
    %v2195 = vpop.permute.xlu0 %2194
    %2196 = vrot.lane.b32.xlu0 %v1992, 19
    %v2197 = vpop.permute.xlu0 %2196
    %2198 = vrot.lane.b32.xlu0 %v2192, 19
    %v2199 = vpop.permute.xlu0 %2198
    %vm2200 = vcmp.lt.s32.totalorder %v969, 19
    %v2201 = vsel %vm2200, %v2197, %v2199
    %v2202 = vsel %vm2200, %v2195, %v2197
    %v2203 = vsel %vm2200, %v2199, %v2195
    %2204 = vrot.lane.b32.xlu0 %v1792, 18
    %v2205 = vpop.permute.xlu0 %2204
    %2206 = vrot.lane.b32.xlu0 %v1992, 18
    %v2207 = vpop.permute.xlu0 %2206
    %2208 = vrot.lane.b32.xlu0 %v2192, 18
    %v2209 = vpop.permute.xlu0 %2208
    %vm2210 = vcmp.lt.s32.totalorder %v969, 18
    %v2211 = vsel %vm2210, %v2207, %v2209
    %v2212 = vsel %vm2210, %v2205, %v2207
    %v2213 = vsel %vm2210, %v2209, %v2205
    %2214 = vrot.lane.b32.xlu0 %v1792, 17
    %v2215 = vpop.permute.xlu0 %2214
    %2216 = vrot.lane.b32.xlu0 %v1992, 17
    %v2217 = vpop.permute.xlu0 %2216
    %2218 = vrot.lane.b32.xlu0 %v2192, 17
    %v2219 = vpop.permute.xlu0 %2218
    %vm2220 = vcmp.lt.s32.totalorder %v969, 17
    %v2221 = vsel %vm2220, %v2217, %v2219
    %v2222 = vsel %vm2220, %v2215, %v2217
    %v2223 = vsel %vm2220, %v2219, %v2215
    %2224 = vrot.lane.b32.xlu0 %v1792, 1
    %v2225 = vpop.permute.xlu0 %2224
    %2226 = vrot.lane.b32.xlu0 %v1992, 1
    %v2227 = vpop.permute.xlu0 %2226
    %2228 = vrot.lane.b32.xlu0 %v2192, 1
    %v2229 = vpop.permute.xlu0 %2228
    %v2230 = vsel %vm1093, %v2227, %v2229
    %v2231 = vsel %vm1093, %v2225, %v2227
    %v2232 = vsel %vm1093, %v2229, %v2225
    %2233 = vrot.lane.b32.xlu0 %v1792, 127
    %v2234 = vpop.permute.xlu0 %2233
    %2235 = vrot.lane.b32.xlu0 %v1992, 127
    %v2236 = vpop.permute.xlu0 %2235
    %2237 = vrot.lane.b32.xlu0 %v2192, 127
    %v2238 = vpop.permute.xlu0 %2237
    %v2239 = vsel %vm1052, %v2236, %v2238
    %v2240 = vsel %vm1052, %v2234, %v2236
    %v2241 = vsel %vm1052, %v2238, %v2234
    %2242 = vrot.lane.b32.xlu0 %v1792, 111
    %v2243 = vpop.permute.xlu0 %2242
    %2244 = vrot.lane.b32.xlu0 %v1992, 111
    %v2245 = vpop.permute.xlu0 %2244
    %2246 = vrot.lane.b32.xlu0 %v2192, 111
    %v2247 = vpop.permute.xlu0 %2246
    %vm2248 = vcmp.lt.s32.totalorder %v969, 111
    %v2249 = vsel %vm2248, %v2245, %v2247
    %v2250 = vsel %vm2248, %v2243, %v2245
    %v2251 = vsel %vm2248, %v2247, %v2243
    %2252 = vrot.lane.b32.xlu0 %v1792, 110
    %v2253 = vpop.permute.xlu0 %2252
    %2254 = vrot.lane.b32.xlu0 %v1992, 110
    %v2255 = vpop.permute.xlu0 %2254
    %2256 = vrot.lane.b32.xlu0 %v2192, 110
    %v2257 = vpop.permute.xlu0 %2256
    %vm2258 = vcmp.lt.s32.totalorder %v969, 110
    %v2259 = vsel %vm2258, %v2255, %v2257
    %v2260 = vsel %vm2258, %v2253, %v2255
    %v2261 = vsel %vm2258, %v2257, %v2253
    %2262 = vrot.lane.b32.xlu0 %v1792, 109
    %v2263 = vpop.permute.xlu0 %2262
    %2264 = vrot.lane.b32.xlu0 %v1992, 109
    %v2265 = vpop.permute.xlu0 %2264
    %2266 = vrot.lane.b32.xlu0 %v2192, 109
    %v2267 = vpop.permute.xlu0 %2266
    %vm2268 = vcmp.lt.s32.totalorder %v969, 109
    %v2269 = vsel %vm2268, %v2265, %v2267
    %v2270 = vsel %vm2268, %v2263, %v2265
    %v2271 = vsel %vm2268, %v2267, %v2263
    %v2272 = vld [vmem:[%s27] sm:$0xff]
    %v2273 = vld [vmem:[%s29] sm:$0xff]
    %2275 = vset.pattern.permute.xlu0 0
    %2276 = vperm.xlu0 %2275, %v2273
    %v2277 = vpop.permute.xlu0 %2276
    %vm2279 = vcmask 588800
    %v2281 = vsel %vm2279, %v2272, 0
    %2283 = vmatpush.msra.mxu0 0.0
    %2284 = vmatpush.msra.mxu0 0.0
    %2285 = vmatpush.msra.mxu0 0.0
    %2286 = vmatpush.msra.mxu0 0.0
    %2287 = vmatpush.msra.mxu0 0.0
    %2288 = vmatpush.msra.mxu0 0.0
    %2289 = vmatpush.msra.mxu0 0.0
    %2290 = vmatpush.msra.mxu0 %v2270
    %2291 = vmatpush.msra.mxu0 %v2260
    %2292 = vmatpush.msra.mxu0 %v2250
    %2293 = vmatpush.msra.mxu0 %v2240
    %2294 = vmatpush.msra.mxu0 %v1792
    %2295 = vmatpush.msra.mxu0 %v2232
    %2296 = vmatpush.msra.mxu0 %v2223
    %2297 = vmatpush.msra.mxu0 %v2213
    %2298 = vmatpush.msra.mxu0 %v2203
    %2299 = vmatmul.f32.gmra.mxu0 %v2281
    %v2300 = vpop.f32.mrf.mxu0
    %v2301 = vadd.f32 %v2277, %v2300
    %2302 = vdwg.mxu0
    %2303 = vmatpush.msra.mxu0 0.0
    %2304 = vmatpush.msra.mxu0 0.0
    %2305 = vmatpush.msra.mxu0 0.0
    %2306 = vmatpush.msra.mxu0 0.0
    %2307 = vmatpush.msra.mxu0 0.0
    %2308 = vmatpush.msra.mxu0 0.0
    %2309 = vmatpush.msra.mxu0 0.0
    %2310 = vmatpush.msra.mxu0 %v2269
    %2311 = vmatpush.msra.mxu0 %v2259
    %2312 = vmatpush.msra.mxu0 %v2249
    %2313 = vmatpush.msra.mxu0 %v2239
    %2314 = vmatpush.msra.mxu0 %v1992
    %2315 = vmatpush.msra.mxu0 %v2231
    %2316 = vmatpush.msra.mxu0 %v2222
    %2317 = vmatpush.msra.mxu0 %v2212
    %2318 = vmatpush.msra.mxu0 %v2202
    %2319 = vmatmul.f32.gmra.mxu0 %v2281
    %v2320 = vpop.f32.mrf.mxu0
    %v2321 = vadd.f32 %v2277, %v2320
    %2322 = vdwg.mxu0
    %2323 = vmatpush.msra.mxu0 0.0
    %2324 = vmatpush.msra.mxu0 0.0
    %2325 = vmatpush.msra.mxu0 0.0
    %2326 = vmatpush.msra.mxu0 0.0
    %2327 = vmatpush.msra.mxu0 0.0
    %2328 = vmatpush.msra.mxu0 0.0
    %2329 = vmatpush.msra.mxu0 0.0
    %2330 = vmatpush.msra.mxu0 %v2271
    %2331 = vmatpush.msra.mxu0 %v2261
    %2332 = vmatpush.msra.mxu0 %v2251
    %2333 = vmatpush.msra.mxu0 %v2241
    %2334 = vmatpush.msra.mxu0 %v2192
    %2335 = vmatpush.msra.mxu0 %v2230
    %2336 = vmatpush.msra.mxu0 %v2221
    %2337 = vmatpush.msra.mxu0 %v2211
    %2338 = vmatpush.msra.mxu0 %v2201
    %2339 = vmatmul.f32.gmra.mxu0 %v2281
    %v2340 = vpop.f32.mrf.mxu0
    %v2341 = vadd.f32 %v2277, %v2340
    %2342 = vdwg.mxu0
    %v2343 = vmax.f32 %v2301, 0.0
    %v2344 = vmax.f32 %v2321, 0.0
    %v2345 = vmax.f32 %v2341, 0.0
    %v2346 = vld [vmem:[#allocation4] sm:$0x7]
    %v2348 = vperm.slane %v2346, 0
    %v2349 = vperm.slane %v2346, 1
    %v2350 = vperm.slane %v2346, 2
    %v2354 = vmul.f32 %v2343, %v2348
    %v2355 = vmul.f32 %v2344, %v2349
    %v2356 = vmul.f32 %v2345, %v2350
    %2357 = vrot.lane.b32.xlu0 %v2354, 19
    %v2358 = vpop.permute.xlu0 %2357
    %2359 = vrot.lane.b32.xlu0 %v2355, 19
    %v2360 = vpop.permute.xlu0 %2359
    %2361 = vrot.lane.b32.xlu0 %v2356, 19
    %v2362 = vpop.permute.xlu0 %2361
    %v2363 = vsel %vm2200, %v2360, %v2362
    %v2364 = vsel %vm2200, %v2358, %v2360
    %v2365 = vsel %vm2200, %v2362, %v2358
    %2366 = vrot.lane.b32.xlu0 %v2354, 18
    %v2367 = vpop.permute.xlu0 %2366
    %2368 = vrot.lane.b32.xlu0 %v2355, 18
    %v2369 = vpop.permute.xlu0 %2368
    %2370 = vrot.lane.b32.xlu0 %v2356, 18
    %v2371 = vpop.permute.xlu0 %2370
    %v2372 = vsel %vm2210, %v2369, %v2371
    %v2373 = vsel %vm2210, %v2367, %v2369
    %v2374 = vsel %vm2210, %v2371, %v2367
    %2375 = vrot.lane.b32.xlu0 %v2354, 17
    %v2376 = vpop.permute.xlu0 %2375
    %2377 = vrot.lane.b32.xlu0 %v2355, 17
    %v2378 = vpop.permute.xlu0 %2377
    %2379 = vrot.lane.b32.xlu0 %v2356, 17
    %v2380 = vpop.permute.xlu0 %2379
    %v2381 = vsel %vm2220, %v2378, %v2380
    %v2382 = vsel %vm2220, %v2376, %v2378
    %v2383 = vsel %vm2220, %v2380, %v2376
    %2384 = vrot.lane.b32.xlu0 %v2354, 1
    %v2385 = vpop.permute.xlu0 %2384
    %2386 = vrot.lane.b32.xlu0 %v2355, 1
    %v2387 = vpop.permute.xlu0 %2386
    %2388 = vrot.lane.b32.xlu0 %v2356, 1
    %v2389 = vpop.permute.xlu0 %2388
    %v2390 = vsel %vm1093, %v2387, %v2389
    %v2391 = vsel %vm1093, %v2385, %v2387
    %v2392 = vsel %vm1093, %v2389, %v2385
    %2393 = vrot.lane.b32.xlu0 %v2354, 127
    %v2394 = vpop.permute.xlu0 %2393
    %2395 = vrot.lane.b32.xlu0 %v2355, 127
    %v2396 = vpop.permute.xlu0 %2395
    %2397 = vrot.lane.b32.xlu0 %v2356, 127
    %v2398 = vpop.permute.xlu0 %2397
    %v2399 = vsel %vm1052, %v2396, %v2398
    %v2400 = vsel %vm1052, %v2394, %v2396
    %v2401 = vsel %vm1052, %v2398, %v2394
    %2402 = vrot.lane.b32.xlu0 %v2354, 111
    %v2403 = vpop.permute.xlu0 %2402
    %2404 = vrot.lane.b32.xlu0 %v2355, 111
    %v2405 = vpop.permute.xlu0 %2404
    %2406 = vrot.lane.b32.xlu0 %v2356, 111
    %v2407 = vpop.permute.xlu0 %2406
    %v2408 = vsel %vm2248, %v2405, %v2407
    %v2409 = vsel %vm2248, %v2403, %v2405
    %v2410 = vsel %vm2248, %v2407, %v2403
    %2411 = vrot.lane.b32.xlu0 %v2354, 110
    %v2412 = vpop.permute.xlu0 %2411
    %2413 = vrot.lane.b32.xlu0 %v2355, 110
    %v2414 = vpop.permute.xlu0 %2413
    %2415 = vrot.lane.b32.xlu0 %v2356, 110
    %v2416 = vpop.permute.xlu0 %2415
    %v2417 = vsel %vm2258, %v2414, %v2416
    %v2418 = vsel %vm2258, %v2412, %v2414
    %v2419 = vsel %vm2258, %v2416, %v2412
    %2420 = vrot.lane.b32.xlu0 %v2354, 109
    %v2421 = vpop.permute.xlu0 %2420
    %2422 = vrot.lane.b32.xlu0 %v2355, 109
    %v2423 = vpop.permute.xlu0 %2422
    %2424 = vrot.lane.b32.xlu0 %v2356, 109
    %v2425 = vpop.permute.xlu0 %2424
    %v2426 = vsel %vm2268, %v2423, %v2425
    %v2427 = vsel %vm2268, %v2421, %v2423
    %v2428 = vsel %vm2268, %v2425, %v2421
    %v2429 = vld [vmem:[%s31] sm:$0xff]
    %v2430 = vld [vmem:[%s33] sm:$0xff]
    %2432 = vset.pattern.permute.xlu0 0
    %2433 = vperm.xlu0 %2432, %v2430
    %v2434 = vpop.permute.xlu0 %2433
    %v2437 = vsel %vm2279, %v2429, 0
    %2439 = vmatpush.msra.mxu0 0.0
    %2440 = vmatpush.msra.mxu0 0.0
    %2441 = vmatpush.msra.mxu0 0.0
    %2442 = vmatpush.msra.mxu0 0.0
    %2443 = vmatpush.msra.mxu0 0.0
    %2444 = vmatpush.msra.mxu0 0.0
    %2445 = vmatpush.msra.mxu0 0.0
    %2446 = vmatpush.msra.mxu0 %v2427
    %2447 = vmatpush.msra.mxu0 %v2418
    %2448 = vmatpush.msra.mxu0 %v2409
    %2449 = vmatpush.msra.mxu0 %v2400
    %2450 = vmatpush.msra.mxu0 %v2354
    %2451 = vmatpush.msra.mxu0 %v2392
    %2452 = vmatpush.msra.mxu0 %v2383
    %2453 = vmatpush.msra.mxu0 %v2374
    %2454 = vmatpush.msra.mxu0 %v2365
    %2455 = vmatmul.f32.gmra.mxu0 %v2437
    %v2456 = vpop.f32.mrf.mxu0
    %v2457 = vadd.f32 %v2434, %v2456
    %2458 = vdwg.mxu0
    %2459 = vmatpush.msra.mxu0 0.0
    %2460 = vmatpush.msra.mxu0 0.0
    %2461 = vmatpush.msra.mxu0 0.0
    %2462 = vmatpush.msra.mxu0 0.0
    %2463 = vmatpush.msra.mxu0 0.0
    %2464 = vmatpush.msra.mxu0 0.0
    %2465 = vmatpush.msra.mxu0 0.0
    %2466 = vmatpush.msra.mxu0 %v2426
    %2467 = vmatpush.msra.mxu0 %v2417
    %2468 = vmatpush.msra.mxu0 %v2408
    %2469 = vmatpush.msra.mxu0 %v2399
    %2470 = vmatpush.msra.mxu0 %v2355
    %2471 = vmatpush.msra.mxu0 %v2391
    %2472 = vmatpush.msra.mxu0 %v2382
    %2473 = vmatpush.msra.mxu0 %v2373
    %2474 = vmatpush.msra.mxu0 %v2364
    %2475 = vmatmul.f32.gmra.mxu0 %v2437
    %v2476 = vpop.f32.mrf.mxu0
    %v2477 = vadd.f32 %v2434, %v2476
    %2478 = vdwg.mxu0
    %2479 = vmatpush.msra.mxu0 0.0
    %2480 = vmatpush.msra.mxu0 0.0
    %2481 = vmatpush.msra.mxu0 0.0
    %2482 = vmatpush.msra.mxu0 0.0
    %2483 = vmatpush.msra.mxu0 0.0
    %2484 = vmatpush.msra.mxu0 0.0
    %2485 = vmatpush.msra.mxu0 0.0
    %2486 = vmatpush.msra.mxu0 %v2428
    %2487 = vmatpush.msra.mxu0 %v2419
    %2488 = vmatpush.msra.mxu0 %v2410
    %2489 = vmatpush.msra.mxu0 %v2401
    %2490 = vmatpush.msra.mxu0 %v2356
    %2491 = vmatpush.msra.mxu0 %v2390
    %2492 = vmatpush.msra.mxu0 %v2381
    %2493 = vmatpush.msra.mxu0 %v2372
    %2494 = vmatpush.msra.mxu0 %v2363
    %2495 = vmatmul.f32.gmra.mxu0 %v2437
    %v2496 = vpop.f32.mrf.mxu0
    %v2497 = vadd.f32 %v2434, %v2496
    %2498 = vdwg.mxu0
    %v2499 = vadd.f32 %v2457, %v1792
    %v2500 = vadd.f32 %v2477, %v1992
    %v2501 = vadd.f32 %v2497, %v2192
    %v2502 = vmax.f32 %v2499, 0.0
    %v2503 = vmax.f32 %v2500, 0.0
    %v2504 = vmax.f32 %v2501, 0.0
    %v2505 = vmul.f32 %v2502, %v2348
    %v2506 = vmul.f32 %v2503, %v2349
    %v2507 = vmul.f32 %v2504, %v2350
    %v2508 = vld [vmem:[#allocation12] sm:$0xff]
    %v2509 = vld [vmem:[#allocation12 + $0x8] sm:$0xff]
    %v2510 = vld [vmem:[#allocation12 + $0x10] sm:$0xff]
    %v2511 = vld [vmem:[#allocation12 + $0x18] sm:$0xff]
    %v2512 = vld [vmem:[#allocation12 + $0x20] sm:$0xff]
    %v2513 = vld [vmem:[#allocation12 + $0x28] sm:$0xff]
    %v2514 = vld [vmem:[#allocation12 + $0x30] sm:$0xff]
    %v2515 = vld [vmem:[#allocation12 + $0x38] sm:$0xff]
    %v2516 = vld [vmem:[#allocation12 + $0x40] sm:$0xff]
    %v2517 = vld [vmem:[#allocation12 + $0x48] sm:$0xff]
    %v2518 = vld [vmem:[#allocation12 + $0x50] sm:$0xff]
    %v2519 = vld [vmem:[#allocation12 + $0x58] sm:$0xff]
    %v2520 = vld [vmem:[#allocation12 + $0x60] sm:$0xff]
    %v2521 = vld [vmem:[#allocation12 + $0x68] sm:$0xff]
    %v2522 = vld [vmem:[#allocation12 + $0x70] sm:$0xff]
    %v2523 = vld [vmem:[#allocation12 + $0x78] sm:$0xff]
    %v2524 = vld [vmem:[#allocation12 + $0x80] sm:$0xff]
    %v2525 = vld [vmem:[#allocation12 + $0x88] sm:$0xff]
    %v2526 = vld [vmem:[#allocation12 + $0x90] sm:$0xff]
    %v2527 = vld [vmem:[#allocation12 + $0x98] sm:$0xff]
    %v2528 = vld [vmem:[#allocation12 + $0xa0] sm:$0xff]
    %v2529 = vld [vmem:[#allocation12 + $0xa8] sm:$0xff]
    %v2530 = vld [vmem:[#allocation12 + $0xb0] sm:$0xff]
    %v2531 = vld [vmem:[#allocation12 + $0xb8] sm:$0xff]
    %v2532 = vld [vmem:[#allocation12 + $0xc0] sm:$0xff]
    %v2533 = vld [vmem:[#allocation12 + $0xc8] sm:$0xff]
    %v2534 = vld [vmem:[#allocation12 + $0xd0] sm:$0xff]
    %v2535 = vld [vmem:[#allocation12 + $0xd8] sm:$0xff]
    %v2536 = vld [vmem:[#allocation12 + $0xe0] sm:$0xff]
    %v2537 = vld [vmem:[#allocation12 + $0xe8] sm:$0xff]
    %v2538 = vld [vmem:[#allocation12 + $0xf0] sm:$0xff]
    %v2539 = vld [vmem:[#allocation12 + $0xf8] sm:$0xff]
    %v2540 = vld [vmem:[#allocation12 + $0x100] sm:$0xff]
    %v2541 = vld [vmem:[#allocation12 + $0x108] sm:$0xff]
    %v2542 = vld [vmem:[#allocation12 + $0x110] sm:$0xff]
    %v2543 = vld [vmem:[#allocation12 + $0x118] sm:$0xff]
    %v2544 = vld [vmem:[#allocation12 + $0x120] sm:$0xff]
    %v2545 = vld [vmem:[#allocation12 + $0x128] sm:$0xff]
    %v2546 = vld [vmem:[#allocation12 + $0x130] sm:$0xff]
    %v2547 = vld [vmem:[#allocation12 + $0x138] sm:$0xff]
    %v2548 = vld [vmem:[#allocation12 + $0x140] sm:$0xff]
    %v2549 = vld [vmem:[#allocation12 + $0x148] sm:$0xff]
    %v2550 = vld [vmem:[#allocation12 + $0x150] sm:$0xff]
    %v2551 = vld [vmem:[#allocation12 + $0x158] sm:$0xff]
    %v2552 = vld [vmem:[#allocation12 + $0x160] sm:$0xff]
    %v2553 = vld [vmem:[#allocation12 + $0x168] sm:$0xff]
    %v2554 = vld [vmem:[#allocation12 + $0x170] sm:$0xff]
    %v2555 = vld [vmem:[#allocation12 + $0x178] sm:$0xff]
    %2556 = vmatpush.msra.mxu0 %v2523
    %2557 = vmatpush.msra.mxu0 %v2522
    %2558 = vmatpush.msra.mxu0 %v2521
    %2559 = vmatpush.msra.mxu0 %v2520
    %2560 = vmatpush.msra.mxu0 %v2519
    %2561 = vmatpush.msra.mxu0 %v2518
    %2562 = vmatpush.msra.mxu0 %v2517
    %2563 = vmatpush.msra.mxu0 %v2516
    %2564 = vmatpush.msra.mxu0 %v2515
    %2565 = vmatpush.msra.mxu0 %v2514
    %2566 = vmatpush.msra.mxu0 %v2513
    %2567 = vmatpush.msra.mxu0 %v2512
    %2568 = vmatpush.msra.mxu0 %v2511
    %2569 = vmatpush.msra.mxu0 %v2510
    %2570 = vmatpush.msra.mxu0 %v2509
    %2571 = vmatpush.msra.mxu0 %v2508
    %2572 = vmatmul.f32.gmra.mxu0 %v2505
    %v2573 = vpop.f32.mrf.mxu0
    %v2574 = vadd.f32 0.0, %v2573
    %2575 = vdwg.mxu0
    %2576 = vmatpush.msra.mxu0 %v2539
    %2577 = vmatpush.msra.mxu0 %v2538
    %2578 = vmatpush.msra.mxu0 %v2537
    %2579 = vmatpush.msra.mxu0 %v2536
    %2580 = vmatpush.msra.mxu0 %v2535
    %2581 = vmatpush.msra.mxu0 %v2534
    %2582 = vmatpush.msra.mxu0 %v2533
    %2583 = vmatpush.msra.mxu0 %v2532
    %2584 = vmatpush.msra.mxu0 %v2531
    %2585 = vmatpush.msra.mxu0 %v2530
    %2586 = vmatpush.msra.mxu0 %v2529
    %2587 = vmatpush.msra.mxu0 %v2528
    %2588 = vmatpush.msra.mxu0 %v2527
    %2589 = vmatpush.msra.mxu0 %v2526
    %2590 = vmatpush.msra.mxu0 %v2525
    %2591 = vmatpush.msra.mxu0 %v2524
    %2592 = vmatmul.f32.gmra.mxu0 %v2506
    %v2593 = vpop.f32.mrf.mxu0
    %v2594 = vadd.f32 %v2574, %v2593
    %2595 = vdwg.mxu0
    %2596 = vmatpush.msra.mxu0 %v2555
    %2597 = vmatpush.msra.mxu0 %v2554
    %2598 = vmatpush.msra.mxu0 %v2553
    %2599 = vmatpush.msra.mxu0 %v2552
    %2600 = vmatpush.msra.mxu0 %v2551
    %2601 = vmatpush.msra.mxu0 %v2550
    %2602 = vmatpush.msra.mxu0 %v2549
    %2603 = vmatpush.msra.mxu0 %v2548
    %2604 = vmatpush.msra.mxu0 %v2547
    %2605 = vmatpush.msra.mxu0 %v2546
    %2606 = vmatpush.msra.mxu0 %v2545
    %2607 = vmatpush.msra.mxu0 %v2544
    %2608 = vmatpush.msra.mxu0 %v2543
    %2609 = vmatpush.msra.mxu0 %v2542
    %2610 = vmatpush.msra.mxu0 %v2541
    %2611 = vmatpush.msra.mxu0 %v2540
    %2612 = vmatmul.f32.gmra.mxu0 %v2507
    %v2613 = vpop.f32.mrf.mxu0
    %v2614 = vadd.f32 %v2594, %v2613
    %2615 = vdwg.mxu0
    %v2616 = vld [vmem:[%s43] sm:$0xff]
    %v2617 = vld [vmem:[%s43 + $0x8] sm:$0xff]
    %v2618 = vld [vmem:[%s45] sm:$0xff]
    %v2619 = vld [vmem:[%s45 + $0x8] sm:$0xff]
    %2621 = vset.pattern.permute.xlu0 0
    %2622 = vperm.xlu0 %2621, %v2618
    %v2623 = vpop.permute.xlu0 %2622
    %2626 = vset.pattern.permute.xlu0 0
    %2627 = vperm.xlu0 %2626, %v2619
    %v2628 = vpop.permute.xlu0 %2627
    %vm2630 = vcmask 64512
    %v2632 = vsel %vm2630, %v2616, 0
    %v2635 = vsel %vm2630, %v2617, 0
    %2637 = vmatpush.msra.mxu0 0.0
    %2638 = vmatpush.msra.mxu0 0.0
    %2639 = vmatpush.msra.mxu0 0.0
    %2640 = vmatpush.msra.mxu0 0.0
    %2641 = vmatpush.msra.mxu0 0.0
    %2642 = vmatpush.msra.mxu0 0.0
    %2643 = vmatpush.msra.mxu0 0.0
    %2644 = vmatpush.msra.mxu0 0.0
    %2645 = vmatpush.msra.mxu0 0.0
    %2646 = vmatpush.msra.mxu0 0.0
    %2647 = vmatpush.msra.mxu0 0.0
    %2648 = vmatpush.msra.mxu0 0.0
    %2649 = vmatpush.msra.mxu0 0.0
    %2650 = vmatpush.msra.mxu0 0.0
    %2651 = vmatpush.msra.mxu0 0.0
    %2652 = vmatpush.msra.mxu0 %v2614
    %2653 = vmatmul.f32.gmra.mxu0 %v2632
    %v2654 = vpop.f32.mrf.mxu0
    %v2655 = vadd.f32 %v2623, %v2654
    %2656 = vmatmul.f32.gmra.mxu0 %v2635
    %v2657 = vpop.f32.mrf.mxu0
    %v2658 = vadd.f32 %v2628, %v2657
    %2659 = vdwg.mxu0
    %2660 = vrot.lane.b32.xlu0 %v2505, 19
    %v2661 = vpop.permute.xlu0 %2660
    %2662 = vrot.lane.b32.xlu0 %v2506, 19
    %v2663 = vpop.permute.xlu0 %2662
    %2664 = vrot.lane.b32.xlu0 %v2507, 19
    %v2665 = vpop.permute.xlu0 %2664
    %v2666 = vsel %vm2200, %v2663, %v2665
    %v2667 = vsel %vm2200, %v2661, %v2663
    %v2668 = vsel %vm2200, %v2665, %v2661
    %2669 = vrot.lane.b32.xlu0 %v2505, 18
    %v2670 = vpop.permute.xlu0 %2669
    %2671 = vrot.lane.b32.xlu0 %v2506, 18
    %v2672 = vpop.permute.xlu0 %2671
    %2673 = vrot.lane.b32.xlu0 %v2507, 18
    %v2674 = vpop.permute.xlu0 %2673
    %v2675 = vsel %vm2210, %v2672, %v2674
    %v2676 = vsel %vm2210, %v2670, %v2672
    %v2677 = vsel %vm2210, %v2674, %v2670
    %2678 = vrot.lane.b32.xlu0 %v2505, 17
    %v2679 = vpop.permute.xlu0 %2678
    %2680 = vrot.lane.b32.xlu0 %v2506, 17
    %v2681 = vpop.permute.xlu0 %2680
    %2682 = vrot.lane.b32.xlu0 %v2507, 17
    %v2683 = vpop.permute.xlu0 %2682
    %v2684 = vsel %vm2220, %v2681, %v2683
    %v2685 = vsel %vm2220, %v2679, %v2681
    %v2686 = vsel %vm2220, %v2683, %v2679
    %2687 = vrot.lane.b32.xlu0 %v2505, 1
    %v2688 = vpop.permute.xlu0 %2687
    %2689 = vrot.lane.b32.xlu0 %v2506, 1
    %v2690 = vpop.permute.xlu0 %2689
    %2691 = vrot.lane.b32.xlu0 %v2507, 1
    %v2692 = vpop.permute.xlu0 %2691
    %v2693 = vsel %vm1093, %v2690, %v2692
    %v2694 = vsel %vm1093, %v2688, %v2690
    %v2695 = vsel %vm1093, %v2692, %v2688
    %2696 = vrot.lane.b32.xlu0 %v2505, 127
    %v2697 = vpop.permute.xlu0 %2696
    %2698 = vrot.lane.b32.xlu0 %v2506, 127
    %v2699 = vpop.permute.xlu0 %2698
    %2700 = vrot.lane.b32.xlu0 %v2507, 127
    %v2701 = vpop.permute.xlu0 %2700
    %v2702 = vsel %vm1052, %v2699, %v2701
    %v2703 = vsel %vm1052, %v2697, %v2699
    %v2704 = vsel %vm1052, %v2701, %v2697
    %2705 = vrot.lane.b32.xlu0 %v2505, 111
    %v2706 = vpop.permute.xlu0 %2705
    %2707 = vrot.lane.b32.xlu0 %v2506, 111
    %v2708 = vpop.permute.xlu0 %2707
    %2709 = vrot.lane.b32.xlu0 %v2507, 111
    %v2710 = vpop.permute.xlu0 %2709
    %v2711 = vsel %vm2248, %v2708, %v2710
    %v2712 = vsel %vm2248, %v2706, %v2708
    %v2713 = vsel %vm2248, %v2710, %v2706
    %2714 = vrot.lane.b32.xlu0 %v2505, 110
    %v2715 = vpop.permute.xlu0 %2714
    %2716 = vrot.lane.b32.xlu0 %v2506, 110
    %v2717 = vpop.permute.xlu0 %2716
    %2718 = vrot.lane.b32.xlu0 %v2507, 110
    %v2719 = vpop.permute.xlu0 %2718
    %v2720 = vsel %vm2258, %v2717, %v2719
    %v2721 = vsel %vm2258, %v2715, %v2717
    %v2722 = vsel %vm2258, %v2719, %v2715
    %2723 = vrot.lane.b32.xlu0 %v2505, 109
    %v2724 = vpop.permute.xlu0 %2723
    %2725 = vrot.lane.b32.xlu0 %v2506, 109
    %v2726 = vpop.permute.xlu0 %2725
    %2727 = vrot.lane.b32.xlu0 %v2507, 109
    %v2728 = vpop.permute.xlu0 %2727
    %v2729 = vsel %vm2268, %v2726, %v2728
    %v2730 = vsel %vm2268, %v2724, %v2726
    %v2731 = vsel %vm2268, %v2728, %v2724
    %v2732 = vld [vmem:[%s35] sm:$0xff]
    %v2733 = vld [vmem:[%s35 + $0x8] sm:$0xff]
    %v2734 = vld [vmem:[%s37] sm:$0xff]
    %v2735 = vld [vmem:[%s37 + $0x8] sm:$0xff]
    %2737 = vset.pattern.permute.xlu0 0
    %2738 = vperm.xlu0 %2737, %v2734
    %v2739 = vpop.permute.xlu0 %2738
    %2742 = vset.pattern.permute.xlu0 0
    %2743 = vperm.xlu0 %2742, %v2735
    %v2744 = vpop.permute.xlu0 %2743
    %v2747 = vsel %vm2279, %v2732, 0
    %v2750 = vsel %vm2279, %v2733, 0
    %2752 = vmatpush.msra.mxu0 0.0
    %2753 = vmatpush.msra.mxu0 0.0
    %2754 = vmatpush.msra.mxu0 0.0
    %2755 = vmatpush.msra.mxu0 0.0
    %2756 = vmatpush.msra.mxu0 0.0
    %2757 = vmatpush.msra.mxu0 0.0
    %2758 = vmatpush.msra.mxu0 0.0
    %2759 = vmatpush.msra.mxu0 %v2730
    %2760 = vmatpush.msra.mxu0 %v2721
    %2761 = vmatpush.msra.mxu0 %v2712
    %2762 = vmatpush.msra.mxu0 %v2703
    %2763 = vmatpush.msra.mxu0 %v2505
    %2764 = vmatpush.msra.mxu0 %v2695
    %2765 = vmatpush.msra.mxu0 %v2686
    %2766 = vmatpush.msra.mxu0 %v2677
    %2767 = vmatpush.msra.mxu0 %v2668
    %2768 = vmatmul.f32.gmra.mxu0 %v2747
    %v2769 = vpop.f32.mrf.mxu0
    %v2770 = vadd.f32 %v2739, %v2769
    %2771 = vmatmul.f32.gmra.mxu0 %v2750
    %v2772 = vpop.f32.mrf.mxu0
    %v2773 = vadd.f32 %v2744, %v2772
    %2774 = vdwg.mxu0
    %2775 = vmatpush.msra.mxu0 0.0
    %2776 = vmatpush.msra.mxu0 0.0
    %2777 = vmatpush.msra.mxu0 0.0
    %2778 = vmatpush.msra.mxu0 0.0
    %2779 = vmatpush.msra.mxu0 0.0
    %2780 = vmatpush.msra.mxu0 0.0
    %2781 = vmatpush.msra.mxu0 0.0
    %2782 = vmatpush.msra.mxu0 %v2729
    %2783 = vmatpush.msra.mxu0 %v2720
    %2784 = vmatpush.msra.mxu0 %v2711
    %2785 = vmatpush.msra.mxu0 %v2702
    %2786 = vmatpush.msra.mxu0 %v2506
    %2787 = vmatpush.msra.mxu0 %v2694
    %2788 = vmatpush.msra.mxu0 %v2685
    %2789 = vmatpush.msra.mxu0 %v2676
    %2790 = vmatpush.msra.mxu0 %v2667
    %2791 = vmatmul.f32.gmra.mxu0 %v2747
    %v2792 = vpop.f32.mrf.mxu0
    %v2793 = vadd.f32 %v2739, %v2792
    %2794 = vmatmul.f32.gmra.mxu0 %v2750
    %v2795 = vpop.f32.mrf.mxu0
    %v2796 = vadd.f32 %v2744, %v2795
    %2797 = vdwg.mxu0
    %2798 = vmatpush.msra.mxu0 0.0
    %2799 = vmatpush.msra.mxu0 0.0
    %2800 = vmatpush.msra.mxu0 0.0
    %2801 = vmatpush.msra.mxu0 0.0
    %2802 = vmatpush.msra.mxu0 0.0
    %2803 = vmatpush.msra.mxu0 0.0
    %2804 = vmatpush.msra.mxu0 0.0
    %2805 = vmatpush.msra.mxu0 %v2731
    %2806 = vmatpush.msra.mxu0 %v2722
    %2807 = vmatpush.msra.mxu0 %v2713
    %2808 = vmatpush.msra.mxu0 %v2704
    %2809 = vmatpush.msra.mxu0 %v2507
    %2810 = vmatpush.msra.mxu0 %v2693
    %2811 = vmatpush.msra.mxu0 %v2684
    %2812 = vmatpush.msra.mxu0 %v2675
    %2813 = vmatpush.msra.mxu0 %v2666
    %2814 = vmatmul.f32.gmra.mxu0 %v2747
    %v2815 = vpop.f32.mrf.mxu0
    %v2816 = vadd.f32 %v2739, %v2815
    %2817 = vmatmul.f32.gmra.mxu0 %v2750
    %v2818 = vpop.f32.mrf.mxu0
    %v2819 = vadd.f32 %v2744, %v2818
    %2820 = vdwg.mxu0
    %v2821 = vmax.f32 %v2770, 0.0
    %v2822 = vmax.f32 %v2793, 0.0
    %v2823 = vmax.f32 %v2816, 0.0
    %v2824 = vmax.f32 %v2773, 0.0
    %v2825 = vmax.f32 %v2796, 0.0
    %v2826 = vmax.f32 %v2819, 0.0
    %2827 = vmatpush.msra.mxu0 %v2523
    %2828 = vmatpush.msra.mxu0 %v2522
    %2829 = vmatpush.msra.mxu0 %v2521
    %2830 = vmatpush.msra.mxu0 %v2520
    %2831 = vmatpush.msra.mxu0 %v2519
    %2832 = vmatpush.msra.mxu0 %v2518
    %2833 = vmatpush.msra.mxu0 %v2517
    %2834 = vmatpush.msra.mxu0 %v2516
    %2835 = vmatpush.msra.mxu0 %v2515
    %2836 = vmatpush.msra.mxu0 %v2514
    %2837 = vmatpush.msra.mxu0 %v2513
    %2838 = vmatpush.msra.mxu0 %v2512
    %2839 = vmatpush.msra.mxu0 %v2511
    %2840 = vmatpush.msra.mxu0 %v2510
    %2841 = vmatpush.msra.mxu0 %v2509
    %2842 = vmatpush.msra.mxu0 %v2508
    %2843 = vmatmul.f32.gmra.mxu0 %v2821
    %v2844 = vpop.f32.mrf.mxu0
    %v2845 = vadd.f32 0.0, %v2844
    %2846 = vmatmul.f32.gmra.mxu0 %v2824
    %v2847 = vpop.f32.mrf.mxu0
    %v2848 = vadd.f32 0.0, %v2847
    %2849 = vdwg.mxu0
    %2850 = vmatpush.msra.mxu0 %v2539
    %2851 = vmatpush.msra.mxu0 %v2538
    %2852 = vmatpush.msra.mxu0 %v2537
    %2853 = vmatpush.msra.mxu0 %v2536
    %2854 = vmatpush.msra.mxu0 %v2535
    %2855 = vmatpush.msra.mxu0 %v2534
    %2856 = vmatpush.msra.mxu0 %v2533
    %2857 = vmatpush.msra.mxu0 %v2532
    %2858 = vmatpush.msra.mxu0 %v2531
    %2859 = vmatpush.msra.mxu0 %v2530
    %2860 = vmatpush.msra.mxu0 %v2529
    %2861 = vmatpush.msra.mxu0 %v2528
    %2862 = vmatpush.msra.mxu0 %v2527
    %2863 = vmatpush.msra.mxu0 %v2526
    %2864 = vmatpush.msra.mxu0 %v2525
    %2865 = vmatpush.msra.mxu0 %v2524
    %2866 = vmatmul.f32.gmra.mxu0 %v2822
    %v2867 = vpop.f32.mrf.mxu0
    %v2868 = vadd.f32 %v2845, %v2867
    %2869 = vmatmul.f32.gmra.mxu0 %v2825
    %v2870 = vpop.f32.mrf.mxu0
    %v2871 = vadd.f32 %v2848, %v2870
    %2872 = vdwg.mxu0
    %2873 = vmatpush.msra.mxu0 %v2555
    %2874 = vmatpush.msra.mxu0 %v2554
    %2875 = vmatpush.msra.mxu0 %v2553
    %2876 = vmatpush.msra.mxu0 %v2552
    %2877 = vmatpush.msra.mxu0 %v2551
    %2878 = vmatpush.msra.mxu0 %v2550
    %2879 = vmatpush.msra.mxu0 %v2549
    %2880 = vmatpush.msra.mxu0 %v2548
    %2881 = vmatpush.msra.mxu0 %v2547
    %2882 = vmatpush.msra.mxu0 %v2546
    %2883 = vmatpush.msra.mxu0 %v2545
    %2884 = vmatpush.msra.mxu0 %v2544
    %2885 = vmatpush.msra.mxu0 %v2543
    %2886 = vmatpush.msra.mxu0 %v2542
    %2887 = vmatpush.msra.mxu0 %v2541
    %2888 = vmatpush.msra.mxu0 %v2540
    %2889 = vmatmul.f32.gmra.mxu0 %v2823
    %v2890 = vpop.f32.mrf.mxu0
    %v2891 = vadd.f32 %v2868, %v2890
    %2892 = vmatmul.f32.gmra.mxu0 %v2826
    %v2893 = vpop.f32.mrf.mxu0
    %v2894 = vadd.f32 %v2871, %v2893
    %2895 = vdwg.mxu0
    %2896 = vrot.lane.b32.xlu0 %v2891, 11
    %v2897 = vpop.permute.xlu0 %2896
    %2898 = vrot.lane.b32.xlu0 %v2894, 11
    %v2899 = vpop.permute.xlu0 %2898
    %2900 = vrot.lane.b32.xlu0 %v2891, 10
    %v2901 = vpop.permute.xlu0 %2900
    %2902 = vrot.lane.b32.xlu0 %v2894, 10
    %v2903 = vpop.permute.xlu0 %2902
    %2904 = vrot.lane.b32.xlu0 %v2891, 9
    %v2905 = vpop.permute.xlu0 %2904
    %2906 = vrot.lane.b32.xlu0 %v2894, 9
    %v2907 = vpop.permute.xlu0 %2906
    %2908 = vrot.lane.b32.xlu0 %v2891, 1
    %v2909 = vpop.permute.xlu0 %2908
    %2910 = vrot.lane.b32.xlu0 %v2894, 1
    %v2911 = vpop.permute.xlu0 %2910
    %2912 = vrot.lane.b32.xlu0 %v2891, 127
    %v2913 = vpop.permute.xlu0 %2912
    %2914 = vrot.lane.b32.xlu0 %v2894, 127
    %v2915 = vpop.permute.xlu0 %2914
    %2916 = vrot.lane.b32.xlu0 %v2891, 119
    %v2917 = vpop.permute.xlu0 %2916
    %2918 = vrot.lane.b32.xlu0 %v2894, 119
    %v2919 = vpop.permute.xlu0 %2918
    %2920 = vrot.lane.b32.xlu0 %v2891, 118
    %v2921 = vpop.permute.xlu0 %2920
    %2922 = vrot.lane.b32.xlu0 %v2894, 118
    %v2923 = vpop.permute.xlu0 %2922
    %2924 = vrot.lane.b32.xlu0 %v2891, 117
    %v2925 = vpop.permute.xlu0 %2924
    %2926 = vrot.lane.b32.xlu0 %v2894, 117
    %v2927 = vpop.permute.xlu0 %2926
    %v2928 = vld [vmem:[%s39] sm:$0xff]
    %v2929 = vld [vmem:[%s39 + $0x8] sm:$0xff]
    %v2930 = vld [vmem:[%s39 + $0x10] sm:$0xff]
    %v2931 = vld [vmem:[%s39 + $0x18] sm:$0xff]
    %v2932 = vld [vmem:[%s41] sm:$0xff]
    %v2933 = vld [vmem:[%s41 + $0x8] sm:$0xff]
    %2935 = vset.pattern.permute.xlu0 0
    %2936 = vperm.xlu0 %2935, %v2932
    %v2937 = vpop.permute.xlu0 %2936
    %2940 = vset.pattern.permute.xlu0 0
    %2941 = vperm.xlu0 %2940, %v2933
    %v2942 = vpop.permute.xlu0 %2941
    %vm2944 = vcmask 130048
    %v2946 = vsel %vm2944, %v2929, 0
    %v2949 = vsel %vm2944, %v2931, 0
    %2951 = vmatpush.msra.mxu0 %v2923
    %2952 = vmatpush.msra.mxu0 %v2921
    %2953 = vmatpush.msra.mxu0 %v2919
    %2954 = vmatpush.msra.mxu0 %v2917
    %2955 = vmatpush.msra.mxu0 %v2915
    %2956 = vmatpush.msra.mxu0 %v2913
    %2957 = vmatpush.msra.mxu0 %v2894
    %2958 = vmatpush.msra.mxu0 %v2891
    %2959 = vmatpush.msra.mxu0 %v2911
    %2960 = vmatpush.msra.mxu0 %v2909
    %2961 = vmatpush.msra.mxu0 %v2907
    %2962 = vmatpush.msra.mxu0 %v2905
    %2963 = vmatpush.msra.mxu0 %v2903
    %2964 = vmatpush.msra.mxu0 %v2901
    %2965 = vmatpush.msra.mxu0 %v2899
    %2966 = vmatpush.msra.mxu0 %v2897
    %2967 = vmatmul.f32.gmra.mxu0 %v2928
    %v2968 = vpop.f32.mrf.mxu0
    %v2969 = vadd.f32 %v2937, %v2968
    %2970 = vmatmul.f32.gmra.mxu0 %v2930
    %v2971 = vpop.f32.mrf.mxu0
    %v2972 = vadd.f32 %v2942, %v2971
    %2973 = vdwg.mxu0
    %2974 = vmatpush.msra.mxu0 0.0
    %2975 = vmatpush.msra.mxu0 0.0
    %2976 = vmatpush.msra.mxu0 0.0
    %2977 = vmatpush.msra.mxu0 0.0
    %2978 = vmatpush.msra.mxu0 0.0
    %2979 = vmatpush.msra.mxu0 0.0
    %2980 = vmatpush.msra.mxu0 0.0
    %2981 = vmatpush.msra.mxu0 0.0
    %2982 = vmatpush.msra.mxu0 0.0
    %2983 = vmatpush.msra.mxu0 0.0
    %2984 = vmatpush.msra.mxu0 0.0
    %2985 = vmatpush.msra.mxu0 0.0
    %2986 = vmatpush.msra.mxu0 0.0
    %2987 = vmatpush.msra.mxu0 0.0
    %2988 = vmatpush.msra.mxu0 %v2927
    %2989 = vmatpush.msra.mxu0 %v2925
    %2990 = vmatmul.f32.gmra.mxu0 %v2946
    %v2991 = vpop.f32.mrf.mxu0
    %v2992 = vadd.f32 %v2969, %v2991
    %2993 = vmatmul.f32.gmra.mxu0 %v2949
    %v2994 = vpop.f32.mrf.mxu0
    %v2995 = vadd.f32 %v2972, %v2994
    %2996 = vdwg.mxu0
    %v2997 = vadd.f32 %v2992, %v2655
    %v2998 = vadd.f32 %v2995, %v2658
    %v2999 = vmax.f32 %v2997, 0.0
    %v3000 = vmax.f32 %v2998, 0.0
    %v3001 = vld [vmem:[#allocation6] sm:$0x1]
    %v3003 = vperm.slane %v3001, 0
    %v3005 = vmul.f32 %v2999, %v3003
    %v3006 = vmul.f32 %v3000, %v3003
    %v3007 = vld [vmem:[#allocation13] sm:$0xff]
    %v3008 = vld [vmem:[#allocation13 + $0x8] sm:$0xff]
    %v3009 = vld [vmem:[#allocation13 + $0x10] sm:$0xff]
    %v3010 = vld [vmem:[#allocation13 + $0x18] sm:$0xff]
    %v3011 = vld [vmem:[#allocation13 + $0x20] sm:$0xff]
    %v3012 = vld [vmem:[#allocation13 + $0x28] sm:$0xff]
    %v3013 = vld [vmem:[#allocation13 + $0x30] sm:$0xff]
    %v3014 = vld [vmem:[#allocation13 + $0x38] sm:$0xff]
    %v3015 = vld [vmem:[#allocation13 + $0x40] sm:$0xff]
    %v3016 = vld [vmem:[#allocation13 + $0x48] sm:$0xff]
    %v3017 = vld [vmem:[#allocation13 + $0x50] sm:$0xff]
    %v3018 = vld [vmem:[#allocation13 + $0x58] sm:$0xff]
    %v3019 = vld [vmem:[#allocation13 + $0x60] sm:$0xff]
    %v3020 = vld [vmem:[#allocation13 + $0x68] sm:$0xff]
    %v3021 = vld [vmem:[#allocation13 + $0x70] sm:$0xff]
    %v3022 = vld [vmem:[#allocation13 + $0x78] sm:$0xff]
    %3023 = vmatpush.msra.mxu0 %v3022
    %3024 = vmatpush.msra.mxu0 %v3021
    %3025 = vmatpush.msra.mxu0 %v3020
    %3026 = vmatpush.msra.mxu0 %v3019
    %3027 = vmatpush.msra.mxu0 %v3018
    %3028 = vmatpush.msra.mxu0 %v3017
    %3029 = vmatpush.msra.mxu0 %v3016
    %3030 = vmatpush.msra.mxu0 %v3015
    %3031 = vmatpush.msra.mxu0 %v3014
    %3032 = vmatpush.msra.mxu0 %v3013
    %3033 = vmatpush.msra.mxu0 %v3012
    %3034 = vmatpush.msra.mxu0 %v3011
    %3035 = vmatpush.msra.mxu0 %v3010
    %3036 = vmatpush.msra.mxu0 %v3009
    %3037 = vmatpush.msra.mxu0 %v3008
    %3038 = vmatpush.msra.mxu0 %v3007
    %3039 = vmatmul.f32.gmra.mxu0 %v3005
    %v3040 = vpop.f32.mrf.mxu0
    %v3041 = vadd.f32 0.0, %v3040
    %3042 = vmatmul.f32.gmra.mxu0 %v3006
    %v3043 = vpop.f32.mrf.mxu0
    %v3044 = vadd.f32 0.0, %v3043
    %3045 = vdwg.mxu0
    %v3046 = vld [vmem:[%s55] sm:$0xff]
    %v3047 = vld [vmem:[%s55 + $0x8] sm:$0xff]
    %v3048 = vld [vmem:[%s55 + $0x10] sm:$0xff]
    %v3049 = vld [vmem:[%s55 + $0x18] sm:$0xff]
    %v3050 = vld [vmem:[%s57] sm:$0xff]
    %v3051 = vld [vmem:[%s57 + $0x8] sm:$0xff]
    %v3052 = vld [vmem:[%s57 + $0x10] sm:$0xff]
    %v3053 = vld [vmem:[%s57 + $0x18] sm:$0xff]
    %3055 = vset.pattern.permute.xlu0 0
    %3056 = vperm.xlu0 %3055, %v3050
    %v3057 = vpop.permute.xlu0 %3056
    %3060 = vset.pattern.permute.xlu0 0
    %3061 = vperm.xlu0 %3060, %v3051
    %v3062 = vpop.permute.xlu0 %3061
    %3065 = vset.pattern.permute.xlu0 0
    %3066 = vperm.xlu0 %3065, %v3052
    %v3067 = vpop.permute.xlu0 %3066
    %3070 = vset.pattern.permute.xlu0 0
    %3071 = vperm.xlu0 %3070, %v3053
    %v3072 = vpop.permute.xlu0 %3071
    %v3075 = vsel %vm2944, %v3046, 0
    %v3078 = vsel %vm2944, %v3047, 0
    %v3081 = vsel %vm2944, %v3048, 0
    %v3084 = vsel %vm2944, %v3049, 0
    %3086 = vmatpush.msra.mxu0 0.0
    %3087 = vmatpush.msra.mxu0 0.0
    %3088 = vmatpush.msra.mxu0 0.0
    %3089 = vmatpush.msra.mxu0 0.0
    %3090 = vmatpush.msra.mxu0 0.0
    %3091 = vmatpush.msra.mxu0 0.0
    %3092 = vmatpush.msra.mxu0 0.0
    %3093 = vmatpush.msra.mxu0 0.0
    %3094 = vmatpush.msra.mxu0 0.0
    %3095 = vmatpush.msra.mxu0 0.0
    %3096 = vmatpush.msra.mxu0 0.0
    %3097 = vmatpush.msra.mxu0 0.0
    %3098 = vmatpush.msra.mxu0 0.0
    %3099 = vmatpush.msra.mxu0 0.0
    %3100 = vmatpush.msra.mxu0 %v3044
    %3101 = vmatpush.msra.mxu0 %v3041
    %3102 = vmatmul.f32.gmra.mxu0 %v3075
    %v3103 = vpop.f32.mrf.mxu0
    %v3104 = vadd.f32 %v3057, %v3103
    %3105 = vmatmul.f32.gmra.mxu0 %v3078
    %v3106 = vpop.f32.mrf.mxu0
    %v3107 = vadd.f32 %v3062, %v3106
    %3108 = vmatmul.f32.gmra.mxu0 %v3081
    %v3109 = vpop.f32.mrf.mxu0
    %v3110 = vadd.f32 %v3067, %v3109
    %3111 = vmatmul.f32.gmra.mxu0 %v3084
    %v3112 = vpop.f32.mrf.mxu0
    %v3113 = vadd.f32 %v3072, %v3112
    %3114 = vdwg.mxu0
    %3115 = vrot.lane.b32.xlu0 %v3005, 11
    %v3116 = vpop.permute.xlu0 %3115
    %3117 = vrot.lane.b32.xlu0 %v3006, 11
    %v3118 = vpop.permute.xlu0 %3117
    %3119 = vrot.lane.b32.xlu0 %v3005, 10
    %v3120 = vpop.permute.xlu0 %3119
    %3121 = vrot.lane.b32.xlu0 %v3006, 10
    %v3122 = vpop.permute.xlu0 %3121
    %3123 = vrot.lane.b32.xlu0 %v3005, 9
    %v3124 = vpop.permute.xlu0 %3123
    %3125 = vrot.lane.b32.xlu0 %v3006, 9
    %v3126 = vpop.permute.xlu0 %3125
    %3127 = vrot.lane.b32.xlu0 %v3005, 1
    %v3128 = vpop.permute.xlu0 %3127
    %3129 = vrot.lane.b32.xlu0 %v3006, 1
    %v3130 = vpop.permute.xlu0 %3129
    %3131 = vrot.lane.b32.xlu0 %v3005, 127
    %v3132 = vpop.permute.xlu0 %3131
    %3133 = vrot.lane.b32.xlu0 %v3006, 127
    %v3134 = vpop.permute.xlu0 %3133
    %3135 = vrot.lane.b32.xlu0 %v3005, 119
    %v3136 = vpop.permute.xlu0 %3135
    %3137 = vrot.lane.b32.xlu0 %v3006, 119
    %v3138 = vpop.permute.xlu0 %3137
    %3139 = vrot.lane.b32.xlu0 %v3005, 118
    %v3140 = vpop.permute.xlu0 %3139
    %3141 = vrot.lane.b32.xlu0 %v3006, 118
    %v3142 = vpop.permute.xlu0 %3141
    %3143 = vrot.lane.b32.xlu0 %v3005, 117
    %v3144 = vpop.permute.xlu0 %3143
    %3145 = vrot.lane.b32.xlu0 %v3006, 117
    %v3146 = vpop.permute.xlu0 %3145
    %v3147 = vld [vmem:[%s47] sm:$0xff]
    %v3148 = vld [vmem:[%s47 + $0x8] sm:$0xff]
    %v3149 = vld [vmem:[%s47 + $0x10] sm:$0xff]
    %v3150 = vld [vmem:[%s47 + $0x18] sm:$0xff]
    %v3151 = vld [vmem:[%s47 + $0x20] sm:$0xff]
    %v3152 = vld [vmem:[%s47 + $0x28] sm:$0xff]
    %v3153 = vld [vmem:[%s47 + $0x30] sm:$0xff]
    %v3154 = vld [vmem:[%s47 + $0x38] sm:$0xff]
    %v3155 = vld [vmem:[%s49] sm:$0xff]
    %v3156 = vld [vmem:[%s49 + $0x8] sm:$0xff]
    %v3157 = vld [vmem:[%s49 + $0x10] sm:$0xff]
    %v3158 = vld [vmem:[%s49 + $0x18] sm:$0xff]
    %3160 = vset.pattern.permute.xlu0 0
    %3161 = vperm.xlu0 %3160, %v3155
    %v3162 = vpop.permute.xlu0 %3161
    %3165 = vset.pattern.permute.xlu0 0
    %3166 = vperm.xlu0 %3165, %v3156
    %v3167 = vpop.permute.xlu0 %3166
    %3170 = vset.pattern.permute.xlu0 0
    %3171 = vperm.xlu0 %3170, %v3157
    %v3172 = vpop.permute.xlu0 %3171
    %3175 = vset.pattern.permute.xlu0 0
    %3176 = vperm.xlu0 %3175, %v3158
    %v3177 = vpop.permute.xlu0 %3176
    %v3180 = vsel %vm2944, %v3148, 0
    %v3183 = vsel %vm2944, %v3150, 0
    %v3186 = vsel %vm2944, %v3152, 0
    %v3189 = vsel %vm2944, %v3154, 0
    %3191 = vmatpush.msra.mxu0 %v3142
    %3192 = vmatpush.msra.mxu0 %v3140
    %3193 = vmatpush.msra.mxu0 %v3138
    %3194 = vmatpush.msra.mxu0 %v3136
    %3195 = vmatpush.msra.mxu0 %v3134
    %3196 = vmatpush.msra.mxu0 %v3132
    %3197 = vmatpush.msra.mxu0 %v3006
    %3198 = vmatpush.msra.mxu0 %v3005
    %3199 = vmatpush.msra.mxu0 %v3130
    %3200 = vmatpush.msra.mxu0 %v3128
    %3201 = vmatpush.msra.mxu0 %v3126
    %3202 = vmatpush.msra.mxu0 %v3124
    %3203 = vmatpush.msra.mxu0 %v3122
    %3204 = vmatpush.msra.mxu0 %v3120
    %3205 = vmatpush.msra.mxu0 %v3118
    %3206 = vmatpush.msra.mxu0 %v3116
    %3207 = vmatmul.f32.gmra.mxu0 %v3147
    %v3208 = vpop.f32.mrf.mxu0
    %v3209 = vadd.f32 %v3162, %v3208
    %3210 = vmatmul.f32.gmra.mxu0 %v3149
    %v3211 = vpop.f32.mrf.mxu0
    %v3212 = vadd.f32 %v3167, %v3211
    %3213 = vmatmul.f32.gmra.mxu0 %v3151
    %v3214 = vpop.f32.mrf.mxu0
    %v3215 = vadd.f32 %v3172, %v3214
    %3216 = vmatmul.f32.gmra.mxu0 %v3153
    %v3217 = vpop.f32.mrf.mxu0
    %v3218 = vadd.f32 %v3177, %v3217
    %3219 = vdwg.mxu0
    %3220 = vmatpush.msra.mxu0 0.0
    %3221 = vmatpush.msra.mxu0 0.0
    %3222 = vmatpush.msra.mxu0 0.0
    %3223 = vmatpush.msra.mxu0 0.0
    %3224 = vmatpush.msra.mxu0 0.0
    %3225 = vmatpush.msra.mxu0 0.0
    %3226 = vmatpush.msra.mxu0 0.0
    %3227 = vmatpush.msra.mxu0 0.0
    %3228 = vmatpush.msra.mxu0 0.0
    %3229 = vmatpush.msra.mxu0 0.0
    %3230 = vmatpush.msra.mxu0 0.0
    %3231 = vmatpush.msra.mxu0 0.0
    %3232 = vmatpush.msra.mxu0 0.0
    %3233 = vmatpush.msra.mxu0 0.0
    %3234 = vmatpush.msra.mxu0 %v3146
    %3235 = vmatpush.msra.mxu0 %v3144
    %3236 = vmatmul.f32.gmra.mxu0 %v3180
    %v3237 = vpop.f32.mrf.mxu0
    %v3238 = vadd.f32 %v3209, %v3237
    %3239 = vmatmul.f32.gmra.mxu0 %v3183
    %v3240 = vpop.f32.mrf.mxu0
    %v3241 = vadd.f32 %v3212, %v3240
    %3242 = vmatmul.f32.gmra.mxu0 %v3186
    %v3243 = vpop.f32.mrf.mxu0
    %v3244 = vadd.f32 %v3215, %v3243
    %3245 = vmatmul.f32.gmra.mxu0 %v3189
    %v3246 = vpop.f32.mrf.mxu0
    %v3247 = vadd.f32 %v3218, %v3246
    %3248 = vdwg.mxu0
    %v3249 = vmax.f32 %v3238, 0.0
    %v3250 = vmax.f32 %v3241, 0.0
    %v3251 = vmax.f32 %v3244, 0.0
    %v3252 = vmax.f32 %v3247, 0.0
    %3253 = vmatpush.msra.mxu0 %v3022
    %3254 = vmatpush.msra.mxu0 %v3021
    %3255 = vmatpush.msra.mxu0 %v3020
    %3256 = vmatpush.msra.mxu0 %v3019
    %3257 = vmatpush.msra.mxu0 %v3018
    %3258 = vmatpush.msra.mxu0 %v3017
    %3259 = vmatpush.msra.mxu0 %v3016
    %3260 = vmatpush.msra.mxu0 %v3015
    %3261 = vmatpush.msra.mxu0 %v3014
    %3262 = vmatpush.msra.mxu0 %v3013
    %3263 = vmatpush.msra.mxu0 %v3012
    %3264 = vmatpush.msra.mxu0 %v3011
    %3265 = vmatpush.msra.mxu0 %v3010
    %3266 = vmatpush.msra.mxu0 %v3009
    %3267 = vmatpush.msra.mxu0 %v3008
    %3268 = vmatpush.msra.mxu0 %v3007
    %3269 = vmatmul.f32.gmra.mxu0 %v3249
    %v3270 = vpop.f32.mrf.mxu0
    %v3271 = vadd.f32 0.0, %v3270
    %3272 = vmatmul.f32.gmra.mxu0 %v3250
    %v3273 = vpop.f32.mrf.mxu0
    %v3274 = vadd.f32 0.0, %v3273
    %3275 = vmatmul.f32.gmra.mxu0 %v3251
    %v3276 = vpop.f32.mrf.mxu0
    %v3277 = vadd.f32 0.0, %v3276
    %3278 = vmatmul.f32.gmra.mxu0 %v3252
    %v3279 = vpop.f32.mrf.mxu0
    %v3280 = vadd.f32 0.0, %v3279
    %3281 = vdwg.mxu0
    %3282 = vrot.lane.b32.xlu0 %v3271, 7
    %v3283 = vpop.permute.xlu0 %3282
    %3284 = vrot.lane.b32.xlu0 %v3274, 7
    %v3285 = vpop.permute.xlu0 %3284
    %3286 = vrot.lane.b32.xlu0 %v3277, 7
    %v3287 = vpop.permute.xlu0 %3286
    %3288 = vrot.lane.b32.xlu0 %v3280, 7
    %v3289 = vpop.permute.xlu0 %3288
    %3290 = vrot.lane.b32.xlu0 %v3271, 6
    %v3291 = vpop.permute.xlu0 %3290
    %3292 = vrot.lane.b32.xlu0 %v3274, 6
    %v3293 = vpop.permute.xlu0 %3292
    %3294 = vrot.lane.b32.xlu0 %v3277, 6
    %v3295 = vpop.permute.xlu0 %3294
    %3296 = vrot.lane.b32.xlu0 %v3280, 6
    %v3297 = vpop.permute.xlu0 %3296
    %3298 = vrot.lane.b32.xlu0 %v3271, 5
    %v3299 = vpop.permute.xlu0 %3298
    %3300 = vrot.lane.b32.xlu0 %v3274, 5
    %v3301 = vpop.permute.xlu0 %3300
    %3302 = vrot.lane.b32.xlu0 %v3277, 5
    %v3303 = vpop.permute.xlu0 %3302
    %3304 = vrot.lane.b32.xlu0 %v3280, 5
    %v3305 = vpop.permute.xlu0 %3304
    %3306 = vrot.lane.b32.xlu0 %v3271, 1
    %v3307 = vpop.permute.xlu0 %3306
    %3308 = vrot.lane.b32.xlu0 %v3274, 1
    %v3309 = vpop.permute.xlu0 %3308
    %3310 = vrot.lane.b32.xlu0 %v3277, 1
    %v3311 = vpop.permute.xlu0 %3310
    %3312 = vrot.lane.b32.xlu0 %v3280, 1
    %v3313 = vpop.permute.xlu0 %3312
    %3314 = vrot.lane.b32.xlu0 %v3271, 127
    %v3315 = vpop.permute.xlu0 %3314
    %3316 = vrot.lane.b32.xlu0 %v3274, 127
    %v3317 = vpop.permute.xlu0 %3316
    %3318 = vrot.lane.b32.xlu0 %v3277, 127
    %v3319 = vpop.permute.xlu0 %3318
    %3320 = vrot.lane.b32.xlu0 %v3280, 127
    %v3321 = vpop.permute.xlu0 %3320
    %3322 = vrot.lane.b32.xlu0 %v3271, 123
    %v3323 = vpop.permute.xlu0 %3322
    %3324 = vrot.lane.b32.xlu0 %v3274, 123
    %v3325 = vpop.permute.xlu0 %3324
    %3326 = vrot.lane.b32.xlu0 %v3277, 123
    %v3327 = vpop.permute.xlu0 %3326
    %3328 = vrot.lane.b32.xlu0 %v3280, 123
    %v3329 = vpop.permute.xlu0 %3328
    %3330 = vrot.lane.b32.xlu0 %v3271, 122
    %v3331 = vpop.permute.xlu0 %3330
    %3332 = vrot.lane.b32.xlu0 %v3274, 122
    %v3333 = vpop.permute.xlu0 %3332
    %3334 = vrot.lane.b32.xlu0 %v3277, 122
    %v3335 = vpop.permute.xlu0 %3334
    %3336 = vrot.lane.b32.xlu0 %v3280, 122
    %v3337 = vpop.permute.xlu0 %3336
    %3338 = vrot.lane.b32.xlu0 %v3271, 121
    %v3339 = vpop.permute.xlu0 %3338
    %3340 = vrot.lane.b32.xlu0 %v3274, 121
    %v3341 = vpop.permute.xlu0 %3340
    %3342 = vrot.lane.b32.xlu0 %v3277, 121
    %v3343 = vpop.permute.xlu0 %3342
    %3344 = vrot.lane.b32.xlu0 %v3280, 121
    %v3345 = vpop.permute.xlu0 %3344
    %v3346 = vld [vmem:[%s51] sm:$0xff]
    %v3347 = vld [vmem:[%s51 + $0x8] sm:$0xff]
    %v3348 = vld [vmem:[%s51 + $0x10] sm:$0xff]
    %v3349 = vld [vmem:[%s51 + $0x18] sm:$0xff]
    %v3350 = vld [vmem:[%s51 + $0x20] sm:$0xff]
    %v3351 = vld [vmem:[%s51 + $0x28] sm:$0xff]
    %v3352 = vld [vmem:[%s51 + $0x30] sm:$0xff]
    %v3353 = vld [vmem:[%s51 + $0x38] sm:$0xff]
    %v3354 = vld [vmem:[%s51 + $0x40] sm:$0xff]
    %v3355 = vld [vmem:[%s51 + $0x48] sm:$0xff]
    %v3356 = vld [vmem:[%s51 + $0x50] sm:$0xff]
    %v3357 = vld [vmem:[%s51 + $0x58] sm:$0xff]
    %v3358 = vld [vmem:[%s53] sm:$0xff]
    %v3359 = vld [vmem:[%s53 + $0x8] sm:$0xff]
    %v3360 = vld [vmem:[%s53 + $0x10] sm:$0xff]
    %v3361 = vld [vmem:[%s53 + $0x18] sm:$0xff]
    %3363 = vset.pattern.permute.xlu0 0
    %3364 = vperm.xlu0 %3363, %v3358
    %v3365 = vpop.permute.xlu0 %3364
    %3368 = vset.pattern.permute.xlu0 0
    %3369 = vperm.xlu0 %3368, %v3359
    %v3370 = vpop.permute.xlu0 %3369
    %3373 = vset.pattern.permute.xlu0 0
    %3374 = vperm.xlu0 %3373, %v3360
    %v3375 = vpop.permute.xlu0 %3374
    %3378 = vset.pattern.permute.xlu0 0
    %3379 = vperm.xlu0 %3378, %v3361
    %v3380 = vpop.permute.xlu0 %3379
    %v3383 = vsel %vm500, %v3348, 0
    %v3386 = vsel %vm500, %v3351, 0
    %v3389 = vsel %vm500, %v3354, 0
    %v3392 = vsel %vm500, %v3357, 0
    %3394 = vmatpush.msra.mxu0 %v3313
    %3395 = vmatpush.msra.mxu0 %v3311
    %3396 = vmatpush.msra.mxu0 %v3309
    %3397 = vmatpush.msra.mxu0 %v3307
    %3398 = vmatpush.msra.mxu0 %v3305
    %3399 = vmatpush.msra.mxu0 %v3303
    %3400 = vmatpush.msra.mxu0 %v3301
    %3401 = vmatpush.msra.mxu0 %v3299
    %3402 = vmatpush.msra.mxu0 %v3297
    %3403 = vmatpush.msra.mxu0 %v3295
    %3404 = vmatpush.msra.mxu0 %v3293
    %3405 = vmatpush.msra.mxu0 %v3291
    %3406 = vmatpush.msra.mxu0 %v3289
    %3407 = vmatpush.msra.mxu0 %v3287
    %3408 = vmatpush.msra.mxu0 %v3285
    %3409 = vmatpush.msra.mxu0 %v3283
    %3410 = vmatmul.f32.gmra.mxu0 %v3346
    %v3411 = vpop.f32.mrf.mxu0
    %v3412 = vadd.f32 %v3365, %v3411
    %3413 = vmatmul.f32.gmra.mxu0 %v3349
    %v3414 = vpop.f32.mrf.mxu0
    %v3415 = vadd.f32 %v3370, %v3414
    %3416 = vmatmul.f32.gmra.mxu0 %v3352
    %v3417 = vpop.f32.mrf.mxu0
    %v3418 = vadd.f32 %v3375, %v3417
    %3419 = vmatmul.f32.gmra.mxu0 %v3355
    %v3420 = vpop.f32.mrf.mxu0
    %v3421 = vadd.f32 %v3380, %v3420
    %3422 = vdwg.mxu0
    %3423 = vmatpush.msra.mxu0 %v3337
    %3424 = vmatpush.msra.mxu0 %v3335
    %3425 = vmatpush.msra.mxu0 %v3333
    %3426 = vmatpush.msra.mxu0 %v3331
    %3427 = vmatpush.msra.mxu0 %v3329
    %3428 = vmatpush.msra.mxu0 %v3327
    %3429 = vmatpush.msra.mxu0 %v3325
    %3430 = vmatpush.msra.mxu0 %v3323
    %3431 = vmatpush.msra.mxu0 %v3321
    %3432 = vmatpush.msra.mxu0 %v3319
    %3433 = vmatpush.msra.mxu0 %v3317
    %3434 = vmatpush.msra.mxu0 %v3315
    %3435 = vmatpush.msra.mxu0 %v3280
    %3436 = vmatpush.msra.mxu0 %v3277
    %3437 = vmatpush.msra.mxu0 %v3274
    %3438 = vmatpush.msra.mxu0 %v3271
    %3439 = vmatmul.f32.gmra.mxu0 %v3347
    %v3440 = vpop.f32.mrf.mxu0
    %v3441 = vadd.f32 %v3412, %v3440
    %3442 = vmatmul.f32.gmra.mxu0 %v3350
    %v3443 = vpop.f32.mrf.mxu0
    %v3444 = vadd.f32 %v3415, %v3443
    %3445 = vmatmul.f32.gmra.mxu0 %v3353
    %v3446 = vpop.f32.mrf.mxu0
    %v3447 = vadd.f32 %v3418, %v3446
    %3448 = vmatmul.f32.gmra.mxu0 %v3356
    %v3449 = vpop.f32.mrf.mxu0
    %v3450 = vadd.f32 %v3421, %v3449
    %3451 = vdwg.mxu0
    %3452 = vmatpush.msra.mxu0 0.0
    %3453 = vmatpush.msra.mxu0 0.0
    %3454 = vmatpush.msra.mxu0 0.0
    %3455 = vmatpush.msra.mxu0 0.0
    %3456 = vmatpush.msra.mxu0 0.0
    %3457 = vmatpush.msra.mxu0 0.0
    %3458 = vmatpush.msra.mxu0 0.0
    %3459 = vmatpush.msra.mxu0 0.0
    %3460 = vmatpush.msra.mxu0 0.0
    %3461 = vmatpush.msra.mxu0 0.0
    %3462 = vmatpush.msra.mxu0 0.0
    %3463 = vmatpush.msra.mxu0 0.0
    %3464 = vmatpush.msra.mxu0 %v3345
    %3465 = vmatpush.msra.mxu0 %v3343
    %3466 = vmatpush.msra.mxu0 %v3341
    %3467 = vmatpush.msra.mxu0 %v3339
    %3468 = vmatmul.f32.gmra.mxu0 %v3383
    %v3469 = vpop.f32.mrf.mxu0
    %v3470 = vadd.f32 %v3441, %v3469
    %3471 = vmatmul.f32.gmra.mxu0 %v3386
    %v3472 = vpop.f32.mrf.mxu0
    %v3473 = vadd.f32 %v3444, %v3472
    %3474 = vmatmul.f32.gmra.mxu0 %v3389
    %v3475 = vpop.f32.mrf.mxu0
    %v3476 = vadd.f32 %v3447, %v3475
    %3477 = vmatmul.f32.gmra.mxu0 %v3392
    %v3478 = vpop.f32.mrf.mxu0
    %v3479 = vadd.f32 %v3450, %v3478
    %3480 = vdwg.mxu0
    %v3481 = vadd.f32 %v3470, %v3104
    %v3482 = vadd.f32 %v3473, %v3107
    %v3483 = vadd.f32 %v3476, %v3110
    %v3484 = vadd.f32 %v3479, %v3113
    %v3485 = vmax.f32 %v3481, 0.0
    %v3486 = vmax.f32 %v3482, 0.0
    %v3487 = vmax.f32 %v3483, 0.0
    %v3488 = vmax.f32 %v3484, 0.0
    %v3489 = vld [vmem:[#allocation7] sm:$0x1]
    %v3491 = vperm.slane %v3489, 0
    %v3493 = vmul.f32 %v3485, %v3491
    %v3494 = vmul.f32 %v3486, %v3491
    %v3495 = vmul.f32 %v3487, %v3491
    %v3496 = vmul.f32 %v3488, %v3491
    %v3497 = vld [vmem:[#allocation15] sm:$0xff]
    %v3498 = vld [vmem:[#allocation15 + $0x8] sm:$0xff]
    %v3499 = vld [vmem:[#allocation15 + $0x10] sm:$0xff]
    %v3500 = vld [vmem:[#allocation15 + $0x18] sm:$0xff]
    %v3501 = vld [vmem:[#allocation15 + $0x20] sm:$0xff]
    %v3502 = vld [vmem:[#allocation15 + $0x28] sm:$0xff]
    %v3503 = vld [vmem:[#allocation15 + $0x30] sm:$0xff]
    %v3504 = vld [vmem:[#allocation15 + $0x38] sm:$0xff]
    %v3505 = vld [vmem:[#allocation15 + $0x40] sm:$0xff]
    %v3506 = vld [vmem:[#allocation15 + $0x48] sm:$0xff]
    %v3507 = vld [vmem:[#allocation15 + $0x50] sm:$0xff]
    %v3508 = vld [vmem:[#allocation15 + $0x58] sm:$0xff]
    %v3509 = vld [vmem:[#allocation15 + $0x60] sm:$0xff]
    %v3510 = vld [vmem:[#allocation15 + $0x68] sm:$0xff]
    %v3511 = vld [vmem:[#allocation15 + $0x70] sm:$0xff]
    %v3512 = vld [vmem:[#allocation15 + $0x78] sm:$0xff]
    %3513 = vmatpush.msra.mxu0 %v3512
    %3514 = vmatpush.msra.mxu0 %v3511
    %3515 = vmatpush.msra.mxu0 %v3510
    %3516 = vmatpush.msra.mxu0 %v3509
    %3517 = vmatpush.msra.mxu0 %v3508
    %3518 = vmatpush.msra.mxu0 %v3507
    %3519 = vmatpush.msra.mxu0 %v3506
    %3520 = vmatpush.msra.mxu0 %v3505
    %3521 = vmatpush.msra.mxu0 %v3504
    %3522 = vmatpush.msra.mxu0 %v3503
    %3523 = vmatpush.msra.mxu0 %v3502
    %3524 = vmatpush.msra.mxu0 %v3501
    %3525 = vmatpush.msra.mxu0 %v3500
    %3526 = vmatpush.msra.mxu0 %v3499
    %3527 = vmatpush.msra.mxu0 %v3498
    %3528 = vmatpush.msra.mxu0 %v3497
    %3529 = vmatmul.f32.gmra.mxu0 %v3493
    %v3530 = vpop.f32.mrf.mxu0
    %v3531 = vadd.f32 0.0, %v3530
    %3532 = vmatmul.f32.gmra.mxu0 %v3494
    %v3533 = vpop.f32.mrf.mxu0
    %v3534 = vadd.f32 0.0, %v3533
    %3535 = vmatmul.f32.gmra.mxu0 %v3495
    %v3536 = vpop.f32.mrf.mxu0
    %v3537 = vadd.f32 0.0, %v3536
    %3538 = vmatmul.f32.gmra.mxu0 %v3496
    %v3539 = vpop.f32.mrf.mxu0
    %v3540 = vadd.f32 0.0, %v3539
    %3541 = vdwg.mxu0
    %v3542 = vld [vmem:[%s67] sm:$0xff]
    %v3543 = vld [vmem:[%s67 + $0x8] sm:$0xff]
    %v3544 = vld [vmem:[%s67 + $0x10] sm:$0xff]
    %v3545 = vld [vmem:[%s67 + $0x18] sm:$0xff]
    %v3546 = vld [vmem:[%s67 + $0x20] sm:$0xff]
    %v3547 = vld [vmem:[%s67 + $0x28] sm:$0xff]
    %v3548 = vld [vmem:[%s67 + $0x30] sm:$0xff]
    %v3549 = vld [vmem:[%s67 + $0x38] sm:$0xff]
    %v3550 = vld [vmem:[%s69] sm:$0xff]
    %v3551 = vld [vmem:[%s69 + $0x8] sm:$0xff]
    %v3552 = vld [vmem:[%s69 + $0x10] sm:$0xff]
    %v3553 = vld [vmem:[%s69 + $0x18] sm:$0xff]
    %v3554 = vld [vmem:[%s69 + $0x20] sm:$0xff]
    %v3555 = vld [vmem:[%s69 + $0x28] sm:$0xff]
    %v3556 = vld [vmem:[%s69 + $0x30] sm:$0xff]
    %v3557 = vld [vmem:[%s69 + $0x38] sm:$0xff]
    %3559 = vset.pattern.permute.xlu0 0
    %3560 = vperm.xlu0 %3559, %v3550
    %v3561 = vpop.permute.xlu0 %3560
    %3564 = vset.pattern.permute.xlu0 0
    %3565 = vperm.xlu0 %3564, %v3551
    %v3566 = vpop.permute.xlu0 %3565
    %3569 = vset.pattern.permute.xlu0 0
    %3570 = vperm.xlu0 %3569, %v3552
    %v3571 = vpop.permute.xlu0 %3570
    %3574 = vset.pattern.permute.xlu0 0
    %3575 = vperm.xlu0 %3574, %v3553
    %v3576 = vpop.permute.xlu0 %3575
    %3579 = vset.pattern.permute.xlu0 0
    %3580 = vperm.xlu0 %3579, %v3554
    %v3581 = vpop.permute.xlu0 %3580
    %3584 = vset.pattern.permute.xlu0 0
    %3585 = vperm.xlu0 %3584, %v3555
    %v3586 = vpop.permute.xlu0 %3585
    %3589 = vset.pattern.permute.xlu0 0
    %3590 = vperm.xlu0 %3589, %v3556
    %v3591 = vpop.permute.xlu0 %3590
    %3594 = vset.pattern.permute.xlu0 0
    %3595 = vperm.xlu0 %3594, %v3557
    %v3596 = vpop.permute.xlu0 %3595
    %v3599 = vsel %vm500, %v3542, 0
    %v3602 = vsel %vm500, %v3543, 0
    %v3605 = vsel %vm500, %v3544, 0
    %v3608 = vsel %vm500, %v3545, 0
    %v3611 = vsel %vm500, %v3546, 0
    %v3614 = vsel %vm500, %v3547, 0
    %v3617 = vsel %vm500, %v3548, 0
    %v3620 = vsel %vm500, %v3549, 0
    %3622 = vmatpush.msra.mxu0 0.0
    %3623 = vmatpush.msra.mxu0 0.0
    %3624 = vmatpush.msra.mxu0 0.0
    %3625 = vmatpush.msra.mxu0 0.0
    %3626 = vmatpush.msra.mxu0 0.0
    %3627 = vmatpush.msra.mxu0 0.0
    %3628 = vmatpush.msra.mxu0 0.0
    %3629 = vmatpush.msra.mxu0 0.0
    %3630 = vmatpush.msra.mxu0 0.0
    %3631 = vmatpush.msra.mxu0 0.0
    %3632 = vmatpush.msra.mxu0 0.0
    %3633 = vmatpush.msra.mxu0 0.0
    %3634 = vmatpush.msra.mxu0 %v3540
    %3635 = vmatpush.msra.mxu0 %v3537
    %3636 = vmatpush.msra.mxu0 %v3534
    %3637 = vmatpush.msra.mxu0 %v3531
    %3638 = vmatmul.f32.gmra.mxu0 %v3599
    %v3639 = vpop.f32.mrf.mxu0
    %v3640 = vadd.f32 %v3561, %v3639
    %3641 = vmatmul.f32.gmra.mxu0 %v3602
    %v3642 = vpop.f32.mrf.mxu0
    %v3643 = vadd.f32 %v3566, %v3642
    %3644 = vmatmul.f32.gmra.mxu0 %v3605
    %v3645 = vpop.f32.mrf.mxu0
    %v3646 = vadd.f32 %v3571, %v3645
    %3647 = vmatmul.f32.gmra.mxu0 %v3608
    %v3648 = vpop.f32.mrf.mxu0
    %v3649 = vadd.f32 %v3576, %v3648
    %3650 = vmatmul.f32.gmra.mxu0 %v3611
    %v3651 = vpop.f32.mrf.mxu0
    %v3652 = vadd.f32 %v3581, %v3651
    %3653 = vmatmul.f32.gmra.mxu0 %v3614
    %v3654 = vpop.f32.mrf.mxu0
    %v3655 = vadd.f32 %v3586, %v3654
    %3656 = vmatmul.f32.gmra.mxu0 %v3617
    %v3657 = vpop.f32.mrf.mxu0
    %v3658 = vadd.f32 %v3591, %v3657
    %3659 = vmatmul.f32.gmra.mxu0 %v3620
    %v3660 = vpop.f32.mrf.mxu0
    %v3661 = vadd.f32 %v3596, %v3660
    %3662 = vdwg.mxu0
    %3663 = vrot.lane.b32.xlu0 %v3493, 7
    %v3664 = vpop.permute.xlu0 %3663
    %3665 = vrot.lane.b32.xlu0 %v3494, 7
    %v3666 = vpop.permute.xlu0 %3665
    %3667 = vrot.lane.b32.xlu0 %v3495, 7
    %v3668 = vpop.permute.xlu0 %3667
    %3669 = vrot.lane.b32.xlu0 %v3496, 7
    %v3670 = vpop.permute.xlu0 %3669
    %3671 = vrot.lane.b32.xlu0 %v3493, 6
    %v3672 = vpop.permute.xlu0 %3671
    %3673 = vrot.lane.b32.xlu0 %v3494, 6
    %v3674 = vpop.permute.xlu0 %3673
    %3675 = vrot.lane.b32.xlu0 %v3495, 6
    %v3676 = vpop.permute.xlu0 %3675
    %3677 = vrot.lane.b32.xlu0 %v3496, 6
    %v3678 = vpop.permute.xlu0 %3677
    %3679 = vrot.lane.b32.xlu0 %v3493, 5
    %v3680 = vpop.permute.xlu0 %3679
    %3681 = vrot.lane.b32.xlu0 %v3494, 5
    %v3682 = vpop.permute.xlu0 %3681
    %3683 = vrot.lane.b32.xlu0 %v3495, 5
    %v3684 = vpop.permute.xlu0 %3683
    %3685 = vrot.lane.b32.xlu0 %v3496, 5
    %v3686 = vpop.permute.xlu0 %3685
    %3687 = vrot.lane.b32.xlu0 %v3493, 1
    %v3688 = vpop.permute.xlu0 %3687
    %3689 = vrot.lane.b32.xlu0 %v3494, 1
    %v3690 = vpop.permute.xlu0 %3689
    %3691 = vrot.lane.b32.xlu0 %v3495, 1
    %v3692 = vpop.permute.xlu0 %3691
    %3693 = vrot.lane.b32.xlu0 %v3496, 1
    %v3694 = vpop.permute.xlu0 %3693
    %3695 = vrot.lane.b32.xlu0 %v3493, 127
    %v3696 = vpop.permute.xlu0 %3695
    %3697 = vrot.lane.b32.xlu0 %v3494, 127
    %v3698 = vpop.permute.xlu0 %3697
    %3699 = vrot.lane.b32.xlu0 %v3495, 127
    %v3700 = vpop.permute.xlu0 %3699
    %3701 = vrot.lane.b32.xlu0 %v3496, 127
    %v3702 = vpop.permute.xlu0 %3701
    %3703 = vrot.lane.b32.xlu0 %v3493, 123
    %v3704 = vpop.permute.xlu0 %3703
    %3705 = vrot.lane.b32.xlu0 %v3494, 123
    %v3706 = vpop.permute.xlu0 %3705
    %3707 = vrot.lane.b32.xlu0 %v3495, 123
    %v3708 = vpop.permute.xlu0 %3707
    %3709 = vrot.lane.b32.xlu0 %v3496, 123
    %v3710 = vpop.permute.xlu0 %3709
    %3711 = vrot.lane.b32.xlu0 %v3493, 122
    %v3712 = vpop.permute.xlu0 %3711
    %3713 = vrot.lane.b32.xlu0 %v3494, 122
    %v3714 = vpop.permute.xlu0 %3713
    %3715 = vrot.lane.b32.xlu0 %v3495, 122
    %v3716 = vpop.permute.xlu0 %3715
    %3717 = vrot.lane.b32.xlu0 %v3496, 122
    %v3718 = vpop.permute.xlu0 %3717
    %3719 = vrot.lane.b32.xlu0 %v3493, 121
    %v3720 = vpop.permute.xlu0 %3719
    %3721 = vrot.lane.b32.xlu0 %v3494, 121
    %v3722 = vpop.permute.xlu0 %3721
    %3723 = vrot.lane.b32.xlu0 %v3495, 121
    %v3724 = vpop.permute.xlu0 %3723
    %3725 = vrot.lane.b32.xlu0 %v3496, 121
    %v3726 = vpop.permute.xlu0 %3725
    %v3727 = vld [vmem:[%s59] sm:$0xff]
    %v3728 = vld [vmem:[%s59 + $0x8] sm:$0xff]
    %v3729 = vld [vmem:[%s59 + $0x10] sm:$0xff]
    %v3730 = vld [vmem:[%s59 + $0x18] sm:$0xff]
    %v3731 = vld [vmem:[%s59 + $0x20] sm:$0xff]
    %v3732 = vld [vmem:[%s59 + $0x28] sm:$0xff]
    %v3733 = vld [vmem:[%s59 + $0x30] sm:$0xff]
    %v3734 = vld [vmem:[%s59 + $0x38] sm:$0xff]
    %v3735 = vld [vmem:[%s59 + $0x40] sm:$0xff]
    %v3736 = vld [vmem:[%s59 + $0x48] sm:$0xff]
    %v3737 = vld [vmem:[%s59 + $0x50] sm:$0xff]
    %v3738 = vld [vmem:[%s59 + $0x58] sm:$0xff]
    %v3739 = vld [vmem:[%s59 + $0x60] sm:$0xff]
    %v3740 = vld [vmem:[%s59 + $0x68] sm:$0xff]
    %v3741 = vld [vmem:[%s59 + $0x70] sm:$0xff]
    %v3742 = vld [vmem:[%s59 + $0x78] sm:$0xff]
    %v3743 = vld [vmem:[%s59 + $0x80] sm:$0xff]
    %v3744 = vld [vmem:[%s59 + $0x88] sm:$0xff]
    %v3745 = vld [vmem:[%s59 + $0x90] sm:$0xff]
    %v3746 = vld [vmem:[%s59 + $0x98] sm:$0xff]
    %v3747 = vld [vmem:[%s59 + $0xa0] sm:$0xff]
    %v3748 = vld [vmem:[%s59 + $0xa8] sm:$0xff]
    %v3749 = vld [vmem:[%s59 + $0xb0] sm:$0xff]
    %v3750 = vld [vmem:[%s59 + $0xb8] sm:$0xff]
    %v3751 = vld [vmem:[%s61] sm:$0xff]
    %v3752 = vld [vmem:[%s61 + $0x8] sm:$0xff]
    %v3753 = vld [vmem:[%s61 + $0x10] sm:$0xff]
    %v3754 = vld [vmem:[%s61 + $0x18] sm:$0xff]
    %v3755 = vld [vmem:[%s61 + $0x20] sm:$0xff]
    %v3756 = vld [vmem:[%s61 + $0x28] sm:$0xff]
    %v3757 = vld [vmem:[%s61 + $0x30] sm:$0xff]
    %v3758 = vld [vmem:[%s61 + $0x38] sm:$0xff]
    %3760 = vset.pattern.permute.xlu0 0
    %3761 = vperm.xlu0 %3760, %v3751
    %v3762 = vpop.permute.xlu0 %3761
    %3765 = vset.pattern.permute.xlu0 0
    %3766 = vperm.xlu0 %3765, %v3752
    %v3767 = vpop.permute.xlu0 %3766
    %3770 = vset.pattern.permute.xlu0 0
    %3771 = vperm.xlu0 %3770, %v3753
    %v3772 = vpop.permute.xlu0 %3771
    %3775 = vset.pattern.permute.xlu0 0
    %3776 = vperm.xlu0 %3775, %v3754
    %v3777 = vpop.permute.xlu0 %3776
    %3780 = vset.pattern.permute.xlu0 0
    %3781 = vperm.xlu0 %3780, %v3755
    %v3782 = vpop.permute.xlu0 %3781
    %3785 = vset.pattern.permute.xlu0 0
    %3786 = vperm.xlu0 %3785, %v3756
    %v3787 = vpop.permute.xlu0 %3786
    %3790 = vset.pattern.permute.xlu0 0
    %3791 = vperm.xlu0 %3790, %v3757
    %v3792 = vpop.permute.xlu0 %3791
    %3795 = vset.pattern.permute.xlu0 0
    %3796 = vperm.xlu0 %3795, %v3758
    %v3797 = vpop.permute.xlu0 %3796
    %v3800 = vsel %vm500, %v3729, 0
    %v3803 = vsel %vm500, %v3732, 0
    %v3806 = vsel %vm500, %v3735, 0
    %v3809 = vsel %vm500, %v3738, 0
    %v3812 = vsel %vm500, %v3741, 0
    %v3815 = vsel %vm500, %v3744, 0
    %v3818 = vsel %vm500, %v3747, 0
    %v3821 = vsel %vm500, %v3750, 0
    %3823 = vmatpush.msra.mxu0 %v3694
    %3824 = vmatpush.msra.mxu0 %v3692
    %3825 = vmatpush.msra.mxu0 %v3690
    %3826 = vmatpush.msra.mxu0 %v3688
    %3827 = vmatpush.msra.mxu0 %v3686
    %3828 = vmatpush.msra.mxu0 %v3684
    %3829 = vmatpush.msra.mxu0 %v3682
    %3830 = vmatpush.msra.mxu0 %v3680
    %3831 = vmatpush.msra.mxu0 %v3678
    %3832 = vmatpush.msra.mxu0 %v3676
    %3833 = vmatpush.msra.mxu0 %v3674
    %3834 = vmatpush.msra.mxu0 %v3672
    %3835 = vmatpush.msra.mxu0 %v3670
    %3836 = vmatpush.msra.mxu0 %v3668
    %3837 = vmatpush.msra.mxu0 %v3666
    %3838 = vmatpush.msra.mxu0 %v3664
    %3839 = vmatmul.f32.gmra.mxu0 %v3727
    %v3840 = vpop.f32.mrf.mxu0
    %v3841 = vadd.f32 %v3762, %v3840
    %3842 = vmatmul.f32.gmra.mxu0 %v3730
    %v3843 = vpop.f32.mrf.mxu0
    %v3844 = vadd.f32 %v3767, %v3843
    %3845 = vmatmul.f32.gmra.mxu0 %v3733
    %v3846 = vpop.f32.mrf.mxu0
    %v3847 = vadd.f32 %v3772, %v3846
    %3848 = vmatmul.f32.gmra.mxu0 %v3736
    %v3849 = vpop.f32.mrf.mxu0
    %v3850 = vadd.f32 %v3777, %v3849
    %3851 = vmatmul.f32.gmra.mxu0 %v3739
    %v3852 = vpop.f32.mrf.mxu0
    %v3853 = vadd.f32 %v3782, %v3852
    %3854 = vmatmul.f32.gmra.mxu0 %v3742
    %v3855 = vpop.f32.mrf.mxu0
    %v3856 = vadd.f32 %v3787, %v3855
    %3857 = vmatmul.f32.gmra.mxu0 %v3745
    %v3858 = vpop.f32.mrf.mxu0
    %v3859 = vadd.f32 %v3792, %v3858
    %3860 = vmatmul.f32.gmra.mxu0 %v3748
    %v3861 = vpop.f32.mrf.mxu0
    %v3862 = vadd.f32 %v3797, %v3861
    %3863 = vdwg.mxu0
    %3864 = vmatpush.msra.mxu0 %v3718
    %3865 = vmatpush.msra.mxu0 %v3716
    %3866 = vmatpush.msra.mxu0 %v3714
    %3867 = vmatpush.msra.mxu0 %v3712
    %3868 = vmatpush.msra.mxu0 %v3710
    %3869 = vmatpush.msra.mxu0 %v3708
    %3870 = vmatpush.msra.mxu0 %v3706
    %3871 = vmatpush.msra.mxu0 %v3704
    %3872 = vmatpush.msra.mxu0 %v3702
    %3873 = vmatpush.msra.mxu0 %v3700
    %3874 = vmatpush.msra.mxu0 %v3698
    %3875 = vmatpush.msra.mxu0 %v3696
    %3876 = vmatpush.msra.mxu0 %v3496
    %3877 = vmatpush.msra.mxu0 %v3495
    %3878 = vmatpush.msra.mxu0 %v3494
    %3879 = vmatpush.msra.mxu0 %v3493
    %3880 = vmatmul.f32.gmra.mxu0 %v3728
    %v3881 = vpop.f32.mrf.mxu0
    %v3882 = vadd.f32 %v3841, %v3881
    %3883 = vmatmul.f32.gmra.mxu0 %v3731
    %v3884 = vpop.f32.mrf.mxu0
    %v3885 = vadd.f32 %v3844, %v3884
    %3886 = vmatmul.f32.gmra.mxu0 %v3734
    %v3887 = vpop.f32.mrf.mxu0
    %v3888 = vadd.f32 %v3847, %v3887
    %3889 = vmatmul.f32.gmra.mxu0 %v3737
    %v3890 = vpop.f32.mrf.mxu0
    %v3891 = vadd.f32 %v3850, %v3890
    %3892 = vmatmul.f32.gmra.mxu0 %v3740
    %v3893 = vpop.f32.mrf.mxu0
    %v3894 = vadd.f32 %v3853, %v3893
    %3895 = vmatmul.f32.gmra.mxu0 %v3743
    %v3896 = vpop.f32.mrf.mxu0
    %v3897 = vadd.f32 %v3856, %v3896
    %3898 = vmatmul.f32.gmra.mxu0 %v3746
    %v3899 = vpop.f32.mrf.mxu0
    %v3900 = vadd.f32 %v3859, %v3899
    %3901 = vmatmul.f32.gmra.mxu0 %v3749
    %v3902 = vpop.f32.mrf.mxu0
    %v3903 = vadd.f32 %v3862, %v3902
    %3904 = vdwg.mxu0
    %3905 = vmatpush.msra.mxu0 0.0
    %3906 = vmatpush.msra.mxu0 0.0
    %3907 = vmatpush.msra.mxu0 0.0
    %3908 = vmatpush.msra.mxu0 0.0
    %3909 = vmatpush.msra.mxu0 0.0
    %3910 = vmatpush.msra.mxu0 0.0
    %3911 = vmatpush.msra.mxu0 0.0
    %3912 = vmatpush.msra.mxu0 0.0
    %3913 = vmatpush.msra.mxu0 0.0
    %3914 = vmatpush.msra.mxu0 0.0
    %3915 = vmatpush.msra.mxu0 0.0
    %3916 = vmatpush.msra.mxu0 0.0
    %3917 = vmatpush.msra.mxu0 %v3726
    %3918 = vmatpush.msra.mxu0 %v3724
    %3919 = vmatpush.msra.mxu0 %v3722
    %3920 = vmatpush.msra.mxu0 %v3720
    %3921 = vmatmul.f32.gmra.mxu0 %v3800
    %v3922 = vpop.f32.mrf.mxu0
    %v3923 = vadd.f32 %v3882, %v3922
    %3924 = vmatmul.f32.gmra.mxu0 %v3803
    %v3925 = vpop.f32.mrf.mxu0
    %v3926 = vadd.f32 %v3885, %v3925
    %3927 = vmatmul.f32.gmra.mxu0 %v3806
    %v3928 = vpop.f32.mrf.mxu0
    %v3929 = vadd.f32 %v3888, %v3928
    %3930 = vmatmul.f32.gmra.mxu0 %v3809
    %v3931 = vpop.f32.mrf.mxu0
    %v3932 = vadd.f32 %v3891, %v3931
    %3933 = vmatmul.f32.gmra.mxu0 %v3812
    %v3934 = vpop.f32.mrf.mxu0
    %v3935 = vadd.f32 %v3894, %v3934
    %3936 = vmatmul.f32.gmra.mxu0 %v3815
    %v3937 = vpop.f32.mrf.mxu0
    %v3938 = vadd.f32 %v3897, %v3937
    %3939 = vmatmul.f32.gmra.mxu0 %v3818
    %v3940 = vpop.f32.mrf.mxu0
    %v3941 = vadd.f32 %v3900, %v3940
    %3942 = vmatmul.f32.gmra.mxu0 %v3821
    %v3943 = vpop.f32.mrf.mxu0
    %v3944 = vadd.f32 %v3903, %v3943
    %3945 = vdwg.mxu0
    %v3946 = vmax.f32 %v3923, 0.0
    %v3947 = vmax.f32 %v3926, 0.0
    %v3948 = vmax.f32 %v3929, 0.0
    %v3949 = vmax.f32 %v3932, 0.0
    %v3950 = vmax.f32 %v3935, 0.0
    %v3951 = vmax.f32 %v3938, 0.0
    %v3952 = vmax.f32 %v3941, 0.0
    %v3953 = vmax.f32 %v3944, 0.0
    %3954 = vmatpush.msra.mxu0 %v3512
    %3955 = vmatpush.msra.mxu0 %v3511
    %3956 = vmatpush.msra.mxu0 %v3510
    %3957 = vmatpush.msra.mxu0 %v3509
    %3958 = vmatpush.msra.mxu0 %v3508
    %3959 = vmatpush.msra.mxu0 %v3507
    %3960 = vmatpush.msra.mxu0 %v3506
    %3961 = vmatpush.msra.mxu0 %v3505
    %3962 = vmatpush.msra.mxu0 %v3504
    %3963 = vmatpush.msra.mxu0 %v3503
    %3964 = vmatpush.msra.mxu0 %v3502
    %3965 = vmatpush.msra.mxu0 %v3501
    %3966 = vmatpush.msra.mxu0 %v3500
    %3967 = vmatpush.msra.mxu0 %v3499
    %3968 = vmatpush.msra.mxu0 %v3498
    %3969 = vmatpush.msra.mxu0 %v3497
    %3970 = vmatmul.f32.gmra.mxu0 %v3946
    %v3971 = vpop.f32.mrf.mxu0
    %v3972 = vadd.f32 0.0, %v3971
    %3973 = vmatmul.f32.gmra.mxu0 %v3947
    %v3974 = vpop.f32.mrf.mxu0
    %v3975 = vadd.f32 0.0, %v3974
    %3976 = vmatmul.f32.gmra.mxu0 %v3948
    %v3977 = vpop.f32.mrf.mxu0
    %v3978 = vadd.f32 0.0, %v3977
    %3979 = vmatmul.f32.gmra.mxu0 %v3949
    %v3980 = vpop.f32.mrf.mxu0
    %v3981 = vadd.f32 0.0, %v3980
    %3982 = vmatmul.f32.gmra.mxu0 %v3950
    %v3983 = vpop.f32.mrf.mxu0
    %v3984 = vadd.f32 0.0, %v3983
    %3985 = vmatmul.f32.gmra.mxu0 %v3951
    %v3986 = vpop.f32.mrf.mxu0
    %v3987 = vadd.f32 0.0, %v3986
    %3988 = vmatmul.f32.gmra.mxu0 %v3952
    %v3989 = vpop.f32.mrf.mxu0
    %v3990 = vadd.f32 0.0, %v3989
    %3991 = vmatmul.f32.gmra.mxu0 %v3953
    %v3992 = vpop.f32.mrf.mxu0
    %v3993 = vadd.f32 0.0, %v3992
    %3994 = vdwg.mxu0
    %3995 = vrot.lane.b32.xlu0 %v3972, 5
    %v3996 = vpop.permute.xlu0 %3995
    %3997 = vrot.lane.b32.xlu0 %v3975, 5
    %v3998 = vpop.permute.xlu0 %3997
    %3999 = vrot.lane.b32.xlu0 %v3978, 5
    %v4000 = vpop.permute.xlu0 %3999
    %4001 = vrot.lane.b32.xlu0 %v3981, 5
    %v4002 = vpop.permute.xlu0 %4001
    %4003 = vrot.lane.b32.xlu0 %v3984, 5
    %v4004 = vpop.permute.xlu0 %4003
    %4005 = vrot.lane.b32.xlu0 %v3987, 5
    %v4006 = vpop.permute.xlu0 %4005
    %4007 = vrot.lane.b32.xlu0 %v3990, 5
    %v4008 = vpop.permute.xlu0 %4007
    %4009 = vrot.lane.b32.xlu0 %v3993, 5
    %v4010 = vpop.permute.xlu0 %4009
    %4011 = vrot.lane.b32.xlu0 %v3972, 4
    %v4012 = vpop.permute.xlu0 %4011
    %4013 = vrot.lane.b32.xlu0 %v3975, 4
    %v4014 = vpop.permute.xlu0 %4013
    %4015 = vrot.lane.b32.xlu0 %v3978, 4
    %v4016 = vpop.permute.xlu0 %4015
    %4017 = vrot.lane.b32.xlu0 %v3981, 4
    %v4018 = vpop.permute.xlu0 %4017
    %4019 = vrot.lane.b32.xlu0 %v3984, 4
    %v4020 = vpop.permute.xlu0 %4019
    %4021 = vrot.lane.b32.xlu0 %v3987, 4
    %v4022 = vpop.permute.xlu0 %4021
    %4023 = vrot.lane.b32.xlu0 %v3990, 4
    %v4024 = vpop.permute.xlu0 %4023
    %4025 = vrot.lane.b32.xlu0 %v3993, 4
    %v4026 = vpop.permute.xlu0 %4025
    %4027 = vrot.lane.b32.xlu0 %v3972, 3
    %v4028 = vpop.permute.xlu0 %4027
    %4029 = vrot.lane.b32.xlu0 %v3975, 3
    %v4030 = vpop.permute.xlu0 %4029
    %4031 = vrot.lane.b32.xlu0 %v3978, 3
    %v4032 = vpop.permute.xlu0 %4031
    %4033 = vrot.lane.b32.xlu0 %v3981, 3
    %v4034 = vpop.permute.xlu0 %4033
    %4035 = vrot.lane.b32.xlu0 %v3984, 3
    %v4036 = vpop.permute.xlu0 %4035
    %4037 = vrot.lane.b32.xlu0 %v3987, 3
    %v4038 = vpop.permute.xlu0 %4037
    %4039 = vrot.lane.b32.xlu0 %v3990, 3
    %v4040 = vpop.permute.xlu0 %4039
    %4041 = vrot.lane.b32.xlu0 %v3993, 3
    %v4042 = vpop.permute.xlu0 %4041
    %4043 = vrot.lane.b32.xlu0 %v3972, 1
    %v4044 = vpop.permute.xlu0 %4043
    %4045 = vrot.lane.b32.xlu0 %v3975, 1
    %v4046 = vpop.permute.xlu0 %4045
    %4047 = vrot.lane.b32.xlu0 %v3978, 1
    %v4048 = vpop.permute.xlu0 %4047
    %4049 = vrot.lane.b32.xlu0 %v3981, 1
    %v4050 = vpop.permute.xlu0 %4049
    %4051 = vrot.lane.b32.xlu0 %v3984, 1
    %v4052 = vpop.permute.xlu0 %4051
    %4053 = vrot.lane.b32.xlu0 %v3987, 1
    %v4054 = vpop.permute.xlu0 %4053
    %4055 = vrot.lane.b32.xlu0 %v3990, 1
    %v4056 = vpop.permute.xlu0 %4055
    %4057 = vrot.lane.b32.xlu0 %v3993, 1
    %v4058 = vpop.permute.xlu0 %4057
    %4059 = vrot.lane.b32.xlu0 %v3972, 127
    %v4060 = vpop.permute.xlu0 %4059
    %4061 = vrot.lane.b32.xlu0 %v3975, 127
    %v4062 = vpop.permute.xlu0 %4061
    %4063 = vrot.lane.b32.xlu0 %v3978, 127
    %v4064 = vpop.permute.xlu0 %4063
    %4065 = vrot.lane.b32.xlu0 %v3981, 127
    %v4066 = vpop.permute.xlu0 %4065
    %4067 = vrot.lane.b32.xlu0 %v3984, 127
    %v4068 = vpop.permute.xlu0 %4067
    %4069 = vrot.lane.b32.xlu0 %v3987, 127
    %v4070 = vpop.permute.xlu0 %4069
    %4071 = vrot.lane.b32.xlu0 %v3990, 127
    %v4072 = vpop.permute.xlu0 %4071
    %4073 = vrot.lane.b32.xlu0 %v3993, 127
    %v4074 = vpop.permute.xlu0 %4073
    %4075 = vrot.lane.b32.xlu0 %v3972, 125
    %v4076 = vpop.permute.xlu0 %4075
    %4077 = vrot.lane.b32.xlu0 %v3975, 125
    %v4078 = vpop.permute.xlu0 %4077
    %4079 = vrot.lane.b32.xlu0 %v3978, 125
    %v4080 = vpop.permute.xlu0 %4079
    %4081 = vrot.lane.b32.xlu0 %v3981, 125
    %v4082 = vpop.permute.xlu0 %4081
    %4083 = vrot.lane.b32.xlu0 %v3984, 125
    %v4084 = vpop.permute.xlu0 %4083
    %4085 = vrot.lane.b32.xlu0 %v3987, 125
    %v4086 = vpop.permute.xlu0 %4085
    %4087 = vrot.lane.b32.xlu0 %v3990, 125
    %v4088 = vpop.permute.xlu0 %4087
    %4089 = vrot.lane.b32.xlu0 %v3993, 125
    %v4090 = vpop.permute.xlu0 %4089
    %4091 = vrot.lane.b32.xlu0 %v3972, 124
    %v4092 = vpop.permute.xlu0 %4091
    %4093 = vrot.lane.b32.xlu0 %v3975, 124
    %v4094 = vpop.permute.xlu0 %4093
    %4095 = vrot.lane.b32.xlu0 %v3978, 124
    %v4096 = vpop.permute.xlu0 %4095
    %4097 = vrot.lane.b32.xlu0 %v3981, 124
    %v4098 = vpop.permute.xlu0 %4097
    %4099 = vrot.lane.b32.xlu0 %v3984, 124
    %v4100 = vpop.permute.xlu0 %4099
    %4101 = vrot.lane.b32.xlu0 %v3987, 124
    %v4102 = vpop.permute.xlu0 %4101
    %4103 = vrot.lane.b32.xlu0 %v3990, 124
    %v4104 = vpop.permute.xlu0 %4103
    %4105 = vrot.lane.b32.xlu0 %v3993, 124
    %v4106 = vpop.permute.xlu0 %4105
    %4107 = vrot.lane.b32.xlu0 %v3972, 123
    %v4108 = vpop.permute.xlu0 %4107
    %4109 = vrot.lane.b32.xlu0 %v3975, 123
    %v4110 = vpop.permute.xlu0 %4109
    %4111 = vrot.lane.b32.xlu0 %v3978, 123
    %v4112 = vpop.permute.xlu0 %4111
    %4113 = vrot.lane.b32.xlu0 %v3981, 123
    %v4114 = vpop.permute.xlu0 %4113
    %4115 = vrot.lane.b32.xlu0 %v3984, 123
    %v4116 = vpop.permute.xlu0 %4115
    %4117 = vrot.lane.b32.xlu0 %v3987, 123
    %v4118 = vpop.permute.xlu0 %4117
    %4119 = vrot.lane.b32.xlu0 %v3990, 123
    %v4120 = vpop.permute.xlu0 %4119
    %4121 = vrot.lane.b32.xlu0 %v3993, 123
    %v4122 = vpop.permute.xlu0 %4121
    %v4123 = vld [vmem:[%s63] sm:$0xff]
    %v4124 = vld [vmem:[%s63 + $0x8] sm:$0xff]
    %v4125 = vld [vmem:[%s63 + $0x10] sm:$0xff]
    %v4126 = vld [vmem:[%s63 + $0x18] sm:$0xff]
    %v4127 = vld [vmem:[%s63 + $0x20] sm:$0xff]
    %v4128 = vld [vmem:[%s63 + $0x28] sm:$0xff]
    %v4129 = vld [vmem:[%s63 + $0x30] sm:$0xff]
    %v4130 = vld [vmem:[%s63 + $0x38] sm:$0xff]
    %v4131 = vld [vmem:[%s63 + $0x40] sm:$0xff]
    %v4132 = vld [vmem:[%s63 + $0x48] sm:$0xff]
    %v4133 = vld [vmem:[%s63 + $0x50] sm:$0xff]
    %v4134 = vld [vmem:[%s63 + $0x58] sm:$0xff]
    %v4135 = vld [vmem:[%s63 + $0x60] sm:$0xff]
    %v4136 = vld [vmem:[%s63 + $0x68] sm:$0xff]
    %v4137 = vld [vmem:[%s63 + $0x70] sm:$0xff]
    %v4138 = vld [vmem:[%s63 + $0x78] sm:$0xff]
    %v4139 = vld [vmem:[%s63 + $0x80] sm:$0xff]
    %v4140 = vld [vmem:[%s63 + $0x88] sm:$0xff]
    %v4141 = vld [vmem:[%s63 + $0x90] sm:$0xff]
    %v4142 = vld [vmem:[%s63 + $0x98] sm:$0xff]
    %v4143 = vld [vmem:[%s63 + $0xa0] sm:$0xff]
    %v4144 = vld [vmem:[%s63 + $0xa8] sm:$0xff]
    %v4145 = vld [vmem:[%s63 + $0xb0] sm:$0xff]
    %v4146 = vld [vmem:[%s63 + $0xb8] sm:$0xff]
    %v4147 = vld [vmem:[%s63 + $0xc0] sm:$0xff]
    %v4148 = vld [vmem:[%s63 + $0xc8] sm:$0xff]
    %v4149 = vld [vmem:[%s63 + $0xd0] sm:$0xff]
    %v4150 = vld [vmem:[%s63 + $0xd8] sm:$0xff]
    %v4151 = vld [vmem:[%s63 + $0xe0] sm:$0xff]
    %v4152 = vld [vmem:[%s63 + $0xe8] sm:$0xff]
    %v4153 = vld [vmem:[%s63 + $0xf0] sm:$0xff]
    %v4154 = vld [vmem:[%s63 + $0xf8] sm:$0xff]
    %v4155 = vld [vmem:[%s63 + $0x100] sm:$0xff]
    %v4156 = vld [vmem:[%s63 + $0x108] sm:$0xff]
    %v4157 = vld [vmem:[%s63 + $0x110] sm:$0xff]
    %v4158 = vld [vmem:[%s63 + $0x118] sm:$0xff]
    %v4159 = vld [vmem:[%s63 + $0x120] sm:$0xff]
    %v4160 = vld [vmem:[%s63 + $0x128] sm:$0xff]
    %v4161 = vld [vmem:[%s63 + $0x130] sm:$0xff]
    %v4162 = vld [vmem:[%s63 + $0x138] sm:$0xff]
    %v4163 = vld [vmem:[%s65] sm:$0xff]
    %v4164 = vld [vmem:[%s65 + $0x8] sm:$0xff]
    %v4165 = vld [vmem:[%s65 + $0x10] sm:$0xff]
    %v4166 = vld [vmem:[%s65 + $0x18] sm:$0xff]
    %v4167 = vld [vmem:[%s65 + $0x20] sm:$0xff]
    %v4168 = vld [vmem:[%s65 + $0x28] sm:$0xff]
    %v4169 = vld [vmem:[%s65 + $0x30] sm:$0xff]
    %v4170 = vld [vmem:[%s65 + $0x38] sm:$0xff]
    %4172 = vset.pattern.permute.xlu0 0
    %4173 = vperm.xlu0 %4172, %v4163
    %v4174 = vpop.permute.xlu0 %4173
    %4177 = vset.pattern.permute.xlu0 0
    %4178 = vperm.xlu0 %4177, %v4164
    %v4179 = vpop.permute.xlu0 %4178
    %4182 = vset.pattern.permute.xlu0 0
    %4183 = vperm.xlu0 %4182, %v4165
    %v4184 = vpop.permute.xlu0 %4183
    %4187 = vset.pattern.permute.xlu0 0
    %4188 = vperm.xlu0 %4187, %v4166
    %v4189 = vpop.permute.xlu0 %4188
    %4192 = vset.pattern.permute.xlu0 0
    %4193 = vperm.xlu0 %4192, %v4167
    %v4194 = vpop.permute.xlu0 %4193
    %4197 = vset.pattern.permute.xlu0 0
    %4198 = vperm.xlu0 %4197, %v4168
    %v4199 = vpop.permute.xlu0 %4198
    %4202 = vset.pattern.permute.xlu0 0
    %4203 = vperm.xlu0 %4202, %v4169
    %v4204 = vpop.permute.xlu0 %4203
    %4207 = vset.pattern.permute.xlu0 0
    %4208 = vperm.xlu0 %4207, %v4170
    %v4209 = vpop.permute.xlu0 %4208
    %vm4211 = vcmask 523264
    %v4213 = vsel %vm4211, %v4127, 0
    %v4216 = vsel %vm4211, %v4132, 0
    %v4219 = vsel %vm4211, %v4137, 0
    %v4222 = vsel %vm4211, %v4142, 0
    %v4225 = vsel %vm4211, %v4147, 0
    %v4228 = vsel %vm4211, %v4152, 0
    %v4231 = vsel %vm4211, %v4157, 0
    %v4234 = vsel %vm4211, %v4162, 0
    %4236 = vmatpush.msra.mxu0 %v4026
    %4237 = vmatpush.msra.mxu0 %v4024
    %4238 = vmatpush.msra.mxu0 %v4022
    %4239 = vmatpush.msra.mxu0 %v4020
    %4240 = vmatpush.msra.mxu0 %v4018
    %4241 = vmatpush.msra.mxu0 %v4016
    %4242 = vmatpush.msra.mxu0 %v4014
    %4243 = vmatpush.msra.mxu0 %v4012
    %4244 = vmatpush.msra.mxu0 %v4010
    %4245 = vmatpush.msra.mxu0 %v4008
    %4246 = vmatpush.msra.mxu0 %v4006
    %4247 = vmatpush.msra.mxu0 %v4004
    %4248 = vmatpush.msra.mxu0 %v4002
    %4249 = vmatpush.msra.mxu0 %v4000
    %4250 = vmatpush.msra.mxu0 %v3998
    %4251 = vmatpush.msra.mxu0 %v3996
    %4252 = vmatmul.f32.gmra.mxu0 %v4123
    %v4253 = vpop.f32.mrf.mxu0
    %v4254 = vadd.f32 %v4174, %v4253
    %4255 = vmatmul.f32.gmra.mxu0 %v4128
    %v4256 = vpop.f32.mrf.mxu0
    %v4257 = vadd.f32 %v4179, %v4256
    %4258 = vmatmul.f32.gmra.mxu0 %v4133
    %v4259 = vpop.f32.mrf.mxu0
    %v4260 = vadd.f32 %v4184, %v4259
    %4261 = vmatmul.f32.gmra.mxu0 %v4138
    %v4262 = vpop.f32.mrf.mxu0
    %v4263 = vadd.f32 %v4189, %v4262
    %4264 = vmatmul.f32.gmra.mxu0 %v4143
    %v4265 = vpop.f32.mrf.mxu0
    %v4266 = vadd.f32 %v4194, %v4265
    %4267 = vmatmul.f32.gmra.mxu0 %v4148
    %v4268 = vpop.f32.mrf.mxu0
    %v4269 = vadd.f32 %v4199, %v4268
    %4270 = vmatmul.f32.gmra.mxu0 %v4153
    %v4271 = vpop.f32.mrf.mxu0
    %v4272 = vadd.f32 %v4204, %v4271
    %4273 = vmatmul.f32.gmra.mxu0 %v4158
    %v4274 = vpop.f32.mrf.mxu0
    %v4275 = vadd.f32 %v4209, %v4274
    %4276 = vdwg.mxu0
    %4277 = vmatpush.msra.mxu0 %v4058
    %4278 = vmatpush.msra.mxu0 %v4056
    %4279 = vmatpush.msra.mxu0 %v4054
    %4280 = vmatpush.msra.mxu0 %v4052
    %4281 = vmatpush.msra.mxu0 %v4050
    %4282 = vmatpush.msra.mxu0 %v4048
    %4283 = vmatpush.msra.mxu0 %v4046
    %4284 = vmatpush.msra.mxu0 %v4044
    %4285 = vmatpush.msra.mxu0 %v4042
    %4286 = vmatpush.msra.mxu0 %v4040
    %4287 = vmatpush.msra.mxu0 %v4038
    %4288 = vmatpush.msra.mxu0 %v4036
    %4289 = vmatpush.msra.mxu0 %v4034
    %4290 = vmatpush.msra.mxu0 %v4032
    %4291 = vmatpush.msra.mxu0 %v4030
    %4292 = vmatpush.msra.mxu0 %v4028
    %4293 = vmatmul.f32.gmra.mxu0 %v4124
    %v4294 = vpop.f32.mrf.mxu0
    %v4295 = vadd.f32 %v4254, %v4294
    %4296 = vmatmul.f32.gmra.mxu0 %v4129
    %v4297 = vpop.f32.mrf.mxu0
    %v4298 = vadd.f32 %v4257, %v4297
    %4299 = vmatmul.f32.gmra.mxu0 %v4134
    %v4300 = vpop.f32.mrf.mxu0
    %v4301 = vadd.f32 %v4260, %v4300
    %4302 = vmatmul.f32.gmra.mxu0 %v4139
    %v4303 = vpop.f32.mrf.mxu0
    %v4304 = vadd.f32 %v4263, %v4303
    %4305 = vmatmul.f32.gmra.mxu0 %v4144
    %v4306 = vpop.f32.mrf.mxu0
    %v4307 = vadd.f32 %v4266, %v4306
    %4308 = vmatmul.f32.gmra.mxu0 %v4149
    %v4309 = vpop.f32.mrf.mxu0
    %v4310 = vadd.f32 %v4269, %v4309
    %4311 = vmatmul.f32.gmra.mxu0 %v4154
    %v4312 = vpop.f32.mrf.mxu0
    %v4313 = vadd.f32 %v4272, %v4312
    %4314 = vmatmul.f32.gmra.mxu0 %v4159
    %v4315 = vpop.f32.mrf.mxu0
    %v4316 = vadd.f32 %v4275, %v4315
    %4317 = vdwg.mxu0
    %4318 = vmatpush.msra.mxu0 %v4074
    %4319 = vmatpush.msra.mxu0 %v4072
    %4320 = vmatpush.msra.mxu0 %v4070
    %4321 = vmatpush.msra.mxu0 %v4068
    %4322 = vmatpush.msra.mxu0 %v4066
    %4323 = vmatpush.msra.mxu0 %v4064
    %4324 = vmatpush.msra.mxu0 %v4062
    %4325 = vmatpush.msra.mxu0 %v4060
    %4326 = vmatpush.msra.mxu0 %v3993
    %4327 = vmatpush.msra.mxu0 %v3990
    %4328 = vmatpush.msra.mxu0 %v3987
    %4329 = vmatpush.msra.mxu0 %v3984
    %4330 = vmatpush.msra.mxu0 %v3981
    %4331 = vmatpush.msra.mxu0 %v3978
    %4332 = vmatpush.msra.mxu0 %v3975
    %4333 = vmatpush.msra.mxu0 %v3972
    %4334 = vmatmul.f32.gmra.mxu0 %v4125
    %v4335 = vpop.f32.mrf.mxu0
    %v4336 = vadd.f32 %v4295, %v4335
    %4337 = vmatmul.f32.gmra.mxu0 %v4130
    %v4338 = vpop.f32.mrf.mxu0
    %v4339 = vadd.f32 %v4298, %v4338
    %4340 = vmatmul.f32.gmra.mxu0 %v4135
    %v4341 = vpop.f32.mrf.mxu0
    %v4342 = vadd.f32 %v4301, %v4341
    %4343 = vmatmul.f32.gmra.mxu0 %v4140
    %v4344 = vpop.f32.mrf.mxu0
    %v4345 = vadd.f32 %v4304, %v4344
    %4346 = vmatmul.f32.gmra.mxu0 %v4145
    %v4347 = vpop.f32.mrf.mxu0
    %v4348 = vadd.f32 %v4307, %v4347
    %4349 = vmatmul.f32.gmra.mxu0 %v4150
    %v4350 = vpop.f32.mrf.mxu0
    %v4351 = vadd.f32 %v4310, %v4350
    %4352 = vmatmul.f32.gmra.mxu0 %v4155
    %v4353 = vpop.f32.mrf.mxu0
    %v4354 = vadd.f32 %v4313, %v4353
    %4355 = vmatmul.f32.gmra.mxu0 %v4160
    %v4356 = vpop.f32.mrf.mxu0
    %v4357 = vadd.f32 %v4316, %v4356
    %4358 = vdwg.mxu0
    %4359 = vmatpush.msra.mxu0 %v4106
    %4360 = vmatpush.msra.mxu0 %v4104
    %4361 = vmatpush.msra.mxu0 %v4102
    %4362 = vmatpush.msra.mxu0 %v4100
    %4363 = vmatpush.msra.mxu0 %v4098
    %4364 = vmatpush.msra.mxu0 %v4096
    %4365 = vmatpush.msra.mxu0 %v4094
    %4366 = vmatpush.msra.mxu0 %v4092
    %4367 = vmatpush.msra.mxu0 %v4090
    %4368 = vmatpush.msra.mxu0 %v4088
    %4369 = vmatpush.msra.mxu0 %v4086
    %4370 = vmatpush.msra.mxu0 %v4084
    %4371 = vmatpush.msra.mxu0 %v4082
    %4372 = vmatpush.msra.mxu0 %v4080
    %4373 = vmatpush.msra.mxu0 %v4078
    %4374 = vmatpush.msra.mxu0 %v4076
    %4375 = vmatmul.f32.gmra.mxu0 %v4126
    %v4376 = vpop.f32.mrf.mxu0
    %v4377 = vadd.f32 %v4336, %v4376
    %4378 = vmatmul.f32.gmra.mxu0 %v4131
    %v4379 = vpop.f32.mrf.mxu0
    %v4380 = vadd.f32 %v4339, %v4379
    %4381 = vmatmul.f32.gmra.mxu0 %v4136
    %v4382 = vpop.f32.mrf.mxu0
    %v4383 = vadd.f32 %v4342, %v4382
    %4384 = vmatmul.f32.gmra.mxu0 %v4141
    %v4385 = vpop.f32.mrf.mxu0
    %v4386 = vadd.f32 %v4345, %v4385
    %4387 = vmatmul.f32.gmra.mxu0 %v4146
    %v4388 = vpop.f32.mrf.mxu0
    %v4389 = vadd.f32 %v4348, %v4388
    %4390 = vmatmul.f32.gmra.mxu0 %v4151
    %v4391 = vpop.f32.mrf.mxu0
    %v4392 = vadd.f32 %v4351, %v4391
    %4393 = vmatmul.f32.gmra.mxu0 %v4156
    %v4394 = vpop.f32.mrf.mxu0
    %v4395 = vadd.f32 %v4354, %v4394
    %4396 = vmatmul.f32.gmra.mxu0 %v4161
    %v4397 = vpop.f32.mrf.mxu0
    %v4398 = vadd.f32 %v4357, %v4397
    %4399 = vdwg.mxu0
    %4400 = vmatpush.msra.mxu0 0.0
    %4401 = vmatpush.msra.mxu0 0.0
    %4402 = vmatpush.msra.mxu0 0.0
    %4403 = vmatpush.msra.mxu0 0.0
    %4404 = vmatpush.msra.mxu0 0.0
    %4405 = vmatpush.msra.mxu0 0.0
    %4406 = vmatpush.msra.mxu0 0.0
    %4407 = vmatpush.msra.mxu0 0.0
    %4408 = vmatpush.msra.mxu0 %v4122
    %4409 = vmatpush.msra.mxu0 %v4120
    %4410 = vmatpush.msra.mxu0 %v4118
    %4411 = vmatpush.msra.mxu0 %v4116
    %4412 = vmatpush.msra.mxu0 %v4114
    %4413 = vmatpush.msra.mxu0 %v4112
    %4414 = vmatpush.msra.mxu0 %v4110
    %4415 = vmatpush.msra.mxu0 %v4108
    %4416 = vmatmul.f32.gmra.mxu0 %v4213
    %v4417 = vpop.f32.mrf.mxu0
    %v4418 = vadd.f32 %v4377, %v4417
    %4419 = vmatmul.f32.gmra.mxu0 %v4216
    %v4420 = vpop.f32.mrf.mxu0
    %v4421 = vadd.f32 %v4380, %v4420
    %4422 = vmatmul.f32.gmra.mxu0 %v4219
    %v4423 = vpop.f32.mrf.mxu0
    %v4424 = vadd.f32 %v4383, %v4423
    %4425 = vmatmul.f32.gmra.mxu0 %v4222
    %v4426 = vpop.f32.mrf.mxu0
    %v4427 = vadd.f32 %v4386, %v4426
    %4428 = vmatmul.f32.gmra.mxu0 %v4225
    %v4429 = vpop.f32.mrf.mxu0
    %v4430 = vadd.f32 %v4389, %v4429
    %4431 = vmatmul.f32.gmra.mxu0 %v4228
    %v4432 = vpop.f32.mrf.mxu0
    %v4433 = vadd.f32 %v4392, %v4432
    %4434 = vmatmul.f32.gmra.mxu0 %v4231
    %v4435 = vpop.f32.mrf.mxu0
    %v4436 = vadd.f32 %v4395, %v4435
    %4437 = vmatmul.f32.gmra.mxu0 %v4234
    %v4438 = vpop.f32.mrf.mxu0
    %v4439 = vadd.f32 %v4398, %v4438
    %4440 = vdwg.mxu0
    %v4441 = vadd.f32 %v4418, %v3640
    %v4442 = vadd.f32 %v4421, %v3643
    %v4443 = vadd.f32 %v4424, %v3646
    %v4444 = vadd.f32 %v4427, %v3649
    %v4445 = vadd.f32 %v4430, %v3652
    %v4446 = vadd.f32 %v4433, %v3655
    %v4447 = vadd.f32 %v4436, %v3658
    %v4448 = vadd.f32 %v4439, %v3661
    %v4449 = vmax.f32 %v4441, 0.0
    %v4450 = vmax.f32 %v4442, 0.0
    %v4451 = vmax.f32 %v4443, 0.0
    %v4452 = vmax.f32 %v4444, 0.0
    %v4453 = vmax.f32 %v4445, 0.0
    %v4454 = vmax.f32 %v4446, 0.0
    %v4455 = vmax.f32 %v4447, 0.0
    %v4456 = vmax.f32 %v4448, 0.0
    %v4457 = vld [vmem:[#allocation9] sm:$0x1]
    %v4459 = vperm.slane %v4457, 0
    %v4461 = vmul.f32 %v4449, %v4459
    %v4462 = vmul.f32 %v4450, %v4459
    %v4463 = vmul.f32 %v4451, %v4459
    %v4464 = vmul.f32 %v4452, %v4459
    %v4465 = vmul.f32 %v4453, %v4459
    %v4466 = vmul.f32 %v4454, %v4459
    %v4467 = vmul.f32 %v4455, %v4459
    %v4468 = vmul.f32 %v4456, %v4459
    %v4469 = vld [vmem:[#allocation16] sm:$0xff]
    %v4470 = vld [vmem:[#allocation16 + $0x8] sm:$0xff]
    %v4471 = vld [vmem:[#allocation16 + $0x10] sm:$0xff]
    %v4472 = vld [vmem:[#allocation16 + $0x18] sm:$0xff]
    %v4473 = vld [vmem:[#allocation16 + $0x20] sm:$0xff]
    %v4474 = vld [vmem:[#allocation16 + $0x28] sm:$0xff]
    %v4475 = vld [vmem:[#allocation16 + $0x30] sm:$0xff]
    %v4476 = vld [vmem:[#allocation16 + $0x38] sm:$0xff]
    %v4477 = vld [vmem:[#allocation16 + $0x40] sm:$0xff]
    %v4478 = vld [vmem:[#allocation16 + $0x48] sm:$0xff]
    %v4479 = vld [vmem:[#allocation16 + $0x50] sm:$0xff]
    %v4480 = vld [vmem:[#allocation16 + $0x58] sm:$0xff]
    %v4481 = vld [vmem:[#allocation16 + $0x60] sm:$0xff]
    %v4482 = vld [vmem:[#allocation16 + $0x68] sm:$0xff]
    %v4483 = vld [vmem:[#allocation16 + $0x70] sm:$0xff]
    %v4484 = vld [vmem:[#allocation16 + $0x78] sm:$0xff]
    %v4485 = vld [vmem:[#allocation16 + $0x80] sm:$0xff]
    %v4486 = vld [vmem:[#allocation16 + $0x88] sm:$0xff]
    %v4487 = vld [vmem:[#allocation16 + $0x90] sm:$0xff]
    %v4488 = vld [vmem:[#allocation16 + $0x98] sm:$0xff]
    %v4489 = vld [vmem:[#allocation16 + $0xa0] sm:$0xff]
    %v4490 = vld [vmem:[#allocation16 + $0xa8] sm:$0xff]
    %v4491 = vld [vmem:[#allocation16 + $0xb0] sm:$0xff]
    %v4492 = vld [vmem:[#allocation16 + $0xb8] sm:$0xff]
    %v4493 = vld [vmem:[#allocation16 + $0xc0] sm:$0xff]
    %v4494 = vld [vmem:[#allocation16 + $0xc8] sm:$0xff]
    %v4495 = vld [vmem:[#allocation16 + $0xd0] sm:$0xff]
    %v4496 = vld [vmem:[#allocation16 + $0xd8] sm:$0xff]
    %v4497 = vld [vmem:[#allocation16 + $0xe0] sm:$0xff]
    %v4498 = vld [vmem:[#allocation16 + $0xe8] sm:$0xff]
    %v4499 = vld [vmem:[#allocation16 + $0xf0] sm:$0xff]
    %v4500 = vld [vmem:[#allocation16 + $0xf8] sm:$0xff]
    %4501 = vmatpush.msra.mxu0 %v4499
    %4502 = vmatpush.msra.mxu0 %v4497
    %4503 = vmatpush.msra.mxu0 %v4495
    %4504 = vmatpush.msra.mxu0 %v4493
    %4505 = vmatpush.msra.mxu0 %v4491
    %4506 = vmatpush.msra.mxu0 %v4489
    %4507 = vmatpush.msra.mxu0 %v4487
    %4508 = vmatpush.msra.mxu0 %v4485
    %4509 = vmatpush.msra.mxu0 %v4483
    %4510 = vmatpush.msra.mxu0 %v4481
    %4511 = vmatpush.msra.mxu0 %v4479
    %4512 = vmatpush.msra.mxu0 %v4477
    %4513 = vmatpush.msra.mxu0 %v4475
    %4514 = vmatpush.msra.mxu0 %v4473
    %4515 = vmatpush.msra.mxu0 %v4471
    %4516 = vmatpush.msra.mxu0 %v4469
    %4517 = vmatmul.f32.gmra.mxu0 %v4461
    %v4518 = vpop.f32.mrf.mxu0
    %v4519 = vadd.f32 0.0, %v4518
    %4520 = vmatmul.f32.gmra.mxu0 %v4462
    %v4521 = vpop.f32.mrf.mxu0
    %v4522 = vadd.f32 0.0, %v4521
    %4523 = vmatmul.f32.gmra.mxu0 %v4463
    %v4524 = vpop.f32.mrf.mxu0
    %v4525 = vadd.f32 0.0, %v4524
    %4526 = vmatmul.f32.gmra.mxu0 %v4464
    %v4527 = vpop.f32.mrf.mxu0
    %v4528 = vadd.f32 0.0, %v4527
    %4529 = vmatmul.f32.gmra.mxu0 %v4465
    %v4530 = vpop.f32.mrf.mxu0
    %v4531 = vadd.f32 0.0, %v4530
    %4532 = vmatmul.f32.gmra.mxu0 %v4466
    %v4533 = vpop.f32.mrf.mxu0
    %v4534 = vadd.f32 0.0, %v4533
    %4535 = vmatmul.f32.gmra.mxu0 %v4467
    %v4536 = vpop.f32.mrf.mxu0
    %v4537 = vadd.f32 0.0, %v4536
    %4538 = vmatmul.f32.gmra.mxu0 %v4468
    %v4539 = vpop.f32.mrf.mxu0
    %v4540 = vadd.f32 0.0, %v4539
    %4541 = vdwg.mxu0
    %4542 = vmatpush.msra.mxu0 %v4500
    %4543 = vmatpush.msra.mxu0 %v4498
    %4544 = vmatpush.msra.mxu0 %v4496
    %4545 = vmatpush.msra.mxu0 %v4494
    %4546 = vmatpush.msra.mxu0 %v4492
    %4547 = vmatpush.msra.mxu0 %v4490
    %4548 = vmatpush.msra.mxu0 %v4488
    %4549 = vmatpush.msra.mxu0 %v4486
    %4550 = vmatpush.msra.mxu0 %v4484
    %4551 = vmatpush.msra.mxu0 %v4482
    %4552 = vmatpush.msra.mxu0 %v4480
    %4553 = vmatpush.msra.mxu0 %v4478
    %4554 = vmatpush.msra.mxu0 %v4476
    %4555 = vmatpush.msra.mxu0 %v4474
    %4556 = vmatpush.msra.mxu0 %v4472
    %4557 = vmatpush.msra.mxu0 %v4470
    %4558 = vmatmul.f32.gmra.mxu0 %v4461
    %v4559 = vpop.f32.mrf.mxu0
    %v4560 = vadd.f32 0.0, %v4559
    %4561 = vmatmul.f32.gmra.mxu0 %v4462
    %v4562 = vpop.f32.mrf.mxu0
    %v4563 = vadd.f32 0.0, %v4562
    %4564 = vmatmul.f32.gmra.mxu0 %v4463
    %v4565 = vpop.f32.mrf.mxu0
    %v4566 = vadd.f32 0.0, %v4565
    %4567 = vmatmul.f32.gmra.mxu0 %v4464
    %v4568 = vpop.f32.mrf.mxu0
    %v4569 = vadd.f32 0.0, %v4568
    %4570 = vmatmul.f32.gmra.mxu0 %v4465
    %v4571 = vpop.f32.mrf.mxu0
    %v4572 = vadd.f32 0.0, %v4571
    %4573 = vmatmul.f32.gmra.mxu0 %v4466
    %v4574 = vpop.f32.mrf.mxu0
    %v4575 = vadd.f32 0.0, %v4574
    %4576 = vmatmul.f32.gmra.mxu0 %v4467
    %v4577 = vpop.f32.mrf.mxu0
    %v4578 = vadd.f32 0.0, %v4577
    %4579 = vmatmul.f32.gmra.mxu0 %v4468
    %v4580 = vpop.f32.mrf.mxu0
    %v4581 = vadd.f32 0.0, %v4580
    %4582 = vdwg.mxu0
    %4583 = vst [vmem:[%s71] sm:$0xff] %v4519
    %4584 = vst [vmem:[%s71 + $0x8] sm:$0xff] %v4560
    %4585 = vst [vmem:[%s71 + $0x10] sm:$0xff] %v4522
    %4586 = vst [vmem:[%s71 + $0x18] sm:$0xff] %v4563
    %4587 = vst [vmem:[%s71 + $0x20] sm:$0xff] %v4525
    %4588 = vst [vmem:[%s71 + $0x28] sm:$0xff] %v4566
    %4589 = vst [vmem:[%s71 + $0x30] sm:$0xff] %v4528
    %4590 = vst [vmem:[%s71 + $0x38] sm:$0xff] %v4569
    %4591 = vst [vmem:[%s71 + $0x40] sm:$0xff] %v4531
    %4592 = vst [vmem:[%s71 + $0x48] sm:$0xff] %v4572
    %4593 = vst [vmem:[%s71 + $0x50] sm:$0xff] %v4534
    %4594 = vst [vmem:[%s71 + $0x58] sm:$0xff] %v4575
    %4595 = vst [vmem:[%s71 + $0x60] sm:$0xff] %v4537
    %4596 = vst [vmem:[%s71 + $0x68] sm:$0xff] %v4578
    %4597 = vst [vmem:[%s71 + $0x70] sm:$0xff] %v4540
    %4598 = vst [vmem:[%s71 + $0x78] sm:$0xff] %v4581
    // Predicated region
    $region182: #{my_resnet_forward.1} parent=1 // pred_check
      _
    $region183: #{my_resnet_forward.1} parent=1 // pred_check_branch
      %4600 = sbr.rel (0) target = $region185
    $region184: #{my_resnet_forward.1} parent=1 // pred_region
      _
    $region185: #{my_resnet_forward.1} parent=1 // pred_fallthru
      _
    // Predicated region
    $region186: #{my_resnet_forward.1} parent=1 // pred_check
      _
    $region187: #{my_resnet_forward.1} parent=1 // pred_check_branch
      %4602 = sbr.rel (0) target = $region189
    $region188: #{my_resnet_forward.1} parent=1 // pred_region
      _
    $region189: #{my_resnet_forward.1} parent=1 // pred_fallthru
      _
    %4603 = vsyncpa [#allocation3], 1
    %4604 = vsyncpa [#allocation5], 1
    %4605 = vsyncpa [#allocation8], 1
    %4606 = vsyncpa [#allocation11], 1
    %4607 = vsyncpa [#allocation14], 1
    %4608 = vsyncpa [#allocation17], 1

</llo_original>
